<compile_context>
chip_gen: v5e
topology: v5e:2x2
jax: 0.10.0
libtpu: 0.0.40
codegen_flags: <defaults>
</compile_context>

<pallas_src>
import math

import jax
import jax.numpy as jnp
from jax import lax
from jax.experimental import pallas as pl
from jax.experimental.pallas import tpu as pltpu


def _round_up(x, m):
    return ((x + m - 1) // m) * m


def _make_tgt_kernel(num_heads, d_k, d_model, tm, ts, eps, compute_dtype):
    H, DK, D, TM, TS = num_heads, d_k, d_model, tm, ts
    HH = H * H
    inv_sqrt_dk = 1.0 / math.sqrt(DK)
    f32 = jnp.float32

    def kernel(xd_ref, xsT_ref, e_ref, adj_ref, vr_ref, wqk_ref, gam_ref, bet_ref,
               out_ref, acc_ref, p_ref):
        j = pl.program_id(1)

        # ---- per-dst-block init (amortized over the src-step loop) --------------------
        @pl.when(j == 0)
        def _init():
            acc_ref[...] = jnp.zeros_like(acc_ref)
            # P[m, a*H+b, :] = Q_a[m] @ Wk_b  built with ONE K=D matmul against the
            # host-precomposed Wqk; the per-pair slice-stores are amortized init cost.
            pmat = jnp.dot(xd_ref[...], wqk_ref[...],
                           preferred_element_type=f32)                 # [TM, HH*D]
            for idx in range(HH):
                p_ref[:, idx, :] = pmat[:, idx * D:(idx + 1) * D].astype(p_ref.dtype)

        # ---- per (dst block, src block) work -------------------------------------------
        p_all = p_ref[...]                                             # [TM, HH, D]

        # x-term of the scores: one big lane-dense MXU matmul (no xk temporary)
        sx = jnp.dot(p_all.reshape(TM * HH, D), xsT_ref[...],
                     preferred_element_type=f32).reshape(TM, HH, TS)   # [TM, HH, TS]
        # e-term: per-dst-row batched matmul, src on lanes (edge block is [TM, D, TS])
        se = jnp.einsum('mpd,mds->mps', p_all, e_ref[...],
                        preferred_element_type=f32)                    # [TM, HH, TS]
        s = (sx + se) * inv_sqrt_dk
        s = jnp.where(s >= 0.0, s, 0.01 * s)                           # F.leaky_relu(0.01)

        adj = adj_ref[...].astype(f32)                                 # [TM, TS]
        vr = vr_ref[...].reshape(H * TS, DK)                           # [H*TS, DK] (free merge)

        # softmax over key heads (per edge) + fused aggregation:
        #   one [TM, H*TS] @ [H*TS, DK] matmul per query head (K = H*TS).
        for a in range(H):
            cols = [s[:, a * H + b, :] for b in range(H)]              # H x [TM, TS]
            mx = cols[0]
            for b in range(1, H):
                mx = jnp.maximum(mx, cols[b])
            exps = [jnp.exp(c - mx) for c in cols]
            den = exps[0]
            for b in range(1, H):
                den = den + exps[b]
            scale = adj * pl.reciprocal(den, approx=False)             # [TM, TS]
            w_a = jnp.concatenate(
                [(ex * scale).astype(compute_dtype) for ex in exps],
                axis=-1)                                               # [TM, H*TS]
            h_a = jnp.dot(w_a, vr, preferred_element_type=f32)         # [TM, DK]
            acc_ref[a] = acc_ref[a] + h_a                              # dense [TM, DK] store

        # ---- finalize: residual + LayerNorm, one lane-dense [TM, D] store --------------
        @pl.when(j == pl.num_programs(1) - 1)
        def _finalize():
            h = jnp.concatenate([acc_ref[a] for a in range(H)], axis=-1)   # [TM, D]
            y = xd_ref[...].astype(f32) + h
            mu = jnp.mean(y, axis=-1, keepdims=True)
            var = jnp.mean((y - mu) * (y - mu), axis=-1, keepdims=True)
            yn = (y - mu) * lax.rsqrt(var + eps)
            out_ref[...] = (yn * gam_ref[...] + bet_ref[...]).astype(out_ref.dtype)

    return kernel


def tgt_layer_forward(x, e_dense, adj, Wq, Wk, Wv, gamma, beta, num_heads,
                      eps=1e-6, compute_dtype=jnp.float32,
                      dst_block=128, src_block=256,
                      vmem_budget_bytes=44 * 1024 * 1024):
    """TGTLayer forward.  compute_dtype=bf16 halves HBM traffic and feeds bf16 MXU
    operands (recommended default on v5e); softmax / LayerNorm math stays f32."""
    N, D = x.shape
    H = num_heads
    assert D % H == 0
    DK = D // H
    HH = H * H
    cdt = compute_dtype
    f32 = jnp.float32
    cbytes = jnp.dtype(cdt).itemsize

    # ----- tile selection: dst rows on sublanes, src nodes on lanes --------------------
    TM = min(_round_up(dst_block, 8), _round_up(N, 8))
    # megacore (v7x has 2 TensorCores): make sure >= 2 dst blocks exist when possible
    if _round_up(N, TM) // TM < 2 and N > 8:
        TM = max(8, _round_up((N + 1) // 2, 8))
    TS = min(_round_up(src_block, 128), _round_up(N, 128))

    def _vmem_need(ts):
        lane = lambda n: _round_up(n, 128)
        sub = lambda n: _round_up(n, 8)
        dbl = 2 * (sub(TM) * D * lane(ts) * cbytes          # edge block (TM, D, TS)
                   + sub(TM) * lane(ts) * cbytes            # adjacency
                   + sub(D) * lane(ts) * cbytes             # x^T src block
                   + H * sub(ts) * lane(DK) * cbytes        # Vr block
                   + sub(TM) * lane(D) * cbytes             # x dst block
                   + sub(TM) * lane(D) * 4)                 # output block
        resident = sub(D) * lane(HH * D) * cbytes + 2 * lane(D) * 4
        scratch = sub(TM) * HH * lane(D) * cbytes + H * sub(TM) * lane(DK) * 4
        temps = (sub(TM) * HH * lane(ts) * 4                # s
                 + 4 * sub(TM) * lane(ts) * 4               # per-head exps / scale
                 + sub(TM) * H * lane(ts) * cbytes)         # w_a
        return dbl + resident + scratch + temps + (4 << 20)

    while _vmem_need(TS) > vmem_budget_bytes and TS > 128:
        TS -= 128
    vmem_limit = int(min(max(_vmem_need(TS), 16 << 20), vmem_budget_bytes))

    Ndp = _round_up(N, TM)
    Nsp = _round_up(N, TS)

    # ----- host-side packing / padding (padded rows & lanes carry adj == 0) ------------
    xd = jnp.pad(x, ((0, Ndp - N), (0, 0))).astype(cdt)                       # [Ndp, D]
    xsT = jnp.pad(x.T, ((0, 0), (0, Nsp - N))).astype(cdt)                    # [D, Nsp]
    eT = jnp.pad(e_dense.transpose(0, 2, 1),
                 ((0, Ndp - N), (0, 0), (0, Nsp - N))).astype(cdt)            # [Ndp, D, Nsp]
    adj_p = jnp.pad(adj.astype(f32), ((0, Ndp - N), (0, Nsp - N))).astype(cdt)

    # V = x @ Wv precomputed once, rearranged so Vr[b, t, k] = V[t, b*DK + k]
    V = (x.astype(f32) @ Wv.astype(f32)).reshape(N, H, DK).transpose(1, 0, 2)  # [H, N, DK]
    vr = jnp.pad(V, ((0, 0), (0, Nsp - N), (0, 0))).astype(cdt)               # [H, Nsp, DK]

    # Wqk[f, (a*H+b)*D + d] = sum_dk Wq[f, a*DK+dk] * Wk[d, b*DK+dk]
    wqk = jnp.einsum('fak,dbk->fabd',
                     Wq.reshape(D, H, DK).astype(f32),
                     Wk.reshape(D, H, DK).astype(f32)).reshape(D, HH * D).astype(cdt)

    gam = gamma.reshape(1, D).astype(f32)
    bet = beta.reshape(1, D).astype(f32)

    kernel = _make_tgt_kernel(H, DK, D, TM, TS, eps, cdt)

    out = pl.pallas_call(
        kernel,
        out_shape=jax.ShapeDtypeStruct((Ndp, D), jnp.float32),
        grid_spec=pltpu.PrefetchScalarGridSpec(
            num_scalar_prefetch=0,
            grid=(Ndp // TM, Nsp // TS),
            in_specs=[
                pl.BlockSpec((TM, D), lambda i, j: (i, 0)),            # x (dst rows)
                pl.BlockSpec((D, TS), lambda i, j: (0, j)),            # x^T (src cols on lanes)
                pl.BlockSpec((TM, D, TS), lambda i, j: (i, 0, j)),     # edge block (src on lanes)
                pl.BlockSpec((TM, TS), lambda i, j: (i, j)),           # adjacency block
                pl.BlockSpec((H, TS, DK), lambda i, j: (0, j, 0)),     # Vr block
                pl.BlockSpec((D, HH * D), lambda i, j: (0, 0)),        # Wqk (resident)
                pl.BlockSpec((1, D), lambda i, j: (0, 0)),             # LayerNorm gamma
                pl.BlockSpec((1, D), lambda i, j: (0, 0)),             # LayerNorm beta
            ],
            out_specs=pl.BlockSpec((TM, D), lambda i, j: (i, 0)),      # lane-dense output tile
            scratch_shapes=[
                pltpu.VMEM((H, TM, DK), jnp.float32),                  # h accumulator per q-head
                pltpu.VMEM((TM, HH, D), cdt),                          # P = (x Wq) composed w/ Wk
            ],
        ),
        compiler_params=pltpu.CompilerParams(
            dimension_semantics=("parallel", "arbitrary"),
            vmem_limit_bytes=vmem_limit,
        ),
    )(xd, xsT, eT, adj_p, vr, wqk, gam, bet)

    return out[:N]


def reference(x, e_dense, adj, Wq, Wk, Wv, gamma, beta, num_heads, eps=1e-6):
    """Pure-JAX dense reference mirroring the DGL message/reduce semantics."""
    N, D = x.shape
    H = num_heads
    DK = D // H
    Q = (x @ Wq).reshape(N, H, DK)
    V = (x @ Wv).reshape(N, H, DK)
    Xk = x[None, :, :] + e_dense                          # [dst, src, D]
    K = (Xk.reshape(N * N, D) @ Wk).reshape(N, N, H, DK)
    S = jnp.einsum('iad,ijbd->ijab', Q, K) / jnp.sqrt(jnp.float32(DK))
    S = jnp.where(S >= 0.0, S, 0.01 * S)
    A = jax.nn.softmax(S, axis=-1)
    M = jnp.einsum('ijab,jbd->ijad', A, V)
    h = jnp.einsum('ij,ijad->iad', adj.astype(jnp.float32), M).reshape(N, D)
    y = x + h
    mu = y.mean(-1, keepdims=True)
    var = ((y - mu) ** 2).mean(-1, keepdims=True)
    return (y - mu) / jnp.sqrt(var + eps) * gamma + beta


def _make_case(key, N, D, H):
    k1, k2, k3, k4, k5 = jax.random.split(key, 5)
    x = jax.random.normal(k1, (N, D), jnp.float32)
    e_dense = jax.random.normal(k2, (N, N, D), jnp.float32) * 0.5
    ii = jnp.arange(N)[:, None]
    jj = jnp.arange(N)[None, :]
    diff = (jj - ii) % N
    adj = ((diff == 1) | (diff == 2) | (diff == 5)).astype(jnp.float32)
    scale = 1.0 / math.sqrt(D)
    Wq = jax.random.normal(k3, (D, D), jnp.float32) * scale   # bias-free Linear: x @ W
    Wk = jax.random.normal(k4, (D, D), jnp.float32) * scale
    Wv = jax.random.normal(k5, (D, D), jnp.float32) * scale
    gamma = jnp.ones((D,), jnp.float32)                       # LayerNorm default init
    beta = jnp.zeros((D,), jnp.float32)
    return x, e_dense, adj, Wq, Wk, Wv, gamma, beta


if __name__ == "__main__":
    D, H = 32, 4                        # d_model=32, num_heads=4 (d_k=8)
    key_a, key_b = jax.random.split(jax.random.PRNGKey(0))

    # ---- case 1: tiny graph (8 nodes), strict f32 check --------------------------------
    x, e, adj, Wq, Wk, Wv, gamma, beta = _make_case(key_a, 8, D, H)
    ref = reference(x, e, adj, Wq, Wk, Wv, gamma, beta, H)

    out = jax.block_until_ready(tgt_layer_forward(x, e, adj, Wq, Wk, Wv, gamma, beta, H))
    assert out.shape == (8, D)
    err = float(jnp.max(jnp.abs(out - ref)))
    assert jnp.allclose(out, ref, atol=1e-4, rtol=1e-4), f"f32 max_err={err}"

    # bf16 storage / MXU-operand path (HBM + MXU relief); softmax/LayerNorm stay f32
    out_bf16 = jax.block_until_ready(
        tgt_layer_forward(x, e, adj, Wq, Wk, Wv, gamma, beta, H,
                          compute_dtype=jnp.bfloat16))
    assert bool(jnp.all(jnp.isfinite(out_bf16)))
    assert jnp.allclose(out_bf16, ref, atol=1e-1, rtol=1e-1)

    # ---- case 2: larger graph exercising multi dst blocks + src-axis accumulator -------
    N2 = 136
    x2, e2, adj2, Wq2, Wk2, Wv2, g2, b2 = _make_case(key_b, N2, D, H)
    ref2 = reference(x2, e2, adj2, Wq2, Wk2, Wv2, g2, b2, H)
    out2 = jax.block_until_ready(
        tgt_layer_forward(x2, e2, adj2, Wq2, Wk2, Wv2, g2, b2, H,
                          dst_block=64, src_block=128))
    err2 = float(jnp.max(jnp.abs(out2 - ref2)))
    assert jnp.allclose(out2, ref2, atol=1e-4, rtol=1e-4), f"f32(grid) max_err={err2}"

    print("KERNEL_OK")
</pallas_src>

<mosaic_0001>
module attributes {stable_mosaic.version = 11 : i64} {
  func.func @kernel(%arg0: i32, %arg1: i32, %arg2: memref<8x32xf32, #tpu.memory_space<vmem>>, %arg3: memref<32x128xf32, #tpu.memory_space<vmem>>, %arg4: memref<8x32x128xf32, #tpu.memory_space<vmem>>, %arg5: memref<8x128xf32, #tpu.memory_space<vmem>>, %arg6: memref<4x128x8xf32, #tpu.memory_space<vmem>>, %arg7: memref<32x512xf32, #tpu.memory_space<vmem>>, %arg8: memref<1x32xf32, #tpu.memory_space<vmem>>, %arg9: memref<1x32xf32, #tpu.memory_space<vmem>>, %arg10: memref<8x32xf32, #tpu.memory_space<vmem>>, %arg11: memref<4x8x8xf32, #tpu.memory_space<vmem>>, %arg12: memref<8x16x32xf32, #tpu.memory_space<vmem>>) attributes {dimension_semantics = [#tpu.dimension_semantics<parallel>, #tpu.dimension_semantics<arbitrary>], iteration_bounds = array<i64: 1, 1>, scalar_prefetch = 0 : i64, scratch_operands = 2 : i64, tpu.core_type = #tpu.core_type<tc>, window_params = [{transform_indices = @transform_0, window_bounds = array<i64: 8, 32>}, {transform_indices = @transform_1, window_bounds = array<i64: 32, 128>}, {transform_indices = @transform_2, window_bounds = array<i64: 8, 32, 128>}, {transform_indices = @transform_3, window_bounds = array<i64: 8, 128>}, {transform_indices = @transform_4, window_bounds = array<i64: 4, 128, 8>}, {pipeline_mode = #tpu.pipeline_mode<synchronous>, transform_indices = @transform_5, window_bounds = array<i64: 32, 512>}, {pipeline_mode = #tpu.pipeline_mode<synchronous>, transform_indices = @transform_6, window_bounds = array<i64: 1, 32>}, {pipeline_mode = #tpu.pipeline_mode<synchronous>, transform_indices = @transform_7, window_bounds = array<i64: 1, 32>}, {transform_indices = @transform_8, window_bounds = array<i64: 8, 32>}]} {
    %c0_i32 = arith.constant 0 : i32
    %0 = arith.cmpi eq, %arg1, %c0_i32 : i32
    %1 = arith.extui %0 : i1 to i32
    %c0_i32_0 = arith.constant 0 : i32
    %2 = arith.cmpi ne, %1, %c0_i32_0 : i32
    scf.if %2 {
      %cst_44 = arith.constant 0.000000e+00 : f32
      %168 = vector.broadcast %cst_44 : f32 to vector<4x8x8xf32>
      %c0_45 = arith.constant 0 : index
      %c0_46 = arith.constant 0 : index
      %c0_47 = arith.constant 0 : index
      %169 = vector.load %arg11[%c0_45, %c0_46, %c0_47] : memref<4x8x8xf32, #tpu.memory_space<vmem>>, vector<4x8x8xf32>
      tpu.vector_store %arg11[%c0_45, %c0_46, %c0_47], %168 {strides = array<i32>} : memref<4x8x8xf32, #tpu.memory_space<vmem>>, vector<4x8x8xf32>,
      %c0_48 = arith.constant 0 : index
      %c0_49 = arith.constant 0 : index
      %170 = vector.load %arg2[%c0_48, %c0_49] : memref<8x32xf32, #tpu.memory_space<vmem>>, vector<8x32xf32>
      %c0_50 = arith.constant 0 : index
      %c0_51 = arith.constant 0 : index
      %171 = vector.load %arg7[%c0_50, %c0_51] : memref<32x512xf32, #tpu.memory_space<vmem>>, vector<32x512xf32>
      %cst_52 = arith.constant dense<0.000000e+00> : vector<8x512xf32>
      %172 = tpu.matmul %170, %171, %cst_52 {dimension_numbers = #tpu.dot_dimension_numbers<[1], [0], [0], [1], [0, 0, 1, 1], [], []>} : vector<8x32xf32>, vector<32x512xf32>, vector<8x512xf32> -> vector<8x512xf32>
      %173 = vector.extract_strided_slice %172 {offsets = [0, 0], sizes = [8, 32], strides = [1, 1]} : vector<8x512xf32> to vector<8x32xf32>
      %c0_53 = arith.constant 0 : index
      %c0_54 = arith.constant 0 : index
      %c0_55 = arith.constant 0 : index
      %174 = vector.load %arg12[%c0_53, %c0_54, %c0_55] : memref<8x16x32xf32, #tpu.memory_space<vmem>>, vector<8x1x32xf32>
      %175 = vector.shape_cast %174 : vector<8x1x32xf32> to vector<8x32xf32>
      %176 = vector.shape_cast %173 : vector<8x32xf32> to vector<8x1x32xf32>
      tpu.vector_store %arg12[%c0_53, %c0_54, %c0_55], %176 {strides = array<i32>} : memref<8x16x32xf32, #tpu.memory_space<vmem>>, vector<8x1x32xf32>,
      %177 = vector.extract_strided_slice %172 {offsets = [0, 32], sizes = [8, 32], strides = [1, 1]} : vector<8x512xf32> to vector<8x32xf32>
      %c0_56 = arith.constant 0 : index
      %c1_57 = arith.constant 1 : index
      %c0_58 = arith.constant 0 : index
      %178 = vector.load %arg12[%c0_56, %c1_57, %c0_58] : memref<8x16x32xf32, #tpu.memory_space<vmem>>, vector<8x1x32xf32>
      %179 = vector.shape_cast %178 : vector<8x1x32xf32> to vector<8x32xf32>
      %180 = vector.shape_cast %177 : vector<8x32xf32> to vector<8x1x32xf32>
      tpu.vector_store %arg12[%c0_56, %c1_57, %c0_58], %180 {strides = array<i32>} : memref<8x16x32xf32, #tpu.memory_space<vmem>>, vector<8x1x32xf32>,
      %181 = vector.extract_strided_slice %172 {offsets = [0, 64], sizes = [8, 32], strides = [1, 1]} : vector<8x512xf32> to vector<8x32xf32>
      %c0_59 = arith.constant 0 : index
      %c2_60 = arith.constant 2 : index
      %c0_61 = arith.constant 0 : index
      %182 = vector.load %arg12[%c0_59, %c2_60, %c0_61] : memref<8x16x32xf32, #tpu.memory_space<vmem>>, vector<8x1x32xf32>
      %183 = vector.shape_cast %182 : vector<8x1x32xf32> to vector<8x32xf32>
      %184 = vector.shape_cast %181 : vector<8x32xf32> to vector<8x1x32xf32>
      tpu.vector_store %arg12[%c0_59, %c2_60, %c0_61], %184 {strides = array<i32>} : memref<8x16x32xf32, #tpu.memory_space<vmem>>, vector<8x1x32xf32>,
      %185 = vector.extract_strided_slice %172 {offsets = [0, 96], sizes = [8, 32], strides = [1, 1]} : vector<8x512xf32> to vector<8x32xf32>
      %c0_62 = arith.constant 0 : index
      %c3_63 = arith.constant 3 : index
      %c0_64 = arith.constant 0 : index
      %186 = vector.load %arg12[%c0_62, %c3_63, %c0_64] : memref<8x16x32xf32, #tpu.memory_space<vmem>>, vector<8x1x32xf32>
      %187 = vector.shape_cast %186 : vector<8x1x32xf32> to vector<8x32xf32>
      %188 = vector.shape_cast %185 : vector<8x32xf32> to vector<8x1x32xf32>
      tpu.vector_store %arg12[%c0_62, %c3_63, %c0_64], %188 {strides = array<i32>} : memref<8x16x32xf32, #tpu.memory_space<vmem>>, vector<8x1x32xf32>,
      %189 = vector.extract_strided_slice %172 {offsets = [0, 128], sizes = [8, 32], strides = [1, 1]} : vector<8x512xf32> to vector<8x32xf32>
      %c0_65 = arith.constant 0 : index
      %c4 = arith.constant 4 : index
      %c0_66 = arith.constant 0 : index
      %190 = vector.load %arg12[%c0_65, %c4, %c0_66] : memref<8x16x32xf32, #tpu.memory_space<vmem>>, vector<8x1x32xf32>
      %191 = vector.shape_cast %190 : vector<8x1x32xf32> to vector<8x32xf32>
      %192 = vector.shape_cast %189 : vector<8x32xf32> to vector<8x1x32xf32>
      tpu.vector_store %arg12[%c0_65, %c4, %c0_66], %192 {strides = array<i32>} : memref<8x16x32xf32, #tpu.memory_space<vmem>>, vector<8x1x32xf32>,
      %193 = vector.extract_strided_slice %172 {offsets = [0, 160], sizes = [8, 32], strides = [1, 1]} : vector<8x512xf32> to vector<8x32xf32>
      %c0_67 = arith.constant 0 : index
      %c5 = arith.constant 5 : index
      %c0_68 = arith.constant 0 : index
      %194 = vector.load %arg12[%c0_67, %c5, %c0_68] : memref<8x16x32xf32, #tpu.memory_space<vmem>>, vector<8x1x32xf32>
      %195 = vector.shape_cast %194 : vector<8x1x32xf32> to vector<8x32xf32>
      %196 = vector.shape_cast %193 : vector<8x32xf32> to vector<8x1x32xf32>
      tpu.vector_store %arg12[%c0_67, %c5, %c0_68], %196 {strides = array<i32>} : memref<8x16x32xf32, #tpu.memory_space<vmem>>, vector<8x1x32xf32>,
      %197 = vector.extract_strided_slice %172 {offsets = [0, 192], sizes = [8, 32], strides = [1, 1]} : vector<8x512xf32> to vector<8x32xf32>
      %c0_69 = arith.constant 0 : index
      %c6 = arith.constant 6 : index
      %c0_70 = arith.constant 0 : index
      %198 = vector.load %arg12[%c0_69, %c6, %c0_70] : memref<8x16x32xf32, #tpu.memory_space<vmem>>, vector<8x1x32xf32>
      %199 = vector.shape_cast %198 : vector<8x1x32xf32> to vector<8x32xf32>
      %200 = vector.shape_cast %197 : vector<8x32xf32> to vector<8x1x32xf32>
      tpu.vector_store %arg12[%c0_69, %c6, %c0_70], %200 {strides = array<i32>} : memref<8x16x32xf32, #tpu.memory_space<vmem>>, vector<8x1x32xf32>,
      %201 = vector.extract_strided_slice %172 {offsets = [0, 224], sizes = [8, 32], strides = [1, 1]} : vector<8x512xf32> to vector<8x32xf32>
      %c0_71 = arith.constant 0 : index
      %c7 = arith.constant 7 : index
      %c0_72 = arith.constant 0 : index
      %202 = vector.load %arg12[%c0_71, %c7, %c0_72] : memref<8x16x32xf32, #tpu.memory_space<vmem>>, vector<8x1x32xf32>
      %203 = vector.shape_cast %202 : vector<8x1x32xf32> to vector<8x32xf32>
      %204 = vector.shape_cast %201 : vector<8x32xf32> to vector<8x1x32xf32>
      tpu.vector_store %arg12[%c0_71, %c7, %c0_72], %204 {strides = array<i32>} : memref<8x16x32xf32, #tpu.memory_space<vmem>>, vector<8x1x32xf32>,
      %205 = vector.extract_strided_slice %172 {offsets = [0, 256], sizes = [8, 32], strides = [1, 1]} : vector<8x512xf32> to vector<8x32xf32>
      %c0_73 = arith.constant 0 : index
      %c8 = arith.constant 8 : index
      %c0_74 = arith.constant 0 : index
      %206 = vector.load %arg12[%c0_73, %c8, %c0_74] : memref<8x16x32xf32, #tpu.memory_space<vmem>>, vector<8x1x32xf32>
      %207 = vector.shape_cast %206 : vector<8x1x32xf32> to vector<8x32xf32>
      %208 = vector.shape_cast %205 : vector<8x32xf32> to vector<8x1x32xf32>
      tpu.vector_store %arg12[%c0_73, %c8, %c0_74], %208 {strides = array<i32>} : memref<8x16x32xf32, #tpu.memory_space<vmem>>, vector<8x1x32xf32>,
      %209 = vector.extract_strided_slice %172 {offsets = [0, 288], sizes = [8, 32], strides = [1, 1]} : vector<8x512xf32> to vector<8x32xf32>
      %c0_75 = arith.constant 0 : index
      %c9 = arith.constant 9 : index
      %c0_76 = arith.constant 0 : index
      %210 = vector.load %arg12[%c0_75, %c9, %c0_76] : memref<8x16x32xf32, #tpu.memory_space<vmem>>, vector<8x1x32xf32>
      %211 = vector.shape_cast %210 : vector<8x1x32xf32> to vector<8x32xf32>
      %212 = vector.shape_cast %209 : vector<8x32xf32> to vector<8x1x32xf32>
      tpu.vector_store %arg12[%c0_75, %c9, %c0_76], %212 {strides = array<i32>} : memref<8x16x32xf32, #tpu.memory_space<vmem>>, vector<8x1x32xf32>,
      %213 = vector.extract_strided_slice %172 {offsets = [0, 320], sizes = [8, 32], strides = [1, 1]} : vector<8x512xf32> to vector<8x32xf32>
      %c0_77 = arith.constant 0 : index
      %c10 = arith.constant 10 : index
      %c0_78 = arith.constant 0 : index
      %214 = vector.load %arg12[%c0_77, %c10, %c0_78] : memref<8x16x32xf32, #tpu.memory_space<vmem>>, vector<8x1x32xf32>
      %215 = vector.shape_cast %214 : vector<8x1x32xf32> to vector<8x32xf32>
      %216 = vector.shape_cast %213 : vector<8x32xf32> to vector<8x1x32xf32>
      tpu.vector_store %arg12[%c0_77, %c10, %c0_78], %216 {strides = array<i32>} : memref<8x16x32xf32, #tpu.memory_space<vmem>>, vector<8x1x32xf32>,
      %217 = vector.extract_strided_slice %172 {offsets = [0, 352], sizes = [8, 32], strides = [1, 1]} : vector<8x512xf32> to vector<8x32xf32>
      %c0_79 = arith.constant 0 : index
      %c11 = arith.constant 11 : index
      %c0_80 = arith.constant 0 : index
      %218 = vector.load %arg12[%c0_79, %c11, %c0_80] : memref<8x16x32xf32, #tpu.memory_space<vmem>>, vector<8x1x32xf32>
      %219 = vector.shape_cast %218 : vector<8x1x32xf32> to vector<8x32xf32>
      %220 = vector.shape_cast %217 : vector<8x32xf32> to vector<8x1x32xf32>
      tpu.vector_store %arg12[%c0_79, %c11, %c0_80], %220 {strides = array<i32>} : memref<8x16x32xf32, #tpu.memory_space<vmem>>, vector<8x1x32xf32>,
      %221 = vector.extract_strided_slice %172 {offsets = [0, 384], sizes = [8, 32], strides = [1, 1]} : vector<8x512xf32> to vector<8x32xf32>
      %c0_81 = arith.constant 0 : index
      %c12 = arith.constant 12 : index
      %c0_82 = arith.constant 0 : index
      %222 = vector.load %arg12[%c0_81, %c12, %c0_82] : memref<8x16x32xf32, #tpu.memory_space<vmem>>, vector<8x1x32xf32>
      %223 = vector.shape_cast %222 : vector<8x1x32xf32> to vector<8x32xf32>
      %224 = vector.shape_cast %221 : vector<8x32xf32> to vector<8x1x32xf32>
      tpu.vector_store %arg12[%c0_81, %c12, %c0_82], %224 {strides = array<i32>} : memref<8x16x32xf32, #tpu.memory_space<vmem>>, vector<8x1x32xf32>,
      %225 = vector.extract_strided_slice %172 {offsets = [0, 416], sizes = [8, 32], strides = [1, 1]} : vector<8x512xf32> to vector<8x32xf32>
      %c0_83 = arith.constant 0 : index
      %c13 = arith.constant 13 : index
      %c0_84 = arith.constant 0 : index
      %226 = vector.load %arg12[%c0_83, %c13, %c0_84] : memref<8x16x32xf32, #tpu.memory_space<vmem>>, vector<8x1x32xf32>
      %227 = vector.shape_cast %226 : vector<8x1x32xf32> to vector<8x32xf32>
      %228 = vector.shape_cast %225 : vector<8x32xf32> to vector<8x1x32xf32>
      tpu.vector_store %arg12[%c0_83, %c13, %c0_84], %228 {strides = array<i32>} : memref<8x16x32xf32, #tpu.memory_space<vmem>>, vector<8x1x32xf32>,
      %229 = vector.extract_strided_slice %172 {offsets = [0, 448], sizes = [8, 32], strides = [1, 1]} : vector<8x512xf32> to vector<8x32xf32>
      %c0_85 = arith.constant 0 : index
      %c14 = arith.constant 14 : index
      %c0_86 = arith.constant 0 : index
      %230 = vector.load %arg12[%c0_85, %c14, %c0_86] : memref<8x16x32xf32, #tpu.memory_space<vmem>>, vector<8x1x32xf32>
      %231 = vector.shape_cast %230 : vector<8x1x32xf32> to vector<8x32xf32>
      %232 = vector.shape_cast %229 : vector<8x32xf32> to vector<8x1x32xf32>
      tpu.vector_store %arg12[%c0_85, %c14, %c0_86], %232 {strides = array<i32>} : memref<8x16x32xf32, #tpu.memory_space<vmem>>, vector<8x1x32xf32>,
      %233 = vector.extract_strided_slice %172 {offsets = [0, 480], sizes = [8, 32], strides = [1, 1]} : vector<8x512xf32> to vector<8x32xf32>
      %c0_87 = arith.constant 0 : index
      %c15 = arith.constant 15 : index
      %c0_88 = arith.constant 0 : index
      %234 = vector.load %arg12[%c0_87, %c15, %c0_88] : memref<8x16x32xf32, #tpu.memory_space<vmem>>, vector<8x1x32xf32>
      %235 = vector.shape_cast %234 : vector<8x1x32xf32> to vector<8x32xf32>
      %236 = vector.shape_cast %233 : vector<8x32xf32> to vector<8x1x32xf32>
      tpu.vector_store %arg12[%c0_87, %c15, %c0_88], %236 {strides = array<i32>} : memref<8x16x32xf32, #tpu.memory_space<vmem>>, vector<8x1x32xf32>,
    } else {
    }
    %c0 = arith.constant 0 : index
    %c0_1 = arith.constant 0 : index
    %c0_2 = arith.constant 0 : index
    %3 = vector.load %arg12[%c0, %c0_1, %c0_2] : memref<8x16x32xf32, #tpu.memory_space<vmem>>, vector<8x16x32xf32>
    %4 = vector.shape_cast %3 : vector<8x16x32xf32> to vector<128x32xf32>
    %c0_3 = arith.constant 0 : index
    %c0_4 = arith.constant 0 : index
    %5 = vector.load %arg3[%c0_3, %c0_4] : memref<32x128xf32, #tpu.memory_space<vmem>>, vector<32x128xf32>
    %cst = arith.constant dense<0.000000e+00> : vector<128x128xf32>
    %6 = tpu.matmul %4, %5, %cst {dimension_numbers = #tpu.dot_dimension_numbers<[1], [0], [0], [1], [0, 0, 1, 1], [], []>} : vector<128x32xf32>, vector<32x128xf32>, vector<128x128xf32> -> vector<128x128xf32>
    %7 = vector.shape_cast %6 : vector<128x128xf32> to vector<8x16x128xf32>
    %c0_5 = arith.constant 0 : index
    %c0_6 = arith.constant 0 : index
    %c0_7 = arith.constant 0 : index
    %8 = vector.load %arg4[%c0_5, %c0_6, %c0_7] : memref<8x32x128xf32, #tpu.memory_space<vmem>>, vector<8x32x128xf32>
    "tpu.trace_start"() <{level = 10 : i32, message = "mpd,mds->mps"}> : () -> ()
    %cst_8 = arith.constant dense<0.000000e+00> : vector<8x16x128xf32>
    %9 = tpu.matmul %3, %8, %cst_8 {dimension_numbers = #tpu.dot_dimension_numbers<[2], [1], [1], [2], [0, 0, 0, 1, 1, 2], [0], [0]>} : vector<8x16x32xf32>, vector<8x32x128xf32>, vector<8x16x128xf32> -> vector<8x16x128xf32>
    "tpu.trace_stop"() : () -> ()
    %10 = arith.addf %7, %9 : vector<8x16x128xf32>
    %cst_9 = arith.constant 0.353553385 : f32
    %11 = vector.broadcast %cst_9 : f32 to vector<8x16x128xf32>
    %12 = arith.mulf %10, %11 : vector<8x16x128xf32>
    %cst_10 = arith.constant 0.000000e+00 : f32
    %13 = vector.broadcast %cst_10 : f32 to vector<8x16x128xf32>
    %14 = arith.cmpf oge, %12, %13 : vector<8x16x128xf32>
    %cst_11 = arith.constant 0.00999999977 : f32
    %15 = vector.broadcast %cst_11 : f32 to vector<8x16x128xf32>
    %16 = arith.mulf %15, %12 : vector<8x16x128xf32>
    %17 = arith.select %14, %12, %16 : vector<8x16x128xi1>, vector<8x16x128xf32>
    %c0_12 = arith.constant 0 : index
    %c0_13 = arith.constant 0 : index
    %18 = vector.load %arg5[%c0_12, %c0_13] : memref<8x128xf32, #tpu.memory_space<vmem>>, vector<8x128xf32>
    %c0_14 = arith.constant 0 : index
    %c0_15 = arith.constant 0 : index
    %c0_16 = arith.constant 0 : index
    %19 = vector.load %arg6[%c0_14, %c0_15, %c0_16] : memref<4x128x8xf32, #tpu.memory_space<vmem>>, vector<4x128x8xf32>
    %20 = vector.shape_cast %19 : vector<4x128x8xf32> to vector<512x8xf32>
    %21 = vector.extract_strided_slice %17 {offsets = [0, 0, 0], sizes = [8, 1, 128], strides = [1, 1, 1]} : vector<8x16x128xf32> to vector<8x1x128xf32>
    %22 = vector.shape_cast %21 : vector<8x1x128xf32> to vector<8x128xf32>
    %23 = vector.extract_strided_slice %17 {offsets = [0, 1, 0], sizes = [8, 1, 128], strides = [1, 1, 1]} : vector<8x16x128xf32> to vector<8x1x128xf32>
    %24 = vector.shape_cast %23 : vector<8x1x128xf32> to vector<8x128xf32>
    %25 = vector.extract_strided_slice %17 {offsets = [0, 2, 0], sizes = [8, 1, 128], strides = [1, 1, 1]} : vector<8x16x128xf32> to vector<8x1x128xf32>
    %26 = vector.shape_cast %25 : vector<8x1x128xf32> to vector<8x128xf32>
    %27 = vector.extract_strided_slice %17 {offsets = [0, 3, 0], sizes = [8, 1, 128], strides = [1, 1, 1]} : vector<8x16x128xf32> to vector<8x1x128xf32>
    %28 = vector.shape_cast %27 : vector<8x1x128xf32> to vector<8x128xf32>
    %29 = arith.maximumf %22, %24 : vector<8x128xf32>
    %30 = arith.maximumf %29, %26 : vector<8x128xf32>
    %31 = arith.maximumf %30, %28 : vector<8x128xf32>
    %32 = arith.subf %22, %31 : vector<8x128xf32>
    %33 = math.exp %32 : vector<8x128xf32>
    %34 = arith.subf %24, %31 : vector<8x128xf32>
    %35 = math.exp %34 : vector<8x128xf32>
    %36 = arith.subf %26, %31 : vector<8x128xf32>
    %37 = math.exp %36 : vector<8x128xf32>
    %38 = arith.subf %28, %31 : vector<8x128xf32>
    %39 = math.exp %38 : vector<8x128xf32>
    %40 = arith.addf %33, %35 : vector<8x128xf32>
    %41 = arith.addf %40, %37 : vector<8x128xf32>
    %42 = arith.addf %41, %39 : vector<8x128xf32>
    %43 = tpu.reciprocal %42 : vector<8x128xf32> -> vector<8x128xf32>
    %44 = arith.mulf %18, %43 : vector<8x128xf32>
    %45 = arith.mulf %33, %44 : vector<8x128xf32>
    %46 = arith.mulf %35, %44 : vector<8x128xf32>
    %47 = arith.mulf %37, %44 : vector<8x128xf32>
    %48 = arith.mulf %39, %44 : vector<8x128xf32>
    %49 = tpu.concatenate %45, %46, %47, %48 in 1 : vector<8x128xf32>, vector<8x128xf32>, vector<8x128xf32>, vector<8x128xf32> -> vector<8x512xf32>
    %cst_17 = arith.constant dense<0.000000e+00> : vector<8x8xf32>
    %50 = tpu.matmul %49, %20, %cst_17 {dimension_numbers = #tpu.dot_dimension_numbers<[1], [0], [0], [1], [0, 0, 1, 1], [], []>} : vector<8x512xf32>, vector<512x8xf32>, vector<8x8xf32> -> vector<8x8xf32>
    %c0_18 = arith.constant 0 : index
    %c0_19 = arith.constant 0 : index
    %c0_20 = arith.constant 0 : index
    %51 = vector.load %arg11[%c0_18, %c0_19, %c0_20] : memref<4x8x8xf32, #tpu.memory_space<vmem>>, vector<1x8x8xf32>
    %52 = vector.shape_cast %51 : vector<1x8x8xf32> to vector<8x8xf32>
    %53 = arith.addf %52, %50 : vector<8x8xf32>
    %c0_21 = arith.constant 0 : index
    %c0_22 = arith.constant 0 : index
    %c0_23 = arith.constant 0 : index
    %54 = vector.load %arg11[%c0_21, %c0_22, %c0_23] : memref<4x8x8xf32, #tpu.memory_space<vmem>>, vector<1x8x8xf32>
    %55 = vector.shape_cast %54 : vector<1x8x8xf32> to vector<8x8xf32>
    %56 = vector.shape_cast %53 : vector<8x8xf32> to vector<1x8x8xf32>
    tpu.vector_store %arg11[%c0_21, %c0_22, %c0_23], %56 {strides = array<i32>} : memref<4x8x8xf32, #tpu.memory_space<vmem>>, vector<1x8x8xf32>,
    %57 = vector.extract_strided_slice %17 {offsets = [0, 4, 0], sizes = [8, 1, 128], strides = [1, 1, 1]} : vector<8x16x128xf32> to vector<8x1x128xf32>
    %58 = vector.shape_cast %57 : vector<8x1x128xf32> to vector<8x128xf32>
    %59 = vector.extract_strided_slice %17 {offsets = [0, 5, 0], sizes = [8, 1, 128], strides = [1, 1, 1]} : vector<8x16x128xf32> to vector<8x1x128xf32>
    %60 = vector.shape_cast %59 : vector<8x1x128xf32> to vector<8x128xf32>
    %61 = vector.extract_strided_slice %17 {offsets = [0, 6, 0], sizes = [8, 1, 128], strides = [1, 1, 1]} : vector<8x16x128xf32> to vector<8x1x128xf32>
    %62 = vector.shape_cast %61 : vector<8x1x128xf32> to vector<8x128xf32>
    %63 = vector.extract_strided_slice %17 {offsets = [0, 7, 0], sizes = [8, 1, 128], strides = [1, 1, 1]} : vector<8x16x128xf32> to vector<8x1x128xf32>
    %64 = vector.shape_cast %63 : vector<8x1x128xf32> to vector<8x128xf32>
    %65 = arith.maximumf %58, %60 : vector<8x128xf32>
    %66 = arith.maximumf %65, %62 : vector<8x128xf32>
    %67 = arith.maximumf %66, %64 : vector<8x128xf32>
    %68 = arith.subf %58, %67 : vector<8x128xf32>
    %69 = math.exp %68 : vector<8x128xf32>
    %70 = arith.subf %60, %67 : vector<8x128xf32>
    %71 = math.exp %70 : vector<8x128xf32>
    %72 = arith.subf %62, %67 : vector<8x128xf32>
    %73 = math.exp %72 : vector<8x128xf32>
    %74 = arith.subf %64, %67 : vector<8x128xf32>
    %75 = math.exp %74 : vector<8x128xf32>
    %76 = arith.addf %69, %71 : vector<8x128xf32>
    %77 = arith.addf %76, %73 : vector<8x128xf32>
    %78 = arith.addf %77, %75 : vector<8x128xf32>
    %79 = tpu.reciprocal %78 : vector<8x128xf32> -> vector<8x128xf32>
    %80 = arith.mulf %18, %79 : vector<8x128xf32>
    %81 = arith.mulf %69, %80 : vector<8x128xf32>
    %82 = arith.mulf %71, %80 : vector<8x128xf32>
    %83 = arith.mulf %73, %80 : vector<8x128xf32>
    %84 = arith.mulf %75, %80 : vector<8x128xf32>
    %85 = tpu.concatenate %81, %82, %83, %84 in 1 : vector<8x128xf32>, vector<8x128xf32>, vector<8x128xf32>, vector<8x128xf32> -> vector<8x512xf32>
    %cst_24 = arith.constant dense<0.000000e+00> : vector<8x8xf32>
    %86 = tpu.matmul %85, %20, %cst_24 {dimension_numbers = #tpu.dot_dimension_numbers<[1], [0], [0], [1], [0, 0, 1, 1], [], []>} : vector<8x512xf32>, vector<512x8xf32>, vector<8x8xf32> -> vector<8x8xf32>
    %c1 = arith.constant 1 : index
    %c0_25 = arith.constant 0 : index
    %c0_26 = arith.constant 0 : index
    %87 = vector.load %arg11[%c1, %c0_25, %c0_26] : memref<4x8x8xf32, #tpu.memory_space<vmem>>, vector<1x8x8xf32>
    %88 = vector.shape_cast %87 : vector<1x8x8xf32> to vector<8x8xf32>
    %89 = arith.addf %88, %86 : vector<8x8xf32>
    %c1_27 = arith.constant 1 : index
    %c0_28 = arith.constant 0 : index
    %c0_29 = arith.constant 0 : index
    %90 = vector.load %arg11[%c1_27, %c0_28, %c0_29] : memref<4x8x8xf32, #tpu.memory_space<vmem>>, vector<1x8x8xf32>
    %91 = vector.shape_cast %90 : vector<1x8x8xf32> to vector<8x8xf32>
    %92 = vector.shape_cast %89 : vector<8x8xf32> to vector<1x8x8xf32>
    tpu.vector_store %arg11[%c1_27, %c0_28, %c0_29], %92 {strides = array<i32>} : memref<4x8x8xf32, #tpu.memory_space<vmem>>, vector<1x8x8xf32>,
    %93 = vector.extract_strided_slice %17 {offsets = [0, 8, 0], sizes = [8, 1, 128], strides = [1, 1, 1]} : vector<8x16x128xf32> to vector<8x1x128xf32>
    %94 = vector.shape_cast %93 : vector<8x1x128xf32> to vector<8x128xf32>
    %95 = vector.extract_strided_slice %17 {offsets = [0, 9, 0], sizes = [8, 1, 128], strides = [1, 1, 1]} : vector<8x16x128xf32> to vector<8x1x128xf32>
    %96 = vector.shape_cast %95 : vector<8x1x128xf32> to vector<8x128xf32>
    %97 = vector.extract_strided_slice %17 {offsets = [0, 10, 0], sizes = [8, 1, 128], strides = [1, 1, 1]} : vector<8x16x128xf32> to vector<8x1x128xf32>
    %98 = vector.shape_cast %97 : vector<8x1x128xf32> to vector<8x128xf32>
    %99 = vector.extract_strided_slice %17 {offsets = [0, 11, 0], sizes = [8, 1, 128], strides = [1, 1, 1]} : vector<8x16x128xf32> to vector<8x1x128xf32>
    %100 = vector.shape_cast %99 : vector<8x1x128xf32> to vector<8x128xf32>
    %101 = arith.maximumf %94, %96 : vector<8x128xf32>
    %102 = arith.maximumf %101, %98 : vector<8x128xf32>
    %103 = arith.maximumf %102, %100 : vector<8x128xf32>
    %104 = arith.subf %94, %103 : vector<8x128xf32>
    %105 = math.exp %104 : vector<8x128xf32>
    %106 = arith.subf %96, %103 : vector<8x128xf32>
    %107 = math.exp %106 : vector<8x128xf32>
    %108 = arith.subf %98, %103 : vector<8x128xf32>
    %109 = math.exp %108 : vector<8x128xf32>
    %110 = arith.subf %100, %103 : vector<8x128xf32>
    %111 = math.exp %110 : vector<8x128xf32>
    %112 = arith.addf %105, %107 : vector<8x128xf32>
    %113 = arith.addf %112, %109 : vector<8x128xf32>
    %114 = arith.addf %113, %111 : vector<8x128xf32>
    %115 = tpu.reciprocal %114 : vector<8x128xf32> -> vector<8x128xf32>
    %116 = arith.mulf %18, %115 : vector<8x128xf32>
    %117 = arith.mulf %105, %116 : vector<8x128xf32>
    %118 = arith.mulf %107, %116 : vector<8x128xf32>
    %119 = arith.mulf %109, %116 : vector<8x128xf32>
    %120 = arith.mulf %111, %116 : vector<8x128xf32>
    %121 = tpu.concatenate %117, %118, %119, %120 in 1 : vector<8x128xf32>, vector<8x128xf32>, vector<8x128xf32>, vector<8x128xf32> -> vector<8x512xf32>
    %cst_30 = arith.constant dense<0.000000e+00> : vector<8x8xf32>
    %122 = tpu.matmul %121, %20, %cst_30 {dimension_numbers = #tpu.dot_dimension_numbers<[1], [0], [0], [1], [0, 0, 1, 1], [], []>} : vector<8x512xf32>, vector<512x8xf32>, vector<8x8xf32> -> vector<8x8xf32>
    %c2 = arith.constant 2 : index
    %c0_31 = arith.constant 0 : index
    %c0_32 = arith.constant 0 : index
    %123 = vector.load %arg11[%c2, %c0_31, %c0_32] : memref<4x8x8xf32, #tpu.memory_space<vmem>>, vector<1x8x8xf32>
    %124 = vector.shape_cast %123 : vector<1x8x8xf32> to vector<8x8xf32>
    %125 = arith.addf %124, %122 : vector<8x8xf32>
    %c2_33 = arith.constant 2 : index
    %c0_34 = arith.constant 0 : index
    %c0_35 = arith.constant 0 : index
    %126 = vector.load %arg11[%c2_33, %c0_34, %c0_35] : memref<4x8x8xf32, #tpu.memory_space<vmem>>, vector<1x8x8xf32>
    %127 = vector.shape_cast %126 : vector<1x8x8xf32> to vector<8x8xf32>
    %128 = vector.shape_cast %125 : vector<8x8xf32> to vector<1x8x8xf32>
    tpu.vector_store %arg11[%c2_33, %c0_34, %c0_35], %128 {strides = array<i32>} : memref<4x8x8xf32, #tpu.memory_space<vmem>>, vector<1x8x8xf32>,
    %129 = vector.extract_strided_slice %17 {offsets = [0, 12, 0], sizes = [8, 1, 128], strides = [1, 1, 1]} : vector<8x16x128xf32> to vector<8x1x128xf32>
    %130 = vector.shape_cast %129 : vector<8x1x128xf32> to vector<8x128xf32>
    %131 = vector.extract_strided_slice %17 {offsets = [0, 13, 0], sizes = [8, 1, 128], strides = [1, 1, 1]} : vector<8x16x128xf32> to vector<8x1x128xf32>
    %132 = vector.shape_cast %131 : vector<8x1x128xf32> to vector<8x128xf32>
    %133 = vector.extract_strided_slice %17 {offsets = [0, 14, 0], sizes = [8, 1, 128], strides = [1, 1, 1]} : vector<8x16x128xf32> to vector<8x1x128xf32>
    %134 = vector.shape_cast %133 : vector<8x1x128xf32> to vector<8x128xf32>
    %135 = vector.extract_strided_slice %17 {offsets = [0, 15, 0], sizes = [8, 1, 128], strides = [1, 1, 1]} : vector<8x16x128xf32> to vector<8x1x128xf32>
    %136 = vector.shape_cast %135 : vector<8x1x128xf32> to vector<8x128xf32>
    %137 = arith.maximumf %130, %132 : vector<8x128xf32>
    %138 = arith.maximumf %137, %134 : vector<8x128xf32>
    %139 = arith.maximumf %138, %136 : vector<8x128xf32>
    %140 = arith.subf %130, %139 : vector<8x128xf32>
    %141 = math.exp %140 : vector<8x128xf32>
    %142 = arith.subf %132, %139 : vector<8x128xf32>
    %143 = math.exp %142 : vector<8x128xf32>
    %144 = arith.subf %134, %139 : vector<8x128xf32>
    %145 = math.exp %144 : vector<8x128xf32>
    %146 = arith.subf %136, %139 : vector<8x128xf32>
    %147 = math.exp %146 : vector<8x128xf32>
    %148 = arith.addf %141, %143 : vector<8x128xf32>
    %149 = arith.addf %148, %145 : vector<8x128xf32>
    %150 = arith.addf %149, %147 : vector<8x128xf32>
    %151 = tpu.reciprocal %150 : vector<8x128xf32> -> vector<8x128xf32>
    %152 = arith.mulf %18, %151 : vector<8x128xf32>
    %153 = arith.mulf %141, %152 : vector<8x128xf32>
    %154 = arith.mulf %143, %152 : vector<8x128xf32>
    %155 = arith.mulf %145, %152 : vector<8x128xf32>
    %156 = arith.mulf %147, %152 : vector<8x128xf32>
    %157 = tpu.concatenate %153, %154, %155, %156 in 1 : vector<8x128xf32>, vector<8x128xf32>, vector<8x128xf32>, vector<8x128xf32> -> vector<8x512xf32>
    %cst_36 = arith.constant dense<0.000000e+00> : vector<8x8xf32>
    %158 = tpu.matmul %157, %20, %cst_36 {dimension_numbers = #tpu.dot_dimension_numbers<[1], [0], [0], [1], [0, 0, 1, 1], [], []>} : vector<8x512xf32>, vector<512x8xf32>, vector<8x8xf32> -> vector<8x8xf32>
    %c3 = arith.constant 3 : index
    %c0_37 = arith.constant 0 : index
    %c0_38 = arith.constant 0 : index
    %159 = vector.load %arg11[%c3, %c0_37, %c0_38] : memref<4x8x8xf32, #tpu.memory_space<vmem>>, vector<1x8x8xf32>
    %160 = vector.shape_cast %159 : vector<1x8x8xf32> to vector<8x8xf32>
    %161 = arith.addf %160, %158 : vector<8x8xf32>
    %c3_39 = arith.constant 3 : index
    %c0_40 = arith.constant 0 : index
    %c0_41 = arith.constant 0 : index
    %162 = vector.load %arg11[%c3_39, %c0_40, %c0_41] : memref<4x8x8xf32, #tpu.memory_space<vmem>>, vector<1x8x8xf32>
    %163 = vector.shape_cast %162 : vector<1x8x8xf32> to vector<8x8xf32>
    %164 = vector.shape_cast %161 : vector<8x8xf32> to vector<1x8x8xf32>
    tpu.vector_store %arg11[%c3_39, %c0_40, %c0_41], %164 {strides = array<i32>} : memref<4x8x8xf32, #tpu.memory_space<vmem>>, vector<1x8x8xf32>,
    %c0_i32_42 = arith.constant 0 : i32
    %165 = arith.cmpi eq, %arg1, %c0_i32_42 : i32
    %166 = arith.extui %165 : i1 to i32
    %c0_i32_43 = arith.constant 0 : i32
    %167 = arith.cmpi ne, %166, %c0_i32_43 : i32
    scf.if %167 {
      %c0_44 = arith.constant 0 : index
      %c0_45 = arith.constant 0 : index
      %c0_46 = arith.constant 0 : index
      %168 = vector.load %arg11[%c0_44, %c0_45, %c0_46] : memref<4x8x8xf32, #tpu.memory_space<vmem>>, vector<1x8x8xf32>
      %169 = vector.shape_cast %168 : vector<1x8x8xf32> to vector<8x8xf32>
      %c1_47 = arith.constant 1 : index
      %c0_48 = arith.constant 0 : index
      %c0_49 = arith.constant 0 : index
      %170 = vector.load %arg11[%c1_47, %c0_48, %c0_49] : memref<4x8x8xf32, #tpu.memory_space<vmem>>, vector<1x8x8xf32>
      %171 = vector.shape_cast %170 : vector<1x8x8xf32> to vector<8x8xf32>
      %c2_50 = arith.constant 2 : index
      %c0_51 = arith.constant 0 : index
      %c0_52 = arith.constant 0 : index
      %172 = vector.load %arg11[%c2_50, %c0_51, %c0_52] : memref<4x8x8xf32, #tpu.memory_space<vmem>>, vector<1x8x8xf32>
      %173 = vector.shape_cast %172 : vector<1x8x8xf32> to vector<8x8xf32>
      %c3_53 = arith.constant 3 : index
      %c0_54 = arith.constant 0 : index
      %c0_55 = arith.constant 0 : index
      %174 = vector.load %arg11[%c3_53, %c0_54, %c0_55] : memref<4x8x8xf32, #tpu.memory_space<vmem>>, vector<1x8x8xf32>
      %175 = vector.shape_cast %174 : vector<1x8x8xf32> to vector<8x8xf32>
      %176 = tpu.concatenate %169, %171, %173, %175 in 1 : vector<8x8xf32>, vector<8x8xf32>, vector<8x8xf32>, vector<8x8xf32> -> vector<8x32xf32>
      %c0_56 = arith.constant 0 : index
      %c0_57 = arith.constant 0 : index
      %177 = vector.load %arg2[%c0_56, %c0_57] : memref<8x32xf32, #tpu.memory_space<vmem>>, vector<8x32xf32>
      %178 = arith.addf %177, %176 : vector<8x32xf32>
      %cst_58 = arith.constant dense<0.000000e+00> : vector<8xf32>
      %179 = vector.multi_reduction <add>, %178, %cst_58 [1] : vector<8x32xf32> to vector<8xf32>
      %180 = vector.shape_cast %179 : vector<8xf32> to vector<8x1xf32>
      %cst_59 = arith.constant 3.200000e+01 : f32
      %181 = vector.broadcast %cst_59 : f32 to vector<8x1xf32>
      %182 = arith.divf %180, %181 : vector<8x1xf32>
      %183 = vector.broadcast %182 : vector<8x1xf32> to vector<8x32xf32>
      %184 = arith.subf %178, %183 : vector<8x32xf32>
      %185 = vector.broadcast %182 : vector<8x1xf32> to vector<8x32xf32>
      %186 = arith.subf %178, %185 : vector<8x32xf32>
      %187 = arith.mulf %184, %186 : vector<8x32xf32>
      %cst_60 = arith.constant dense<0.000000e+00> : vector<8xf32>
      %188 = vector.multi_reduction <add>, %187, %cst_60 [1] : vector<8x32xf32> to vector<8xf32>
      %189 = vector.shape_cast %188 : vector<8xf32> to vector<8x1xf32>
      %cst_61 = arith.constant 3.200000e+01 : f32
      %190 = vector.broadcast %cst_61 : f32 to vector<8x1xf32>
      %191 = arith.divf %189, %190 : vector<8x1xf32>
      %192 = vector.broadcast %182 : vector<8x1xf32> to vector<8x32xf32>
      %193 = arith.subf %178, %192 : vector<8x32xf32>
      %cst_62 = arith.constant 9.99999997E-7 : f32
      %194 = vector.broadcast %cst_62 : f32 to vector<8x1xf32>
      %195 = arith.addf %191, %194 : vector<8x1xf32>
      %196 = math.rsqrt %195 : vector<8x1xf32>
      %197 = vector.broadcast %196 : vector<8x1xf32> to vector<8x32xf32>
      %198 = arith.mulf %193, %197 : vector<8x32xf32>
      %c0_63 = arith.constant 0 : index
      %c0_64 = arith.constant 0 : index
      %199 = vector.load %arg8[%c0_63, %c0_64] : memref<1x32xf32, #tpu.memory_space<vmem>>, vector<1x32xf32>
      %200 = vector.broadcast %199 : vector<1x32xf32> to vector<8x32xf32>
      %201 = arith.mulf %198, %200 : vector<8x32xf32>
      %c0_65 = arith.constant 0 : index
      %c0_66 = arith.constant 0 : index
      %202 = vector.load %arg9[%c0_65, %c0_66] : memref<1x32xf32, #tpu.memory_space<vmem>>, vector<1x32xf32>
      %203 = vector.broadcast %202 : vector<1x32xf32> to vector<8x32xf32>
      %204 = arith.addf %201, %203 : vector<8x32xf32>
      %c0_67 = arith.constant 0 : index
      %c0_68 = arith.constant 0 : index
      %205 = vector.load %arg10[%c0_67, %c0_68] : memref<8x32xf32, #tpu.memory_space<vmem>>, vector<8x32xf32>
      tpu.vector_store %arg10[%c0_67, %c0_68], %204 {strides = array<i32>} : memref<8x32xf32, #tpu.memory_space<vmem>>, vector<8x32xf32>,
    } else {
    }
    return
  }
  func.func @transform_0(%arg0: i32, %arg1: i32) -> (i32, i32) {
    %c0_i32 = arith.constant 0 : i32
    %c0_i32_0 = arith.constant 0 : i32
    return %arg0, %c0_i32 : i32, i32
  }
  func.func @transform_1(%arg0: i32, %arg1: i32) -> (i32, i32) {
    %c0_i32 = arith.constant 0 : i32
    %c0_i32_0 = arith.constant 0 : i32
    return %c0_i32, %arg1 : i32, i32
  }
  func.func @transform_2(%arg0: i32, %arg1: i32) -> (i32, i32, i32) {
    %c0_i32 = arith.constant 0 : i32
    %c0_i32_0 = arith.constant 0 : i32
    return %arg0, %c0_i32, %arg1 : i32, i32, i32
  }
  func.func @transform_3(%arg0: i32, %arg1: i32) -> (i32, i32) {
    %c0_i32 = arith.constant 0 : i32
    return %arg0, %arg1 : i32, i32
  }
  func.func @transform_4(%arg0: i32, %arg1: i32) -> (i32, i32, i32) {
    %c0_i32 = arith.constant 0 : i32
    %c0_i32_0 = arith.constant 0 : i32
    %c0_i32_1 = arith.constant 0 : i32
    return %c0_i32, %arg1, %c0_i32_0 : i32, i32, i32
  }
  func.func @transform_5(%arg0: i32, %arg1: i32) -> (i32, i32) {
    %c0_i32 = arith.constant 0 : i32
    %c0_i32_0 = arith.constant 0 : i32
    %c0_i32_1 = arith.constant 0 : i32
    return %c0_i32, %c0_i32_0 : i32, i32
  }
  func.func @transform_6(%arg0: i32, %arg1: i32) -> (i32, i32) {
    %c0_i32 = arith.constant 0 : i32
    %c0_i32_0 = arith.constant 0 : i32
    %c0_i32_1 = arith.constant 0 : i32
    return %c0_i32, %c0_i32_0 : i32, i32
  }
  func.func @transform_7(%arg0: i32, %arg1: i32) -> (i32, i32) {
    %c0_i32 = arith.constant 0 : i32
    %c0_i32_0 = arith.constant 0 : i32
    %c0_i32_1 = arith.constant 0 : i32
    return %c0_i32, %c0_i32_0 : i32, i32
  }
  func.func @transform_8(%arg0: i32, %arg1: i32) -> (i32, i32) {
    %c0_i32 = arith.constant 0 : i32
    %c0_i32_0 = arith.constant 0 : i32
    return %arg0, %c0_i32 : i32, i32
  }
}

</mosaic_0001>

<llo_original>
// kernel: tpu_custom_call.1
$region0: #{tpu_custom_call.1}
  #allocation0 [shape = 'u32[]', space=smem, size = 0x4, offset = 0x4, fixed_abs, tag = 'smem constant byte address 0x4 - core index']
  #allocation1 [shape = 'u32[72,128]{1,0:T(1,128)}', space=vmem, size = 0x9000, scoped, tag = 'internal scratch']
  #allocation2 [shape = 'f32[4,8,8]{2,1,0:T(8,128)}', space=vmem, size = 0x4000, scoped, tag = 'scratch operand']
  #allocation3 [shape = 'f32[8,16,32]{2,1,0:T(8,128)}', space=vmem, size = 0x10000, scoped, tag = 'scratch operand']
  %s0 = inlined_call_operand.vmem [shape: f32[8,32], index: 0, kind: input, shape index: {}]
  %s1 = inlined_call_operand.vmem [shape: f32[32,128], index: 1, kind: input, shape index: {}]
  %s2 = inlined_call_operand.vmem [shape: f32[8,32,128], index: 2, kind: input, shape index: {}]
  %s3 = inlined_call_operand.vmem [shape: f32[8,128], index: 3, kind: input, shape index: {}]
  %s4 = inlined_call_operand.vmem [shape: f32[4,128,8], index: 4, kind: input, shape index: {}]
  %s5 = inlined_call_operand.vmem [shape: f32[32,512], index: 5, kind: input, shape index: {}]
  %s6 = inlined_call_operand.vmem [shape: f32[1,32], index: 6, kind: input, shape index: {}]
  %s7 = inlined_call_operand.vmem [shape: f32[1,32], index: 7, kind: input, shape index: {}]
  %s8 = inlined_call_operand.hbm [shape: f32[8,32], index: 8, kind: output, shape index: {}]
  %s9 = sld [smem:[#allocation0]]
  $region50: #{tpu_custom_call.1} parent=0
    _
  %s11 = ssub.s32 1, %s9
  %s12 = scalar_select 0, %s11, %s9
  $region1: #{tpu_custom_call.1} parent=0
    #allocation4 [shape = 'u8[4096]{0}', space=vmem, size = 0x1000, scoped, tag = 'output window, operand 0, single buffered']
    #allocation5 [shape = 's32[1]{0}', space=sflag, size = 0x4, scoped, tag = 'scoped memory for tpu_custom_call.1']
    %13 = vsyncpa [#allocation5], 0
    // Predicated region
    $region2: #{tpu_custom_call.1} parent=1 // pred_check
      _
    $region3: #{tpu_custom_call.1} parent=1 // pred_check_branch
      %15 = sbr.rel (0) target = $region5
    $region4: #{tpu_custom_call.1} parent=1 // pred_region
      _
    $region5: #{tpu_custom_call.1} parent=1 // pred_fallthru
      _
    // Predicated region
    $region6: #{tpu_custom_call.1} parent=1 // pred_check
      _
    $region7: #{tpu_custom_call.1} parent=1 // pred_check_branch
      %17 = sbr.rel (0) target = $region9
    $region8: #{tpu_custom_call.1} parent=1 // pred_region
      _
    $region9: #{tpu_custom_call.1} parent=1 // pred_fallthru
      _
    // Predicated region
    $region10: #{tpu_custom_call.1} parent=1 // pred_check
      _
    $region11: #{tpu_custom_call.1} parent=1 // pred_check_branch
      %19 = sbr.rel (0) target = $region13
    $region12: #{tpu_custom_call.1} parent=1 // pred_region
      _
    $region13: #{tpu_custom_call.1} parent=1 // pred_fallthru
      _
    // Predicated region
    $region14: #{tpu_custom_call.1} parent=1 // pred_check
      _
    $region15: #{tpu_custom_call.1} parent=1 // pred_check_branch
      %21 = sbr.rel (0) target = $region17
    $region16: #{tpu_custom_call.1} parent=1 // pred_region
      _
    $region17: #{tpu_custom_call.1} parent=1 // pred_fallthru
      _
    // Predicated region
    $region18: #{tpu_custom_call.1} parent=1 // pred_check
      _
    $region19: #{tpu_custom_call.1} parent=1 // pred_check_branch
      %23 = sbr.rel (0) target = $region21
    $region20: #{tpu_custom_call.1} parent=1 // pred_region
      _
    $region21: #{tpu_custom_call.1} parent=1 // pred_fallthru
      _
    // Predicated region
    $region22: #{tpu_custom_call.1} parent=1 // pred_check
      _
    $region23: #{tpu_custom_call.1} parent=1 // pred_check_branch
      %25 = sbr.rel (0) target = $region25
    $region24: #{tpu_custom_call.1} parent=1 // pred_region
      _
    $region25: #{tpu_custom_call.1} parent=1 // pred_fallthru
      _
    // Predicated region
    $region26: #{tpu_custom_call.1} parent=1 // pred_check
      _
    $region27: #{tpu_custom_call.1} parent=1 // pred_check_branch
      %27 = sbr.rel (0) target = $region29
    $region28: #{tpu_custom_call.1} parent=1 // pred_region
      _
    $region29: #{tpu_custom_call.1} parent=1 // pred_fallthru
      _
    // Predicated region
    $region30: #{tpu_custom_call.1} parent=1 // pred_check
      _
    $region31: #{tpu_custom_call.1} parent=1 // pred_check_branch
      %29 = sbr.rel (0) target = $region33
    $region32: #{tpu_custom_call.1} parent=1 // pred_region
      _
    $region33: #{tpu_custom_call.1} parent=1 // pred_fallthru
      _
    %p30 = scmp.eq.s32.totalorder 0, 0
    // Predicated region
    $region34: #{tpu_custom_call.1} parent=1 // pred_check
      %p31 = pneg %p30
    $region35: #{tpu_custom_call.1} parent=1 // pred_check_branch
      %33 = sbr.rel (%p31) target = $region37
    $region36: #{tpu_custom_call.1} parent=1 // pred_region
      %vm34 = vcmask 64512
      %35 = vst.msk [vmem:[#allocation2] sm:$0xff] %vm34, 0.0
      %36 = vst.msk [vmem:[#allocation2 + $0x8] sm:$0xff] %vm34, 0.0
      %37 = vst.msk [vmem:[#allocation2 + $0x10] sm:$0xff] %vm34, 0.0
      %38 = vst.msk [vmem:[#allocation2 + $0x18] sm:$0xff] %vm34, 0.0
      %v39 = vld [vmem:[%s0] sm:$0xff]
      %v40 = vld [vmem:[%s5] sm:$0xff]
      %v41 = vld [vmem:[%s5 + $0x8] sm:$0xff]
      %v42 = vld [vmem:[%s5 + $0x10] sm:$0xff]
      %v43 = vld [vmem:[%s5 + $0x18] sm:$0xff]
      %v44 = vld [vmem:[%s5 + $0x20] sm:$0xff]
      %v45 = vld [vmem:[%s5 + $0x28] sm:$0xff]
      %v46 = vld [vmem:[%s5 + $0x30] sm:$0xff]
      %v47 = vld [vmem:[%s5 + $0x38] sm:$0xff]
      %v48 = vld [vmem:[%s5 + $0x40] sm:$0xff]
      %v49 = vld [vmem:[%s5 + $0x48] sm:$0xff]
      %v50 = vld [vmem:[%s5 + $0x50] sm:$0xff]
      %v51 = vld [vmem:[%s5 + $0x58] sm:$0xff]
      %v52 = vld [vmem:[%s5 + $0x60] sm:$0xff]
      %v53 = vld [vmem:[%s5 + $0x68] sm:$0xff]
      %v54 = vld [vmem:[%s5 + $0x70] sm:$0xff]
      %v55 = vld [vmem:[%s5 + $0x78] sm:$0xff]
      %vm56 = vcmask 261120
      %v58 = vsel %vm56, %v39, 0
      %60 = vmatpush.msra.mxu0 0.0
      %61 = vmatpush.msra.mxu0 0.0
      %62 = vmatpush.msra.mxu0 0.0
      %63 = vmatpush.msra.mxu0 0.0
      %64 = vmatpush.msra.mxu0 0.0
      %65 = vmatpush.msra.mxu0 0.0
      %66 = vmatpush.msra.mxu0 0.0
      %67 = vmatpush.msra.mxu0 0.0
      %68 = vmatpush.msra.mxu0 0.0
      %69 = vmatpush.msra.mxu0 0.0
      %70 = vmatpush.msra.mxu0 0.0
      %71 = vmatpush.msra.mxu0 0.0
      %72 = vmatpush.msra.mxu0 %v52
      %73 = vmatpush.msra.mxu0 %v48
      %74 = vmatpush.msra.mxu0 %v44
      %75 = vmatpush.msra.mxu0 %v40
      %76 = vmatmul.f32.gmra.mxu0 %v58
      %v77 = vpop.f32.mrf.mxu0
      %v78 = vadd.f32 0.0, %v77
      %79 = vdwg.mxu0
      %80 = vmatpush.msra.mxu0 0.0
      %81 = vmatpush.msra.mxu0 0.0
      %82 = vmatpush.msra.mxu0 0.0
      %83 = vmatpush.msra.mxu0 0.0
      %84 = vmatpush.msra.mxu0 0.0
      %85 = vmatpush.msra.mxu0 0.0
      %86 = vmatpush.msra.mxu0 0.0
      %87 = vmatpush.msra.mxu0 0.0
      %88 = vmatpush.msra.mxu0 0.0
      %89 = vmatpush.msra.mxu0 0.0
      %90 = vmatpush.msra.mxu0 0.0
      %91 = vmatpush.msra.mxu0 0.0
      %92 = vmatpush.msra.mxu0 %v53
      %93 = vmatpush.msra.mxu0 %v49
      %94 = vmatpush.msra.mxu0 %v45
      %95 = vmatpush.msra.mxu0 %v41
      %96 = vmatmul.f32.gmra.mxu0 %v58
      %v97 = vpop.f32.mrf.mxu0
      %v98 = vadd.f32 0.0, %v97
      %99 = vdwg.mxu0
      %100 = vmatpush.msra.mxu0 0.0
      %101 = vmatpush.msra.mxu0 0.0
      %102 = vmatpush.msra.mxu0 0.0
      %103 = vmatpush.msra.mxu0 0.0
      %104 = vmatpush.msra.mxu0 0.0
      %105 = vmatpush.msra.mxu0 0.0
      %106 = vmatpush.msra.mxu0 0.0
      %107 = vmatpush.msra.mxu0 0.0
      %108 = vmatpush.msra.mxu0 0.0
      %109 = vmatpush.msra.mxu0 0.0
      %110 = vmatpush.msra.mxu0 0.0
      %111 = vmatpush.msra.mxu0 0.0
      %112 = vmatpush.msra.mxu0 %v54
      %113 = vmatpush.msra.mxu0 %v50
      %114 = vmatpush.msra.mxu0 %v46
      %115 = vmatpush.msra.mxu0 %v42
      %116 = vmatmul.f32.gmra.mxu0 %v58
      %v117 = vpop.f32.mrf.mxu0
      %v118 = vadd.f32 0.0, %v117
      %119 = vdwg.mxu0
      %120 = vmatpush.msra.mxu0 0.0
      %121 = vmatpush.msra.mxu0 0.0
      %122 = vmatpush.msra.mxu0 0.0
      %123 = vmatpush.msra.mxu0 0.0
      %124 = vmatpush.msra.mxu0 0.0
      %125 = vmatpush.msra.mxu0 0.0
      %126 = vmatpush.msra.mxu0 0.0
      %127 = vmatpush.msra.mxu0 0.0
      %128 = vmatpush.msra.mxu0 0.0
      %129 = vmatpush.msra.mxu0 0.0
      %130 = vmatpush.msra.mxu0 0.0
      %131 = vmatpush.msra.mxu0 0.0
      %132 = vmatpush.msra.mxu0 %v55
      %133 = vmatpush.msra.mxu0 %v51
      %134 = vmatpush.msra.mxu0 %v47
      %135 = vmatpush.msra.mxu0 %v43
      %136 = vmatmul.f32.gmra.mxu0 %v58
      %v137 = vpop.f32.mrf.mxu0
      %v138 = vadd.f32 0.0, %v137
      %139 = vdwg.mxu0
      %v141 = vrot.slane %v78, 1
      %v142 = vrot.slane %v78, 2
      %v143 = vrot.slane %v78, 3
      %v144 = vrot.slane %v78, 4
      %v145 = vrot.slane %v78, 5
      %v146 = vrot.slane %v78, 6
      %v147 = vrot.slane %v78, 7
      %vm155 = vcmask 253952
      %156 = vst.msk [vmem:[#allocation3] sm:$0x1] %vm155, %v78
      %157 = vst.msk [vmem:[#allocation3 + $0x10] sm:$0x1] %vm155, %v141
      %158 = vst.msk [vmem:[#allocation3 + $0x20] sm:$0x1] %vm155, %v142
      %159 = vst.msk [vmem:[#allocation3 + $0x30] sm:$0x1] %vm155, %v143
      %160 = vst.msk [vmem:[#allocation3 + $0x40] sm:$0x1] %vm155, %v144
      %161 = vst.msk [vmem:[#allocation3 + $0x50] sm:$0x1] %vm155, %v145
      %162 = vst.msk [vmem:[#allocation3 + $0x60] sm:$0x1] %vm155, %v146
      %163 = vst.msk [vmem:[#allocation3 + $0x70] sm:$0x1] %vm155, %v147
      %v164 = vperm.slane %v78, 0
      %v165 = vperm.slane %v141, 0
      %v166 = vperm.slane %v142, 0
      %v167 = vperm.slane %v143, 0
      %v168 = vperm.slane %v144, 0
      %v169 = vperm.slane %v145, 0
      %v170 = vperm.slane %v146, 0
      %v171 = vperm.slane %v147, 0
      %172 = vrot.lane.b32.xlu0 %v164, 96
      %v173 = vpop.permute.xlu0 %172
      %174 = vrot.lane.b32.xlu0 %v165, 96
      %v175 = vpop.permute.xlu0 %174
      %176 = vrot.lane.b32.xlu0 %v166, 96
      %v177 = vpop.permute.xlu0 %176
      %178 = vrot.lane.b32.xlu0 %v167, 96
      %v179 = vpop.permute.xlu0 %178
      %180 = vrot.lane.b32.xlu0 %v168, 96
      %v181 = vpop.permute.xlu0 %180
      %182 = vrot.lane.b32.xlu0 %v169, 96
      %v183 = vpop.permute.xlu0 %182
      %184 = vrot.lane.b32.xlu0 %v170, 96
      %v185 = vpop.permute.xlu0 %184
      %186 = vrot.lane.b32.xlu0 %v171, 96
      %v187 = vpop.permute.xlu0 %186
      %196 = vst.msk [vmem:[#allocation3 + $0x1] sm:$0x1] %vm155, %v173
      %197 = vst.msk [vmem:[#allocation3 + $0x11] sm:$0x1] %vm155, %v175
      %198 = vst.msk [vmem:[#allocation3 + $0x21] sm:$0x1] %vm155, %v177
      %199 = vst.msk [vmem:[#allocation3 + $0x31] sm:$0x1] %vm155, %v179
      %200 = vst.msk [vmem:[#allocation3 + $0x41] sm:$0x1] %vm155, %v181
      %201 = vst.msk [vmem:[#allocation3 + $0x51] sm:$0x1] %vm155, %v183
      %202 = vst.msk [vmem:[#allocation3 + $0x61] sm:$0x1] %vm155, %v185
      %203 = vst.msk [vmem:[#allocation3 + $0x71] sm:$0x1] %vm155, %v187
      %204 = vrot.lane.b32.xlu0 %v164, 64
      %v205 = vpop.permute.xlu0 %204
      %206 = vrot.lane.b32.xlu0 %v165, 64
      %v207 = vpop.permute.xlu0 %206
      %208 = vrot.lane.b32.xlu0 %v166, 64
      %v209 = vpop.permute.xlu0 %208
      %210 = vrot.lane.b32.xlu0 %v167, 64
      %v211 = vpop.permute.xlu0 %210
      %212 = vrot.lane.b32.xlu0 %v168, 64
      %v213 = vpop.permute.xlu0 %212
      %214 = vrot.lane.b32.xlu0 %v169, 64
      %v215 = vpop.permute.xlu0 %214
      %216 = vrot.lane.b32.xlu0 %v170, 64
      %v217 = vpop.permute.xlu0 %216
      %218 = vrot.lane.b32.xlu0 %v171, 64
      %v219 = vpop.permute.xlu0 %218
      %228 = vst.msk [vmem:[#allocation3 + $0x2] sm:$0x1] %vm155, %v205
      %229 = vst.msk [vmem:[#allocation3 + $0x12] sm:$0x1] %vm155, %v207
      %230 = vst.msk [vmem:[#allocation3 + $0x22] sm:$0x1] %vm155, %v209
      %231 = vst.msk [vmem:[#allocation3 + $0x32] sm:$0x1] %vm155, %v211
      %232 = vst.msk [vmem:[#allocation3 + $0x42] sm:$0x1] %vm155, %v213
      %233 = vst.msk [vmem:[#allocation3 + $0x52] sm:$0x1] %vm155, %v215
      %234 = vst.msk [vmem:[#allocation3 + $0x62] sm:$0x1] %vm155, %v217
      %235 = vst.msk [vmem:[#allocation3 + $0x72] sm:$0x1] %vm155, %v219
      %236 = vrot.lane.b32.xlu0 %v164, 32
      %v237 = vpop.permute.xlu0 %236
      %238 = vrot.lane.b32.xlu0 %v165, 32
      %v239 = vpop.permute.xlu0 %238
      %240 = vrot.lane.b32.xlu0 %v166, 32
      %v241 = vpop.permute.xlu0 %240
      %242 = vrot.lane.b32.xlu0 %v167, 32
      %v243 = vpop.permute.xlu0 %242
      %244 = vrot.lane.b32.xlu0 %v168, 32
      %v245 = vpop.permute.xlu0 %244
      %246 = vrot.lane.b32.xlu0 %v169, 32
      %v247 = vpop.permute.xlu0 %246
      %248 = vrot.lane.b32.xlu0 %v170, 32
      %v249 = vpop.permute.xlu0 %248
      %250 = vrot.lane.b32.xlu0 %v171, 32
      %v251 = vpop.permute.xlu0 %250
      %260 = vst.msk [vmem:[#allocation3 + $0x3] sm:$0x1] %vm155, %v237
      %261 = vst.msk [vmem:[#allocation3 + $0x13] sm:$0x1] %vm155, %v239
      %262 = vst.msk [vmem:[#allocation3 + $0x23] sm:$0x1] %vm155, %v241
      %263 = vst.msk [vmem:[#allocation3 + $0x33] sm:$0x1] %vm155, %v243
      %264 = vst.msk [vmem:[#allocation3 + $0x43] sm:$0x1] %vm155, %v245
      %265 = vst.msk [vmem:[#allocation3 + $0x53] sm:$0x1] %vm155, %v247
      %266 = vst.msk [vmem:[#allocation3 + $0x63] sm:$0x1] %vm155, %v249
      %267 = vst.msk [vmem:[#allocation3 + $0x73] sm:$0x1] %vm155, %v251
      %v269 = vrot.slane %v98, 1
      %v270 = vrot.slane %v98, 2
      %v271 = vrot.slane %v98, 3
      %v272 = vrot.slane %v98, 4
      %v273 = vrot.slane %v98, 5
      %v274 = vrot.slane %v98, 6
      %v275 = vrot.slane %v98, 7
      %283 = vst.msk [vmem:[#allocation3 + $0x4] sm:$0x1] %vm155, %v98
      %284 = vst.msk [vmem:[#allocation3 + $0x14] sm:$0x1] %vm155, %v269
      %285 = vst.msk [vmem:[#allocation3 + $0x24] sm:$0x1] %vm155, %v270
      %286 = vst.msk [vmem:[#allocation3 + $0x34] sm:$0x1] %vm155, %v271
      %287 = vst.msk [vmem:[#allocation3 + $0x44] sm:$0x1] %vm155, %v272
      %288 = vst.msk [vmem:[#allocation3 + $0x54] sm:$0x1] %vm155, %v273
      %289 = vst.msk [vmem:[#allocation3 + $0x64] sm:$0x1] %vm155, %v274
      %290 = vst.msk [vmem:[#allocation3 + $0x74] sm:$0x1] %vm155, %v275
      %v291 = vperm.slane %v98, 0
      %v292 = vperm.slane %v269, 0
      %v293 = vperm.slane %v270, 0
      %v294 = vperm.slane %v271, 0
      %v295 = vperm.slane %v272, 0
      %v296 = vperm.slane %v273, 0
      %v297 = vperm.slane %v274, 0
      %v298 = vperm.slane %v275, 0
      %299 = vrot.lane.b32.xlu0 %v291, 96
      %v300 = vpop.permute.xlu0 %299
      %301 = vrot.lane.b32.xlu0 %v292, 96
      %v302 = vpop.permute.xlu0 %301
      %303 = vrot.lane.b32.xlu0 %v293, 96
      %v304 = vpop.permute.xlu0 %303
      %305 = vrot.lane.b32.xlu0 %v294, 96
      %v306 = vpop.permute.xlu0 %305
      %307 = vrot.lane.b32.xlu0 %v295, 96
      %v308 = vpop.permute.xlu0 %307
      %309 = vrot.lane.b32.xlu0 %v296, 96
      %v310 = vpop.permute.xlu0 %309
      %311 = vrot.lane.b32.xlu0 %v297, 96
      %v312 = vpop.permute.xlu0 %311
      %313 = vrot.lane.b32.xlu0 %v298, 96
      %v314 = vpop.permute.xlu0 %313
      %323 = vst.msk [vmem:[#allocation3 + $0x5] sm:$0x1] %vm155, %v300
      %324 = vst.msk [vmem:[#allocation3 + $0x15] sm:$0x1] %vm155, %v302
      %325 = vst.msk [vmem:[#allocation3 + $0x25] sm:$0x1] %vm155, %v304
      %326 = vst.msk [vmem:[#allocation3 + $0x35] sm:$0x1] %vm155, %v306
      %327 = vst.msk [vmem:[#allocation3 + $0x45] sm:$0x1] %vm155, %v308
      %328 = vst.msk [vmem:[#allocation3 + $0x55] sm:$0x1] %vm155, %v310
      %329 = vst.msk [vmem:[#allocation3 + $0x65] sm:$0x1] %vm155, %v312
      %330 = vst.msk [vmem:[#allocation3 + $0x75] sm:$0x1] %vm155, %v314
      %331 = vrot.lane.b32.xlu0 %v291, 64
      %v332 = vpop.permute.xlu0 %331
      %333 = vrot.lane.b32.xlu0 %v292, 64
      %v334 = vpop.permute.xlu0 %333
      %335 = vrot.lane.b32.xlu0 %v293, 64
      %v336 = vpop.permute.xlu0 %335
      %337 = vrot.lane.b32.xlu0 %v294, 64
      %v338 = vpop.permute.xlu0 %337
      %339 = vrot.lane.b32.xlu0 %v295, 64
      %v340 = vpop.permute.xlu0 %339
      %341 = vrot.lane.b32.xlu0 %v296, 64
      %v342 = vpop.permute.xlu0 %341
      %343 = vrot.lane.b32.xlu0 %v297, 64
      %v344 = vpop.permute.xlu0 %343
      %345 = vrot.lane.b32.xlu0 %v298, 64
      %v346 = vpop.permute.xlu0 %345
      %355 = vst.msk [vmem:[#allocation3 + $0x6] sm:$0x1] %vm155, %v332
      %356 = vst.msk [vmem:[#allocation3 + $0x16] sm:$0x1] %vm155, %v334
      %357 = vst.msk [vmem:[#allocation3 + $0x26] sm:$0x1] %vm155, %v336
      %358 = vst.msk [vmem:[#allocation3 + $0x36] sm:$0x1] %vm155, %v338
      %359 = vst.msk [vmem:[#allocation3 + $0x46] sm:$0x1] %vm155, %v340
      %360 = vst.msk [vmem:[#allocation3 + $0x56] sm:$0x1] %vm155, %v342
      %361 = vst.msk [vmem:[#allocation3 + $0x66] sm:$0x1] %vm155, %v344
      %362 = vst.msk [vmem:[#allocation3 + $0x76] sm:$0x1] %vm155, %v346
      %363 = vrot.lane.b32.xlu0 %v291, 32
      %v364 = vpop.permute.xlu0 %363
      %365 = vrot.lane.b32.xlu0 %v292, 32
      %v366 = vpop.permute.xlu0 %365
      %367 = vrot.lane.b32.xlu0 %v293, 32
      %v368 = vpop.permute.xlu0 %367
      %369 = vrot.lane.b32.xlu0 %v294, 32
      %v370 = vpop.permute.xlu0 %369
      %371 = vrot.lane.b32.xlu0 %v295, 32
      %v372 = vpop.permute.xlu0 %371
      %373 = vrot.lane.b32.xlu0 %v296, 32
      %v374 = vpop.permute.xlu0 %373
      %375 = vrot.lane.b32.xlu0 %v297, 32
      %v376 = vpop.permute.xlu0 %375
      %377 = vrot.lane.b32.xlu0 %v298, 32
      %v378 = vpop.permute.xlu0 %377
      %387 = vst.msk [vmem:[#allocation3 + $0x7] sm:$0x1] %vm155, %v364
      %388 = vst.msk [vmem:[#allocation3 + $0x17] sm:$0x1] %vm155, %v366
      %389 = vst.msk [vmem:[#allocation3 + $0x27] sm:$0x1] %vm155, %v368
      %390 = vst.msk [vmem:[#allocation3 + $0x37] sm:$0x1] %vm155, %v370
      %391 = vst.msk [vmem:[#allocation3 + $0x47] sm:$0x1] %vm155, %v372
      %392 = vst.msk [vmem:[#allocation3 + $0x57] sm:$0x1] %vm155, %v374
      %393 = vst.msk [vmem:[#allocation3 + $0x67] sm:$0x1] %vm155, %v376
      %394 = vst.msk [vmem:[#allocation3 + $0x77] sm:$0x1] %vm155, %v378
      %v396 = vrot.slane %v118, 1
      %v397 = vrot.slane %v118, 2
      %v398 = vrot.slane %v118, 3
      %v399 = vrot.slane %v118, 4
      %v400 = vrot.slane %v118, 5
      %v401 = vrot.slane %v118, 6
      %v402 = vrot.slane %v118, 7
      %410 = vst.msk [vmem:[#allocation3 + $0x8] sm:$0x1] %vm155, %v118
      %411 = vst.msk [vmem:[#allocation3 + $0x18] sm:$0x1] %vm155, %v396
      %412 = vst.msk [vmem:[#allocation3 + $0x28] sm:$0x1] %vm155, %v397
      %413 = vst.msk [vmem:[#allocation3 + $0x38] sm:$0x1] %vm155, %v398
      %414 = vst.msk [vmem:[#allocation3 + $0x48] sm:$0x1] %vm155, %v399
      %415 = vst.msk [vmem:[#allocation3 + $0x58] sm:$0x1] %vm155, %v400
      %416 = vst.msk [vmem:[#allocation3 + $0x68] sm:$0x1] %vm155, %v401
      %417 = vst.msk [vmem:[#allocation3 + $0x78] sm:$0x1] %vm155, %v402
      %v418 = vperm.slane %v118, 0
      %v419 = vperm.slane %v396, 0
      %v420 = vperm.slane %v397, 0
      %v421 = vperm.slane %v398, 0
      %v422 = vperm.slane %v399, 0
      %v423 = vperm.slane %v400, 0
      %v424 = vperm.slane %v401, 0
      %v425 = vperm.slane %v402, 0
      %426 = vrot.lane.b32.xlu0 %v418, 96
      %v427 = vpop.permute.xlu0 %426
      %428 = vrot.lane.b32.xlu0 %v419, 96
      %v429 = vpop.permute.xlu0 %428
      %430 = vrot.lane.b32.xlu0 %v420, 96
      %v431 = vpop.permute.xlu0 %430
      %432 = vrot.lane.b32.xlu0 %v421, 96
      %v433 = vpop.permute.xlu0 %432
      %434 = vrot.lane.b32.xlu0 %v422, 96
      %v435 = vpop.permute.xlu0 %434
      %436 = vrot.lane.b32.xlu0 %v423, 96
      %v437 = vpop.permute.xlu0 %436
      %438 = vrot.lane.b32.xlu0 %v424, 96
      %v439 = vpop.permute.xlu0 %438
      %440 = vrot.lane.b32.xlu0 %v425, 96
      %v441 = vpop.permute.xlu0 %440
      %450 = vst.msk [vmem:[#allocation3 + $0x9] sm:$0x1] %vm155, %v427
      %451 = vst.msk [vmem:[#allocation3 + $0x19] sm:$0x1] %vm155, %v429
      %452 = vst.msk [vmem:[#allocation3 + $0x29] sm:$0x1] %vm155, %v431
      %453 = vst.msk [vmem:[#allocation3 + $0x39] sm:$0x1] %vm155, %v433
      %454 = vst.msk [vmem:[#allocation3 + $0x49] sm:$0x1] %vm155, %v435
      %455 = vst.msk [vmem:[#allocation3 + $0x59] sm:$0x1] %vm155, %v437
      %456 = vst.msk [vmem:[#allocation3 + $0x69] sm:$0x1] %vm155, %v439
      %457 = vst.msk [vmem:[#allocation3 + $0x79] sm:$0x1] %vm155, %v441
      %458 = vrot.lane.b32.xlu0 %v418, 64
      %v459 = vpop.permute.xlu0 %458
      %460 = vrot.lane.b32.xlu0 %v419, 64
      %v461 = vpop.permute.xlu0 %460
      %462 = vrot.lane.b32.xlu0 %v420, 64
      %v463 = vpop.permute.xlu0 %462
      %464 = vrot.lane.b32.xlu0 %v421, 64
      %v465 = vpop.permute.xlu0 %464
      %466 = vrot.lane.b32.xlu0 %v422, 64
      %v467 = vpop.permute.xlu0 %466
      %468 = vrot.lane.b32.xlu0 %v423, 64
      %v469 = vpop.permute.xlu0 %468
      %470 = vrot.lane.b32.xlu0 %v424, 64
      %v471 = vpop.permute.xlu0 %470
      %472 = vrot.lane.b32.xlu0 %v425, 64
      %v473 = vpop.permute.xlu0 %472
      %482 = vst.msk [vmem:[#allocation3 + $0xa] sm:$0x1] %vm155, %v459
      %483 = vst.msk [vmem:[#allocation3 + $0x1a] sm:$0x1] %vm155, %v461
      %484 = vst.msk [vmem:[#allocation3 + $0x2a] sm:$0x1] %vm155, %v463
      %485 = vst.msk [vmem:[#allocation3 + $0x3a] sm:$0x1] %vm155, %v465
      %486 = vst.msk [vmem:[#allocation3 + $0x4a] sm:$0x1] %vm155, %v467
      %487 = vst.msk [vmem:[#allocation3 + $0x5a] sm:$0x1] %vm155, %v469
      %488 = vst.msk [vmem:[#allocation3 + $0x6a] sm:$0x1] %vm155, %v471
      %489 = vst.msk [vmem:[#allocation3 + $0x7a] sm:$0x1] %vm155, %v473
      %490 = vrot.lane.b32.xlu0 %v418, 32
      %v491 = vpop.permute.xlu0 %490
      %492 = vrot.lane.b32.xlu0 %v419, 32
      %v493 = vpop.permute.xlu0 %492
      %494 = vrot.lane.b32.xlu0 %v420, 32
      %v495 = vpop.permute.xlu0 %494
      %496 = vrot.lane.b32.xlu0 %v421, 32
      %v497 = vpop.permute.xlu0 %496
      %498 = vrot.lane.b32.xlu0 %v422, 32
      %v499 = vpop.permute.xlu0 %498
      %500 = vrot.lane.b32.xlu0 %v423, 32
      %v501 = vpop.permute.xlu0 %500
      %502 = vrot.lane.b32.xlu0 %v424, 32
      %v503 = vpop.permute.xlu0 %502
      %504 = vrot.lane.b32.xlu0 %v425, 32
      %v505 = vpop.permute.xlu0 %504
      %514 = vst.msk [vmem:[#allocation3 + $0xb] sm:$0x1] %vm155, %v491
      %515 = vst.msk [vmem:[#allocation3 + $0x1b] sm:$0x1] %vm155, %v493
      %516 = vst.msk [vmem:[#allocation3 + $0x2b] sm:$0x1] %vm155, %v495
      %517 = vst.msk [vmem:[#allocation3 + $0x3b] sm:$0x1] %vm155, %v497
      %518 = vst.msk [vmem:[#allocation3 + $0x4b] sm:$0x1] %vm155, %v499
      %519 = vst.msk [vmem:[#allocation3 + $0x5b] sm:$0x1] %vm155, %v501
      %520 = vst.msk [vmem:[#allocation3 + $0x6b] sm:$0x1] %vm155, %v503
      %521 = vst.msk [vmem:[#allocation3 + $0x7b] sm:$0x1] %vm155, %v505
      %v523 = vrot.slane %v138, 1
      %v524 = vrot.slane %v138, 2
      %v525 = vrot.slane %v138, 3
      %v526 = vrot.slane %v138, 4
      %v527 = vrot.slane %v138, 5
      %v528 = vrot.slane %v138, 6
      %v529 = vrot.slane %v138, 7
      %537 = vst.msk [vmem:[#allocation3 + $0xc] sm:$0x1] %vm155, %v138
      %538 = vst.msk [vmem:[#allocation3 + $0x1c] sm:$0x1] %vm155, %v523
      %539 = vst.msk [vmem:[#allocation3 + $0x2c] sm:$0x1] %vm155, %v524
      %540 = vst.msk [vmem:[#allocation3 + $0x3c] sm:$0x1] %vm155, %v525
      %541 = vst.msk [vmem:[#allocation3 + $0x4c] sm:$0x1] %vm155, %v526
      %542 = vst.msk [vmem:[#allocation3 + $0x5c] sm:$0x1] %vm155, %v527
      %543 = vst.msk [vmem:[#allocation3 + $0x6c] sm:$0x1] %vm155, %v528
      %544 = vst.msk [vmem:[#allocation3 + $0x7c] sm:$0x1] %vm155, %v529
      %v545 = vperm.slane %v138, 0
      %v546 = vperm.slane %v523, 0
      %v547 = vperm.slane %v524, 0
      %v548 = vperm.slane %v525, 0
      %v549 = vperm.slane %v526, 0
      %v550 = vperm.slane %v527, 0
      %v551 = vperm.slane %v528, 0
      %v552 = vperm.slane %v529, 0
      %553 = vrot.lane.b32.xlu0 %v545, 96
      %v554 = vpop.permute.xlu0 %553
      %555 = vrot.lane.b32.xlu0 %v546, 96
      %v556 = vpop.permute.xlu0 %555
      %557 = vrot.lane.b32.xlu0 %v547, 96
      %v558 = vpop.permute.xlu0 %557
      %559 = vrot.lane.b32.xlu0 %v548, 96
      %v560 = vpop.permute.xlu0 %559
      %561 = vrot.lane.b32.xlu0 %v549, 96
      %v562 = vpop.permute.xlu0 %561
      %563 = vrot.lane.b32.xlu0 %v550, 96
      %v564 = vpop.permute.xlu0 %563
      %565 = vrot.lane.b32.xlu0 %v551, 96
      %v566 = vpop.permute.xlu0 %565
      %567 = vrot.lane.b32.xlu0 %v552, 96
      %v568 = vpop.permute.xlu0 %567
      %577 = vst.msk [vmem:[#allocation3 + $0xd] sm:$0x1] %vm155, %v554
      %578 = vst.msk [vmem:[#allocation3 + $0x1d] sm:$0x1] %vm155, %v556
      %579 = vst.msk [vmem:[#allocation3 + $0x2d] sm:$0x1] %vm155, %v558
      %580 = vst.msk [vmem:[#allocation3 + $0x3d] sm:$0x1] %vm155, %v560
      %581 = vst.msk [vmem:[#allocation3 + $0x4d] sm:$0x1] %vm155, %v562
      %582 = vst.msk [vmem:[#allocation3 + $0x5d] sm:$0x1] %vm155, %v564
      %583 = vst.msk [vmem:[#allocation3 + $0x6d] sm:$0x1] %vm155, %v566
      %584 = vst.msk [vmem:[#allocation3 + $0x7d] sm:$0x1] %vm155, %v568
      %585 = vrot.lane.b32.xlu0 %v545, 64
      %v586 = vpop.permute.xlu0 %585
      %587 = vrot.lane.b32.xlu0 %v546, 64
      %v588 = vpop.permute.xlu0 %587
      %589 = vrot.lane.b32.xlu0 %v547, 64
      %v590 = vpop.permute.xlu0 %589
      %591 = vrot.lane.b32.xlu0 %v548, 64
      %v592 = vpop.permute.xlu0 %591
      %593 = vrot.lane.b32.xlu0 %v549, 64
      %v594 = vpop.permute.xlu0 %593
      %595 = vrot.lane.b32.xlu0 %v550, 64
      %v596 = vpop.permute.xlu0 %595
      %597 = vrot.lane.b32.xlu0 %v551, 64
      %v598 = vpop.permute.xlu0 %597
      %599 = vrot.lane.b32.xlu0 %v552, 64
      %v600 = vpop.permute.xlu0 %599
      %609 = vst.msk [vmem:[#allocation3 + $0xe] sm:$0x1] %vm155, %v586
      %610 = vst.msk [vmem:[#allocation3 + $0x1e] sm:$0x1] %vm155, %v588
      %611 = vst.msk [vmem:[#allocation3 + $0x2e] sm:$0x1] %vm155, %v590
      %612 = vst.msk [vmem:[#allocation3 + $0x3e] sm:$0x1] %vm155, %v592
      %613 = vst.msk [vmem:[#allocation3 + $0x4e] sm:$0x1] %vm155, %v594
      %614 = vst.msk [vmem:[#allocation3 + $0x5e] sm:$0x1] %vm155, %v596
      %615 = vst.msk [vmem:[#allocation3 + $0x6e] sm:$0x1] %vm155, %v598
      %616 = vst.msk [vmem:[#allocation3 + $0x7e] sm:$0x1] %vm155, %v600
      %617 = vrot.lane.b32.xlu0 %v545, 32
      %v618 = vpop.permute.xlu0 %617
      %619 = vrot.lane.b32.xlu0 %v546, 32
      %v620 = vpop.permute.xlu0 %619
      %621 = vrot.lane.b32.xlu0 %v547, 32
      %v622 = vpop.permute.xlu0 %621
      %623 = vrot.lane.b32.xlu0 %v548, 32
      %v624 = vpop.permute.xlu0 %623
      %625 = vrot.lane.b32.xlu0 %v549, 32
      %v626 = vpop.permute.xlu0 %625
      %627 = vrot.lane.b32.xlu0 %v550, 32
      %v628 = vpop.permute.xlu0 %627
      %629 = vrot.lane.b32.xlu0 %v551, 32
      %v630 = vpop.permute.xlu0 %629
      %631 = vrot.lane.b32.xlu0 %v552, 32
      %v632 = vpop.permute.xlu0 %631
      %641 = vst.msk [vmem:[#allocation3 + $0xf] sm:$0x1] %vm155, %v618
      %642 = vst.msk [vmem:[#allocation3 + $0x1f] sm:$0x1] %vm155, %v620
      %643 = vst.msk [vmem:[#allocation3 + $0x2f] sm:$0x1] %vm155, %v622
      %644 = vst.msk [vmem:[#allocation3 + $0x3f] sm:$0x1] %vm155, %v624
      %645 = vst.msk [vmem:[#allocation3 + $0x4f] sm:$0x1] %vm155, %v626
      %646 = vst.msk [vmem:[#allocation3 + $0x5f] sm:$0x1] %vm155, %v628
      %647 = vst.msk [vmem:[#allocation3 + $0x6f] sm:$0x1] %vm155, %v630
      %648 = vst.msk [vmem:[#allocation3 + $0x7f] sm:$0x1] %vm155, %v632
    $region37: #{tpu_custom_call.1} parent=1 // pred_fallthru
      _
    %v649 = vld [vmem:[#allocation3] sm:$0xff]
    %v650 = vld [vmem:[#allocation3 + $0x8] sm:$0xff]
    %v651 = vld [vmem:[#allocation3 + $0x10] sm:$0xff]
    %v652 = vld [vmem:[#allocation3 + $0x18] sm:$0xff]
    %v653 = vld [vmem:[#allocation3 + $0x20] sm:$0xff]
    %v654 = vld [vmem:[#allocation3 + $0x28] sm:$0xff]
    %v655 = vld [vmem:[#allocation3 + $0x30] sm:$0xff]
    %v656 = vld [vmem:[#allocation3 + $0x38] sm:$0xff]
    %v657 = vld [vmem:[#allocation3 + $0x40] sm:$0xff]
    %v658 = vld [vmem:[#allocation3 + $0x48] sm:$0xff]
    %v659 = vld [vmem:[#allocation3 + $0x50] sm:$0xff]
    %v660 = vld [vmem:[#allocation3 + $0x58] sm:$0xff]
    %v661 = vld [vmem:[#allocation3 + $0x60] sm:$0xff]
    %v662 = vld [vmem:[#allocation3 + $0x68] sm:$0xff]
    %v663 = vld [vmem:[#allocation3 + $0x70] sm:$0xff]
    %v664 = vld [vmem:[#allocation3 + $0x78] sm:$0xff]
    %v665 = vld [vmem:[%s1] sm:$0xff]
    %v666 = vld [vmem:[%s1 + $0x8] sm:$0xff]
    %v667 = vld [vmem:[%s1 + $0x10] sm:$0xff]
    %v668 = vld [vmem:[%s1 + $0x18] sm:$0xff]
    %vm669 = vcmask 261120
    %v671 = vsel %vm669, %v649, 0
    %v674 = vsel %vm669, %v650, 0
    %v677 = vsel %vm669, %v651, 0
    %v680 = vsel %vm669, %v652, 0
    %v683 = vsel %vm669, %v653, 0
    %v686 = vsel %vm669, %v654, 0
    %v689 = vsel %vm669, %v655, 0
    %v692 = vsel %vm669, %v656, 0
    %v695 = vsel %vm669, %v657, 0
    %v698 = vsel %vm669, %v658, 0
    %v701 = vsel %vm669, %v659, 0
    %v704 = vsel %vm669, %v660, 0
    %v707 = vsel %vm669, %v661, 0
    %v710 = vsel %vm669, %v662, 0
    %v713 = vsel %vm669, %v663, 0
    %v716 = vsel %vm669, %v664, 0
    %718 = vmatpush.msra.mxu0 0.0
    %719 = vmatpush.msra.mxu0 0.0
    %720 = vmatpush.msra.mxu0 0.0
    %721 = vmatpush.msra.mxu0 0.0
    %722 = vmatpush.msra.mxu0 0.0
    %723 = vmatpush.msra.mxu0 0.0
    %724 = vmatpush.msra.mxu0 0.0
    %725 = vmatpush.msra.mxu0 0.0
    %726 = vmatpush.msra.mxu0 0.0
    %727 = vmatpush.msra.mxu0 0.0
    %728 = vmatpush.msra.mxu0 0.0
    %729 = vmatpush.msra.mxu0 0.0
    %730 = vmatpush.msra.mxu0 %v668
    %731 = vmatpush.msra.mxu0 %v667
    %732 = vmatpush.msra.mxu0 %v666
    %733 = vmatpush.msra.mxu0 %v665
    %734 = vmatmul.f32.gmra.mxu0 %v671
    %v735 = vpop.f32.mrf.mxu0
    %v736 = vadd.f32 0.0, %v735
    %737 = vmatmul.f32.gmra.mxu0 %v674
    %v738 = vpop.f32.mrf.mxu0
    %v739 = vadd.f32 0.0, %v738
    %740 = vmatmul.f32.gmra.mxu0 %v677
    %v741 = vpop.f32.mrf.mxu0
    %v742 = vadd.f32 0.0, %v741
    %743 = vmatmul.f32.gmra.mxu0 %v680
    %v744 = vpop.f32.mrf.mxu0
    %v745 = vadd.f32 0.0, %v744
    %746 = vmatmul.f32.gmra.mxu0 %v683
    %v747 = vpop.f32.mrf.mxu0
    %v748 = vadd.f32 0.0, %v747
    %749 = vmatmul.f32.gmra.mxu0 %v686
    %v750 = vpop.f32.mrf.mxu0
    %v751 = vadd.f32 0.0, %v750
    %752 = vmatmul.f32.gmra.mxu0 %v689
    %v753 = vpop.f32.mrf.mxu0
    %v754 = vadd.f32 0.0, %v753
    %755 = vmatmul.f32.gmra.mxu0 %v692
    %v756 = vpop.f32.mrf.mxu0
    %v757 = vadd.f32 0.0, %v756
    %758 = vmatmul.f32.gmra.mxu0 %v695
    %v759 = vpop.f32.mrf.mxu0
    %v760 = vadd.f32 0.0, %v759
    %761 = vmatmul.f32.gmra.mxu0 %v698
    %v762 = vpop.f32.mrf.mxu0
    %v763 = vadd.f32 0.0, %v762
    %764 = vmatmul.f32.gmra.mxu0 %v701
    %v765 = vpop.f32.mrf.mxu0
    %v766 = vadd.f32 0.0, %v765
    %767 = vmatmul.f32.gmra.mxu0 %v704
    %v768 = vpop.f32.mrf.mxu0
    %v769 = vadd.f32 0.0, %v768
    %770 = vmatmul.f32.gmra.mxu0 %v707
    %v771 = vpop.f32.mrf.mxu0
    %v772 = vadd.f32 0.0, %v771
    %773 = vmatmul.f32.gmra.mxu0 %v710
    %v774 = vpop.f32.mrf.mxu0
    %v775 = vadd.f32 0.0, %v774
    %776 = vmatmul.f32.gmra.mxu0 %v713
    %v777 = vpop.f32.mrf.mxu0
    %v778 = vadd.f32 0.0, %v777
    %779 = vmatmul.f32.gmra.mxu0 %v716
    %v780 = vpop.f32.mrf.mxu0
    %v781 = vadd.f32 0.0, %v780
    %782 = vdwg.mxu0
    %v783 = vld [vmem:[%s2] sm:$0xff]
    %v784 = vld [vmem:[%s2 + $0x8] sm:$0xff]
    %v785 = vld [vmem:[%s2 + $0x10] sm:$0xff]
    %v786 = vld [vmem:[%s2 + $0x18] sm:$0xff]
    %v787 = vld [vmem:[%s2 + $0x20] sm:$0xff]
    %v788 = vld [vmem:[%s2 + $0x28] sm:$0xff]
    %v789 = vld [vmem:[%s2 + $0x30] sm:$0xff]
    %v790 = vld [vmem:[%s2 + $0x38] sm:$0xff]
    %v791 = vld [vmem:[%s2 + $0x40] sm:$0xff]
    %v792 = vld [vmem:[%s2 + $0x48] sm:$0xff]
    %v793 = vld [vmem:[%s2 + $0x50] sm:$0xff]
    %v794 = vld [vmem:[%s2 + $0x58] sm:$0xff]
    %v795 = vld [vmem:[%s2 + $0x60] sm:$0xff]
    %v796 = vld [vmem:[%s2 + $0x68] sm:$0xff]
    %v797 = vld [vmem:[%s2 + $0x70] sm:$0xff]
    %v798 = vld [vmem:[%s2 + $0x78] sm:$0xff]
    %v799 = vld [vmem:[%s2 + $0x80] sm:$0xff]
    %v800 = vld [vmem:[%s2 + $0x88] sm:$0xff]
    %v801 = vld [vmem:[%s2 + $0x90] sm:$0xff]
    %v802 = vld [vmem:[%s2 + $0x98] sm:$0xff]
    %v803 = vld [vmem:[%s2 + $0xa0] sm:$0xff]
    %v804 = vld [vmem:[%s2 + $0xa8] sm:$0xff]
    %v805 = vld [vmem:[%s2 + $0xb0] sm:$0xff]
    %v806 = vld [vmem:[%s2 + $0xb8] sm:$0xff]
    %v807 = vld [vmem:[%s2 + $0xc0] sm:$0xff]
    %v808 = vld [vmem:[%s2 + $0xc8] sm:$0xff]
    %v809 = vld [vmem:[%s2 + $0xd0] sm:$0xff]
    %v810 = vld [vmem:[%s2 + $0xd8] sm:$0xff]
    %v811 = vld [vmem:[%s2 + $0xe0] sm:$0xff]
    %v812 = vld [vmem:[%s2 + $0xe8] sm:$0xff]
    %v813 = vld [vmem:[%s2 + $0xf0] sm:$0xff]
    %v814 = vld [vmem:[%s2 + $0xf8] sm:$0xff]
    %815 = vmatpush.msra.mxu0 0.0
    %816 = vmatpush.msra.mxu0 0.0
    %817 = vmatpush.msra.mxu0 0.0
    %818 = vmatpush.msra.mxu0 0.0
    %819 = vmatpush.msra.mxu0 0.0
    %820 = vmatpush.msra.mxu0 0.0
    %821 = vmatpush.msra.mxu0 0.0
    %822 = vmatpush.msra.mxu0 0.0
    %823 = vmatpush.msra.mxu0 0.0
    %824 = vmatpush.msra.mxu0 0.0
    %825 = vmatpush.msra.mxu0 0.0
    %826 = vmatpush.msra.mxu0 0.0
    %827 = vmatpush.msra.mxu0 %v786
    %828 = vmatpush.msra.mxu0 %v785
    %829 = vmatpush.msra.mxu0 %v784
    %830 = vmatpush.msra.mxu0 %v783
    %831 = vmatmul.f32.gmra.mxu0 %v671
    %v832 = vpop.f32.mrf.mxu0
    %v833 = vadd.f32 0.0, %v832
    %834 = vmatmul.f32.gmra.mxu0 %v674
    %v835 = vpop.f32.mrf.mxu0
    %v836 = vadd.f32 0.0, %v835
    %837 = vdwg.mxu0
    %838 = vmatpush.msra.mxu0 0.0
    %839 = vmatpush.msra.mxu0 0.0
    %840 = vmatpush.msra.mxu0 0.0
    %841 = vmatpush.msra.mxu0 0.0
    %842 = vmatpush.msra.mxu0 0.0
    %843 = vmatpush.msra.mxu0 0.0
    %844 = vmatpush.msra.mxu0 0.0
    %845 = vmatpush.msra.mxu0 0.0
    %846 = vmatpush.msra.mxu0 0.0
    %847 = vmatpush.msra.mxu0 0.0
    %848 = vmatpush.msra.mxu0 0.0
    %849 = vmatpush.msra.mxu0 0.0
    %850 = vmatpush.msra.mxu0 %v790
    %851 = vmatpush.msra.mxu0 %v789
    %852 = vmatpush.msra.mxu0 %v788
    %853 = vmatpush.msra.mxu0 %v787
    %854 = vmatmul.f32.gmra.mxu0 %v677
    %v855 = vpop.f32.mrf.mxu0
    %v856 = vadd.f32 0.0, %v855
    %857 = vmatmul.f32.gmra.mxu0 %v680
    %v858 = vpop.f32.mrf.mxu0
    %v859 = vadd.f32 0.0, %v858
    %860 = vdwg.mxu0
    %861 = vmatpush.msra.mxu0 0.0
    %862 = vmatpush.msra.mxu0 0.0
    %863 = vmatpush.msra.mxu0 0.0
    %864 = vmatpush.msra.mxu0 0.0
    %865 = vmatpush.msra.mxu0 0.0
    %866 = vmatpush.msra.mxu0 0.0
    %867 = vmatpush.msra.mxu0 0.0
    %868 = vmatpush.msra.mxu0 0.0
    %869 = vmatpush.msra.mxu0 0.0
    %870 = vmatpush.msra.mxu0 0.0
    %871 = vmatpush.msra.mxu0 0.0
    %872 = vmatpush.msra.mxu0 0.0
    %873 = vmatpush.msra.mxu0 %v794
    %874 = vmatpush.msra.mxu0 %v793
    %875 = vmatpush.msra.mxu0 %v792
    %876 = vmatpush.msra.mxu0 %v791
    %877 = vmatmul.f32.gmra.mxu0 %v683
    %v878 = vpop.f32.mrf.mxu0
    %v879 = vadd.f32 0.0, %v878
    %880 = vmatmul.f32.gmra.mxu0 %v686
    %v881 = vpop.f32.mrf.mxu0
    %v882 = vadd.f32 0.0, %v881
    %883 = vdwg.mxu0
    %884 = vmatpush.msra.mxu0 0.0
    %885 = vmatpush.msra.mxu0 0.0
    %886 = vmatpush.msra.mxu0 0.0
    %887 = vmatpush.msra.mxu0 0.0
    %888 = vmatpush.msra.mxu0 0.0
    %889 = vmatpush.msra.mxu0 0.0
    %890 = vmatpush.msra.mxu0 0.0
    %891 = vmatpush.msra.mxu0 0.0
    %892 = vmatpush.msra.mxu0 0.0
    %893 = vmatpush.msra.mxu0 0.0
    %894 = vmatpush.msra.mxu0 0.0
    %895 = vmatpush.msra.mxu0 0.0
    %896 = vmatpush.msra.mxu0 %v798
    %897 = vmatpush.msra.mxu0 %v797
    %898 = vmatpush.msra.mxu0 %v796
    %899 = vmatpush.msra.mxu0 %v795
    %900 = vmatmul.f32.gmra.mxu0 %v689
    %v901 = vpop.f32.mrf.mxu0
    %v902 = vadd.f32 0.0, %v901
    %903 = vmatmul.f32.gmra.mxu0 %v692
    %v904 = vpop.f32.mrf.mxu0
    %v905 = vadd.f32 0.0, %v904
    %906 = vdwg.mxu0
    %907 = vmatpush.msra.mxu0 0.0
    %908 = vmatpush.msra.mxu0 0.0
    %909 = vmatpush.msra.mxu0 0.0
    %910 = vmatpush.msra.mxu0 0.0
    %911 = vmatpush.msra.mxu0 0.0
    %912 = vmatpush.msra.mxu0 0.0
    %913 = vmatpush.msra.mxu0 0.0
    %914 = vmatpush.msra.mxu0 0.0
    %915 = vmatpush.msra.mxu0 0.0
    %916 = vmatpush.msra.mxu0 0.0
    %917 = vmatpush.msra.mxu0 0.0
    %918 = vmatpush.msra.mxu0 0.0
    %919 = vmatpush.msra.mxu0 %v802
    %920 = vmatpush.msra.mxu0 %v801
    %921 = vmatpush.msra.mxu0 %v800
    %922 = vmatpush.msra.mxu0 %v799
    %923 = vmatmul.f32.gmra.mxu0 %v695
    %v924 = vpop.f32.mrf.mxu0
    %v925 = vadd.f32 0.0, %v924
    %926 = vmatmul.f32.gmra.mxu0 %v698
    %v927 = vpop.f32.mrf.mxu0
    %v928 = vadd.f32 0.0, %v927
    %929 = vdwg.mxu0
    %930 = vmatpush.msra.mxu0 0.0
    %931 = vmatpush.msra.mxu0 0.0
    %932 = vmatpush.msra.mxu0 0.0
    %933 = vmatpush.msra.mxu0 0.0
    %934 = vmatpush.msra.mxu0 0.0
    %935 = vmatpush.msra.mxu0 0.0
    %936 = vmatpush.msra.mxu0 0.0
    %937 = vmatpush.msra.mxu0 0.0
    %938 = vmatpush.msra.mxu0 0.0
    %939 = vmatpush.msra.mxu0 0.0
    %940 = vmatpush.msra.mxu0 0.0
    %941 = vmatpush.msra.mxu0 0.0
    %942 = vmatpush.msra.mxu0 %v806
    %943 = vmatpush.msra.mxu0 %v805
    %944 = vmatpush.msra.mxu0 %v804
    %945 = vmatpush.msra.mxu0 %v803
    %946 = vmatmul.f32.gmra.mxu0 %v701
    %v947 = vpop.f32.mrf.mxu0
    %v948 = vadd.f32 0.0, %v947
    %949 = vmatmul.f32.gmra.mxu0 %v704
    %v950 = vpop.f32.mrf.mxu0
    %v951 = vadd.f32 0.0, %v950
    %952 = vdwg.mxu0
    %953 = vmatpush.msra.mxu0 0.0
    %954 = vmatpush.msra.mxu0 0.0
    %955 = vmatpush.msra.mxu0 0.0
    %956 = vmatpush.msra.mxu0 0.0
    %957 = vmatpush.msra.mxu0 0.0
    %958 = vmatpush.msra.mxu0 0.0
    %959 = vmatpush.msra.mxu0 0.0
    %960 = vmatpush.msra.mxu0 0.0
    %961 = vmatpush.msra.mxu0 0.0
    %962 = vmatpush.msra.mxu0 0.0
    %963 = vmatpush.msra.mxu0 0.0
    %964 = vmatpush.msra.mxu0 0.0
    %965 = vmatpush.msra.mxu0 %v810
    %966 = vmatpush.msra.mxu0 %v809
    %967 = vmatpush.msra.mxu0 %v808
    %968 = vmatpush.msra.mxu0 %v807
    %969 = vmatmul.f32.gmra.mxu0 %v707
    %v970 = vpop.f32.mrf.mxu0
    %v971 = vadd.f32 0.0, %v970
    %972 = vmatmul.f32.gmra.mxu0 %v710
    %v973 = vpop.f32.mrf.mxu0
    %v974 = vadd.f32 0.0, %v973
    %975 = vdwg.mxu0
    %976 = vmatpush.msra.mxu0 0.0
    %977 = vmatpush.msra.mxu0 0.0
    %978 = vmatpush.msra.mxu0 0.0
    %979 = vmatpush.msra.mxu0 0.0
    %980 = vmatpush.msra.mxu0 0.0
    %981 = vmatpush.msra.mxu0 0.0
    %982 = vmatpush.msra.mxu0 0.0
    %983 = vmatpush.msra.mxu0 0.0
    %984 = vmatpush.msra.mxu0 0.0
    %985 = vmatpush.msra.mxu0 0.0
    %986 = vmatpush.msra.mxu0 0.0
    %987 = vmatpush.msra.mxu0 0.0
    %988 = vmatpush.msra.mxu0 %v814
    %989 = vmatpush.msra.mxu0 %v813
    %990 = vmatpush.msra.mxu0 %v812
    %991 = vmatpush.msra.mxu0 %v811
    %992 = vmatmul.f32.gmra.mxu0 %v713
    %v993 = vpop.f32.mrf.mxu0
    %v994 = vadd.f32 0.0, %v993
    %995 = vmatmul.f32.gmra.mxu0 %v716
    %v996 = vpop.f32.mrf.mxu0
    %v997 = vadd.f32 0.0, %v996
    %998 = vdwg.mxu0
    %v999 = vadd.f32 %v736, %v833
    %v1000 = vadd.f32 %v739, %v836
    %v1001 = vadd.f32 %v742, %v856
    %v1002 = vadd.f32 %v745, %v859
    %v1003 = vadd.f32 %v748, %v879
    %v1004 = vadd.f32 %v751, %v882
    %v1005 = vadd.f32 %v754, %v902
    %v1006 = vadd.f32 %v757, %v905
    %v1007 = vadd.f32 %v760, %v925
    %v1008 = vadd.f32 %v763, %v928
    %v1009 = vadd.f32 %v766, %v948
    %v1010 = vadd.f32 %v769, %v951
    %v1011 = vadd.f32 %v772, %v971
    %v1012 = vadd.f32 %v775, %v974
    %v1013 = vadd.f32 %v778, %v994
    %v1014 = vadd.f32 %v781, %v997
    %v1015 = vmul.f32 %v999, 0.35355338
    %v1016 = vmul.f32 %v1000, 0.35355338
    %v1017 = vmul.f32 %v1001, 0.35355338
    %v1018 = vmul.f32 %v1002, 0.35355338
    %v1019 = vmul.f32 %v1003, 0.35355338
    %v1020 = vmul.f32 %v1004, 0.35355338
    %v1021 = vmul.f32 %v1005, 0.35355338
    %v1022 = vmul.f32 %v1006, 0.35355338
    %v1023 = vmul.f32 %v1007, 0.35355338
    %v1024 = vmul.f32 %v1008, 0.35355338
    %v1025 = vmul.f32 %v1009, 0.35355338
    %v1026 = vmul.f32 %v1010, 0.35355338
    %v1027 = vmul.f32 %v1011, 0.35355338
    %v1028 = vmul.f32 %v1012, 0.35355338
    %v1029 = vmul.f32 %v1013, 0.35355338
    %v1030 = vmul.f32 %v1014, 0.35355338
    %vm1031 = vcmp.ge.f32.partialorder %v1015, 0.0
    %vm1032 = vcmp.ge.f32.partialorder %v1016, 0.0
    %vm1033 = vcmp.ge.f32.partialorder %v1017, 0.0
    %vm1034 = vcmp.ge.f32.partialorder %v1018, 0.0
    %vm1035 = vcmp.ge.f32.partialorder %v1019, 0.0
    %vm1036 = vcmp.ge.f32.partialorder %v1020, 0.0
    %vm1037 = vcmp.ge.f32.partialorder %v1021, 0.0
    %vm1038 = vcmp.ge.f32.partialorder %v1022, 0.0
    %vm1039 = vcmp.ge.f32.partialorder %v1023, 0.0
    %vm1040 = vcmp.ge.f32.partialorder %v1024, 0.0
    %vm1041 = vcmp.ge.f32.partialorder %v1025, 0.0
    %vm1042 = vcmp.ge.f32.partialorder %v1026, 0.0
    %vm1043 = vcmp.ge.f32.partialorder %v1027, 0.0
    %vm1044 = vcmp.ge.f32.partialorder %v1028, 0.0
    %vm1045 = vcmp.ge.f32.partialorder %v1029, 0.0
    %vm1046 = vcmp.ge.f32.partialorder %v1030, 0.0
    %v1047 = vmul.f32 %v1015, 0.01
    %v1048 = vmul.f32 %v1016, 0.01
    %v1049 = vmul.f32 %v1017, 0.01
    %v1050 = vmul.f32 %v1018, 0.01
    %v1051 = vmul.f32 %v1019, 0.01
    %v1052 = vmul.f32 %v1020, 0.01
    %v1053 = vmul.f32 %v1021, 0.01
    %v1054 = vmul.f32 %v1022, 0.01
    %v1055 = vmul.f32 %v1023, 0.01
    %v1056 = vmul.f32 %v1024, 0.01
    %v1057 = vmul.f32 %v1025, 0.01
    %v1058 = vmul.f32 %v1026, 0.01
    %v1059 = vmul.f32 %v1027, 0.01
    %v1060 = vmul.f32 %v1028, 0.01
    %v1061 = vmul.f32 %v1029, 0.01
    %v1062 = vmul.f32 %v1030, 0.01
    %v1063 = vsel %vm1031, %v1015, %v1047
    %v1064 = vsel %vm1032, %v1016, %v1048
    %v1065 = vsel %vm1033, %v1017, %v1049
    %v1066 = vsel %vm1034, %v1018, %v1050
    %v1067 = vsel %vm1035, %v1019, %v1051
    %v1068 = vsel %vm1036, %v1020, %v1052
    %v1069 = vsel %vm1037, %v1021, %v1053
    %v1070 = vsel %vm1038, %v1022, %v1054
    %v1071 = vsel %vm1039, %v1023, %v1055
    %v1072 = vsel %vm1040, %v1024, %v1056
    %v1073 = vsel %vm1041, %v1025, %v1057
    %v1074 = vsel %vm1042, %v1026, %v1058
    %v1075 = vsel %vm1043, %v1027, %v1059
    %v1076 = vsel %vm1044, %v1028, %v1060
    %v1077 = vsel %vm1045, %v1029, %v1061
    %v1078 = vsel %vm1046, %v1030, %v1062
    %v1079 = vld [vmem:[%s3] sm:$0xff]
    %v1080 = vld [vmem:[%s4] sm:$0xff]
    %v1081 = vld [vmem:[%s4 + $0x8] sm:$0xff]
    %v1082 = vld [vmem:[%s4 + $0x10] sm:$0xff]
    %v1083 = vld [vmem:[%s4 + $0x18] sm:$0xff]
    %v1084 = vld [vmem:[%s4 + $0x20] sm:$0xff]
    %v1085 = vld [vmem:[%s4 + $0x28] sm:$0xff]
    %v1086 = vld [vmem:[%s4 + $0x30] sm:$0xff]
    %v1087 = vld [vmem:[%s4 + $0x38] sm:$0xff]
    %v1088 = vld [vmem:[%s4 + $0x40] sm:$0xff]
    %v1089 = vld [vmem:[%s4 + $0x48] sm:$0xff]
    %v1090 = vld [vmem:[%s4 + $0x50] sm:$0xff]
    %v1091 = vld [vmem:[%s4 + $0x58] sm:$0xff]
    %v1092 = vld [vmem:[%s4 + $0x60] sm:$0xff]
    %v1093 = vld [vmem:[%s4 + $0x68] sm:$0xff]
    %v1094 = vld [vmem:[%s4 + $0x70] sm:$0xff]
    %v1095 = vld [vmem:[%s4 + $0x78] sm:$0xff]
    %v1096 = vld [vmem:[%s4 + $0x80] sm:$0xff]
    %v1097 = vld [vmem:[%s4 + $0x88] sm:$0xff]
    %v1098 = vld [vmem:[%s4 + $0x90] sm:$0xff]
    %v1099 = vld [vmem:[%s4 + $0x98] sm:$0xff]
    %v1100 = vld [vmem:[%s4 + $0xa0] sm:$0xff]
    %v1101 = vld [vmem:[%s4 + $0xa8] sm:$0xff]
    %v1102 = vld [vmem:[%s4 + $0xb0] sm:$0xff]
    %v1103 = vld [vmem:[%s4 + $0xb8] sm:$0xff]
    %v1104 = vld [vmem:[%s4 + $0xc0] sm:$0xff]
    %v1105 = vld [vmem:[%s4 + $0xc8] sm:$0xff]
    %v1106 = vld [vmem:[%s4 + $0xd0] sm:$0xff]
    %v1107 = vld [vmem:[%s4 + $0xd8] sm:$0xff]
    %v1108 = vld [vmem:[%s4 + $0xe0] sm:$0xff]
    %v1109 = vld [vmem:[%s4 + $0xe8] sm:$0xff]
    %v1110 = vld [vmem:[%s4 + $0xf0] sm:$0xff]
    %v1111 = vld [vmem:[%s4 + $0xf8] sm:$0xff]
    %v1112 = vld [vmem:[%s4 + $0x100] sm:$0xff]
    %v1113 = vld [vmem:[%s4 + $0x108] sm:$0xff]
    %v1114 = vld [vmem:[%s4 + $0x110] sm:$0xff]
    %v1115 = vld [vmem:[%s4 + $0x118] sm:$0xff]
    %v1116 = vld [vmem:[%s4 + $0x120] sm:$0xff]
    %v1117 = vld [vmem:[%s4 + $0x128] sm:$0xff]
    %v1118 = vld [vmem:[%s4 + $0x130] sm:$0xff]
    %v1119 = vld [vmem:[%s4 + $0x138] sm:$0xff]
    %v1120 = vld [vmem:[%s4 + $0x140] sm:$0xff]
    %v1121 = vld [vmem:[%s4 + $0x148] sm:$0xff]
    %v1122 = vld [vmem:[%s4 + $0x150] sm:$0xff]
    %v1123 = vld [vmem:[%s4 + $0x158] sm:$0xff]
    %v1124 = vld [vmem:[%s4 + $0x160] sm:$0xff]
    %v1125 = vld [vmem:[%s4 + $0x168] sm:$0xff]
    %v1126 = vld [vmem:[%s4 + $0x170] sm:$0xff]
    %v1127 = vld [vmem:[%s4 + $0x178] sm:$0xff]
    %v1128 = vld [vmem:[%s4 + $0x180] sm:$0xff]
    %v1129 = vld [vmem:[%s4 + $0x188] sm:$0xff]
    %v1130 = vld [vmem:[%s4 + $0x190] sm:$0xff]
    %v1131 = vld [vmem:[%s4 + $0x198] sm:$0xff]
    %v1132 = vld [vmem:[%s4 + $0x1a0] sm:$0xff]
    %v1133 = vld [vmem:[%s4 + $0x1a8] sm:$0xff]
    %v1134 = vld [vmem:[%s4 + $0x1b0] sm:$0xff]
    %v1135 = vld [vmem:[%s4 + $0x1b8] sm:$0xff]
    %v1136 = vld [vmem:[%s4 + $0x1c0] sm:$0xff]
    %v1137 = vld [vmem:[%s4 + $0x1c8] sm:$0xff]
    %v1138 = vld [vmem:[%s4 + $0x1d0] sm:$0xff]
    %v1139 = vld [vmem:[%s4 + $0x1d8] sm:$0xff]
    %v1140 = vld [vmem:[%s4 + $0x1e0] sm:$0xff]
    %v1141 = vld [vmem:[%s4 + $0x1e8] sm:$0xff]
    %v1142 = vld [vmem:[%s4 + $0x1f0] sm:$0xff]
    %v1143 = vld [vmem:[%s4 + $0x1f8] sm:$0xff]
    %v1152 = vrot.slane %v1063, 1
    %v1153 = vrot.slane %v1065, 1
    %v1154 = vrot.slane %v1067, 1
    %v1155 = vrot.slane %v1069, 1
    %v1156 = vrot.slane %v1071, 1
    %v1157 = vrot.slane %v1073, 1
    %v1158 = vrot.slane %v1075, 1
    %v1159 = vrot.slane %v1077, 1
    %v1168 = vmax.f32 %v1063, %v1152
    %v1169 = vmax.f32 %v1065, %v1153
    %v1170 = vmax.f32 %v1067, %v1154
    %v1171 = vmax.f32 %v1069, %v1155
    %v1172 = vmax.f32 %v1071, %v1156
    %v1173 = vmax.f32 %v1073, %v1157
    %v1174 = vmax.f32 %v1075, %v1158
    %v1175 = vmax.f32 %v1077, %v1159
    %v1176 = vrot.slane %v1063, 2
    %v1177 = vrot.slane %v1065, 2
    %v1178 = vrot.slane %v1067, 2
    %v1179 = vrot.slane %v1069, 2
    %v1180 = vrot.slane %v1071, 2
    %v1181 = vrot.slane %v1073, 2
    %v1182 = vrot.slane %v1075, 2
    %v1183 = vrot.slane %v1077, 2
    %v1192 = vmax.f32 %v1168, %v1176
    %v1193 = vmax.f32 %v1169, %v1177
    %v1194 = vmax.f32 %v1170, %v1178
    %v1195 = vmax.f32 %v1171, %v1179
    %v1196 = vmax.f32 %v1172, %v1180
    %v1197 = vmax.f32 %v1173, %v1181
    %v1198 = vmax.f32 %v1174, %v1182
    %v1199 = vmax.f32 %v1175, %v1183
    %v1200 = vrot.slane %v1063, 3
    %v1201 = vrot.slane %v1065, 3
    %v1202 = vrot.slane %v1067, 3
    %v1203 = vrot.slane %v1069, 3
    %v1204 = vrot.slane %v1071, 3
    %v1205 = vrot.slane %v1073, 3
    %v1206 = vrot.slane %v1075, 3
    %v1207 = vrot.slane %v1077, 3
    %v1216 = vmax.f32 %v1192, %v1200
    %v1217 = vmax.f32 %v1193, %v1201
    %v1218 = vmax.f32 %v1194, %v1202
    %v1219 = vmax.f32 %v1195, %v1203
    %v1220 = vmax.f32 %v1196, %v1204
    %v1221 = vmax.f32 %v1197, %v1205
    %v1222 = vmax.f32 %v1198, %v1206
    %v1223 = vmax.f32 %v1199, %v1207
    %v1224 = vsub.f32 %v1063, %v1216
    %v1225 = vsub.f32 %v1065, %v1217
    %v1226 = vsub.f32 %v1067, %v1218
    %v1227 = vsub.f32 %v1069, %v1219
    %v1228 = vsub.f32 %v1071, %v1220
    %v1229 = vsub.f32 %v1073, %v1221
    %v1230 = vsub.f32 %v1075, %v1222
    %v1231 = vsub.f32 %v1077, %v1223
    %v1232 = vmul.f32 %v1224, 1.442695
    %v1233 = vpow.pop %v1232
    %v1234 = vmul.f32 %v1225, 1.442695
    %v1235 = vpow.pop %v1234
    %v1236 = vmul.f32 %v1226, 1.442695
    %v1237 = vpow.pop %v1236
    %v1238 = vmul.f32 %v1227, 1.442695
    %v1239 = vpow.pop %v1238
    %v1240 = vmul.f32 %v1228, 1.442695
    %v1241 = vpow.pop %v1240
    %v1242 = vmul.f32 %v1229, 1.442695
    %v1243 = vpow.pop %v1242
    %v1244 = vmul.f32 %v1230, 1.442695
    %v1245 = vpow.pop %v1244
    %v1246 = vmul.f32 %v1231, 1.442695
    %v1247 = vpow.pop %v1246
    %v1256 = vrot.slane %v1216, 7
    %v1257 = vrot.slane %v1217, 7
    %v1258 = vrot.slane %v1218, 7
    %v1259 = vrot.slane %v1219, 7
    %v1260 = vrot.slane %v1220, 7
    %v1261 = vrot.slane %v1221, 7
    %v1262 = vrot.slane %v1222, 7
    %v1263 = vrot.slane %v1223, 7
    %v1272 = vsub.f32 %v1063, %v1256
    %v1273 = vsub.f32 %v1065, %v1257
    %v1274 = vsub.f32 %v1067, %v1258
    %v1275 = vsub.f32 %v1069, %v1259
    %v1276 = vsub.f32 %v1071, %v1260
    %v1277 = vsub.f32 %v1073, %v1261
    %v1278 = vsub.f32 %v1075, %v1262
    %v1279 = vsub.f32 %v1077, %v1263
    %v1280 = vmul.f32 %v1272, 1.442695
    %v1281 = vpow.pop %v1280
    %v1282 = vmul.f32 %v1273, 1.442695
    %v1283 = vpow.pop %v1282
    %v1284 = vmul.f32 %v1274, 1.442695
    %v1285 = vpow.pop %v1284
    %v1286 = vmul.f32 %v1275, 1.442695
    %v1287 = vpow.pop %v1286
    %v1288 = vmul.f32 %v1276, 1.442695
    %v1289 = vpow.pop %v1288
    %v1290 = vmul.f32 %v1277, 1.442695
    %v1291 = vpow.pop %v1290
    %v1292 = vmul.f32 %v1278, 1.442695
    %v1293 = vpow.pop %v1292
    %v1294 = vmul.f32 %v1279, 1.442695
    %v1295 = vpow.pop %v1294
    %v1296 = vrot.slane %v1216, 6
    %v1297 = vrot.slane %v1217, 6
    %v1298 = vrot.slane %v1218, 6
    %v1299 = vrot.slane %v1219, 6
    %v1300 = vrot.slane %v1220, 6
    %v1301 = vrot.slane %v1221, 6
    %v1302 = vrot.slane %v1222, 6
    %v1303 = vrot.slane %v1223, 6
    %v1312 = vsub.f32 %v1063, %v1296
    %v1313 = vsub.f32 %v1065, %v1297
    %v1314 = vsub.f32 %v1067, %v1298
    %v1315 = vsub.f32 %v1069, %v1299
    %v1316 = vsub.f32 %v1071, %v1300
    %v1317 = vsub.f32 %v1073, %v1301
    %v1318 = vsub.f32 %v1075, %v1302
    %v1319 = vsub.f32 %v1077, %v1303
    %v1320 = vmul.f32 %v1312, 1.442695
    %v1321 = vpow.pop %v1320
    %v1322 = vmul.f32 %v1313, 1.442695
    %v1323 = vpow.pop %v1322
    %v1324 = vmul.f32 %v1314, 1.442695
    %v1325 = vpow.pop %v1324
    %v1326 = vmul.f32 %v1315, 1.442695
    %v1327 = vpow.pop %v1326
    %v1328 = vmul.f32 %v1316, 1.442695
    %v1329 = vpow.pop %v1328
    %v1330 = vmul.f32 %v1317, 1.442695
    %v1331 = vpow.pop %v1330
    %v1332 = vmul.f32 %v1318, 1.442695
    %v1333 = vpow.pop %v1332
    %v1334 = vmul.f32 %v1319, 1.442695
    %v1335 = vpow.pop %v1334
    %v1336 = vrot.slane %v1216, 5
    %v1337 = vrot.slane %v1217, 5
    %v1338 = vrot.slane %v1218, 5
    %v1339 = vrot.slane %v1219, 5
    %v1340 = vrot.slane %v1220, 5
    %v1341 = vrot.slane %v1221, 5
    %v1342 = vrot.slane %v1222, 5
    %v1343 = vrot.slane %v1223, 5
    %v1352 = vsub.f32 %v1063, %v1336
    %v1353 = vsub.f32 %v1065, %v1337
    %v1354 = vsub.f32 %v1067, %v1338
    %v1355 = vsub.f32 %v1069, %v1339
    %v1356 = vsub.f32 %v1071, %v1340
    %v1357 = vsub.f32 %v1073, %v1341
    %v1358 = vsub.f32 %v1075, %v1342
    %v1359 = vsub.f32 %v1077, %v1343
    %v1360 = vmul.f32 %v1352, 1.442695
    %v1361 = vpow.pop %v1360
    %v1362 = vmul.f32 %v1353, 1.442695
    %v1363 = vpow.pop %v1362
    %v1364 = vmul.f32 %v1354, 1.442695
    %v1365 = vpow.pop %v1364
    %v1366 = vmul.f32 %v1355, 1.442695
    %v1367 = vpow.pop %v1366
    %v1368 = vmul.f32 %v1356, 1.442695
    %v1369 = vpow.pop %v1368
    %v1370 = vmul.f32 %v1357, 1.442695
    %v1371 = vpow.pop %v1370
    %v1372 = vmul.f32 %v1358, 1.442695
    %v1373 = vpow.pop %v1372
    %v1374 = vmul.f32 %v1359, 1.442695
    %v1375 = vpow.pop %v1374
    %v1384 = vrot.slane %v1281, 1
    %v1385 = vrot.slane %v1283, 1
    %v1386 = vrot.slane %v1285, 1
    %v1387 = vrot.slane %v1287, 1
    %v1388 = vrot.slane %v1289, 1
    %v1389 = vrot.slane %v1291, 1
    %v1390 = vrot.slane %v1293, 1
    %v1391 = vrot.slane %v1295, 1
    %v1400 = vadd.f32 %v1233, %v1384
    %v1401 = vadd.f32 %v1235, %v1385
    %v1402 = vadd.f32 %v1237, %v1386
    %v1403 = vadd.f32 %v1239, %v1387
    %v1404 = vadd.f32 %v1241, %v1388
    %v1405 = vadd.f32 %v1243, %v1389
    %v1406 = vadd.f32 %v1245, %v1390
    %v1407 = vadd.f32 %v1247, %v1391
    %v1416 = vrot.slane %v1321, 2
    %v1417 = vrot.slane %v1323, 2
    %v1418 = vrot.slane %v1325, 2
    %v1419 = vrot.slane %v1327, 2
    %v1420 = vrot.slane %v1329, 2
    %v1421 = vrot.slane %v1331, 2
    %v1422 = vrot.slane %v1333, 2
    %v1423 = vrot.slane %v1335, 2
    %v1432 = vadd.f32 %v1400, %v1416
    %v1433 = vadd.f32 %v1401, %v1417
    %v1434 = vadd.f32 %v1402, %v1418
    %v1435 = vadd.f32 %v1403, %v1419
    %v1436 = vadd.f32 %v1404, %v1420
    %v1437 = vadd.f32 %v1405, %v1421
    %v1438 = vadd.f32 %v1406, %v1422
    %v1439 = vadd.f32 %v1407, %v1423
    %v1448 = vrot.slane %v1361, 3
    %v1449 = vrot.slane %v1363, 3
    %v1450 = vrot.slane %v1365, 3
    %v1451 = vrot.slane %v1367, 3
    %v1452 = vrot.slane %v1369, 3
    %v1453 = vrot.slane %v1371, 3
    %v1454 = vrot.slane %v1373, 3
    %v1455 = vrot.slane %v1375, 3
    %v1464 = vadd.f32 %v1432, %v1448
    %v1465 = vadd.f32 %v1433, %v1449
    %v1466 = vadd.f32 %v1434, %v1450
    %v1467 = vadd.f32 %v1435, %v1451
    %v1468 = vadd.f32 %v1436, %v1452
    %v1469 = vadd.f32 %v1437, %v1453
    %v1470 = vadd.f32 %v1438, %v1454
    %v1471 = vadd.f32 %v1439, %v1455
    %v1472 = vrcp.pop %v1464
    %v1473 = vmul.f32 %v1464, %v1472
    %v1474 = vsub.f32 1.0, %v1473
    %v1475 = vmul.f32 %v1472, %v1474
    %v1476 = vadd.f32 %v1472, %v1475
    %vm1477 = vweird.f32 %v1464
    %vm1478 = vweird.f32 %v1472
    %vm1479 = vmor %vm1477, %vm1478
    %v1480 = vsel %vm1479, %v1472, %v1476
    %v1481 = vand.u32 2147483647, %v1464
    %vm1482 = vcmp.eq.f32.partialorder %v1481, 8.507059e+37
    %v1483 = vand.u32 %v1464, 2147483648
    %v1484 = vor.u32 1.1754944e-38, %v1483
    %v1485 = vsel %vm1482, %v1484, %v1480
    %v1486 = vrcp.pop %v1465
    %v1487 = vmul.f32 %v1465, %v1486
    %v1488 = vsub.f32 1.0, %v1487
    %v1489 = vmul.f32 %v1486, %v1488
    %v1490 = vadd.f32 %v1486, %v1489
    %vm1491 = vweird.f32 %v1465
    %vm1492 = vweird.f32 %v1486
    %vm1493 = vmor %vm1491, %vm1492
    %v1494 = vsel %vm1493, %v1486, %v1490
    %v1495 = vand.u32 2147483647, %v1465
    %vm1496 = vcmp.eq.f32.partialorder %v1495, 8.507059e+37
    %v1497 = vand.u32 %v1465, 2147483648
    %v1498 = vor.u32 1.1754944e-38, %v1497
    %v1499 = vsel %vm1496, %v1498, %v1494
    %v1500 = vrcp.pop %v1466
    %v1501 = vmul.f32 %v1466, %v1500
    %v1502 = vsub.f32 1.0, %v1501
    %v1503 = vmul.f32 %v1500, %v1502
    %v1504 = vadd.f32 %v1500, %v1503
    %vm1505 = vweird.f32 %v1466
    %vm1506 = vweird.f32 %v1500
    %vm1507 = vmor %vm1505, %vm1506
    %v1508 = vsel %vm1507, %v1500, %v1504
    %v1509 = vand.u32 2147483647, %v1466
    %vm1510 = vcmp.eq.f32.partialorder %v1509, 8.507059e+37
    %v1511 = vand.u32 %v1466, 2147483648
    %v1512 = vor.u32 1.1754944e-38, %v1511
    %v1513 = vsel %vm1510, %v1512, %v1508
    %v1514 = vrcp.pop %v1467
    %v1515 = vmul.f32 %v1467, %v1514
    %v1516 = vsub.f32 1.0, %v1515
    %v1517 = vmul.f32 %v1514, %v1516
    %v1518 = vadd.f32 %v1514, %v1517
    %vm1519 = vweird.f32 %v1467
    %vm1520 = vweird.f32 %v1514
    %vm1521 = vmor %vm1519, %vm1520
    %v1522 = vsel %vm1521, %v1514, %v1518
    %v1523 = vand.u32 2147483647, %v1467
    %vm1524 = vcmp.eq.f32.partialorder %v1523, 8.507059e+37
    %v1525 = vand.u32 %v1467, 2147483648
    %v1526 = vor.u32 1.1754944e-38, %v1525
    %v1527 = vsel %vm1524, %v1526, %v1522
    %v1528 = vrcp.pop %v1468
    %v1529 = vmul.f32 %v1468, %v1528
    %v1530 = vsub.f32 1.0, %v1529
    %v1531 = vmul.f32 %v1528, %v1530
    %v1532 = vadd.f32 %v1528, %v1531
    %vm1533 = vweird.f32 %v1468
    %vm1534 = vweird.f32 %v1528
    %vm1535 = vmor %vm1533, %vm1534
    %v1536 = vsel %vm1535, %v1528, %v1532
    %v1537 = vand.u32 2147483647, %v1468
    %vm1538 = vcmp.eq.f32.partialorder %v1537, 8.507059e+37
    %v1539 = vand.u32 %v1468, 2147483648
    %v1540 = vor.u32 1.1754944e-38, %v1539
    %v1541 = vsel %vm1538, %v1540, %v1536
    %v1542 = vrcp.pop %v1469
    %v1543 = vmul.f32 %v1469, %v1542
    %v1544 = vsub.f32 1.0, %v1543
    %v1545 = vmul.f32 %v1542, %v1544
    %v1546 = vadd.f32 %v1542, %v1545
    %vm1547 = vweird.f32 %v1469
    %vm1548 = vweird.f32 %v1542
    %vm1549 = vmor %vm1547, %vm1548
    %v1550 = vsel %vm1549, %v1542, %v1546
    %v1551 = vand.u32 2147483647, %v1469
    %vm1552 = vcmp.eq.f32.partialorder %v1551, 8.507059e+37
    %v1553 = vand.u32 %v1469, 2147483648
    %v1554 = vor.u32 1.1754944e-38, %v1553
    %v1555 = vsel %vm1552, %v1554, %v1550
    %v1556 = vrcp.pop %v1470
    %v1557 = vmul.f32 %v1470, %v1556
    %v1558 = vsub.f32 1.0, %v1557
    %v1559 = vmul.f32 %v1556, %v1558
    %v1560 = vadd.f32 %v1556, %v1559
    %vm1561 = vweird.f32 %v1470
    %vm1562 = vweird.f32 %v1556
    %vm1563 = vmor %vm1561, %vm1562
    %v1564 = vsel %vm1563, %v1556, %v1560
    %v1565 = vand.u32 2147483647, %v1470
    %vm1566 = vcmp.eq.f32.partialorder %v1565, 8.507059e+37
    %v1567 = vand.u32 %v1470, 2147483648
    %v1568 = vor.u32 1.1754944e-38, %v1567
    %v1569 = vsel %vm1566, %v1568, %v1564
    %v1570 = vrcp.pop %v1471
    %v1571 = vmul.f32 %v1471, %v1570
    %v1572 = vsub.f32 1.0, %v1571
    %v1573 = vmul.f32 %v1570, %v1572
    %v1574 = vadd.f32 %v1570, %v1573
    %vm1575 = vweird.f32 %v1471
    %vm1576 = vweird.f32 %v1570
    %vm1577 = vmor %vm1575, %vm1576
    %v1578 = vsel %vm1577, %v1570, %v1574
    %v1579 = vand.u32 2147483647, %v1471
    %vm1580 = vcmp.eq.f32.partialorder %v1579, 8.507059e+37
    %v1581 = vand.u32 %v1471, 2147483648
    %v1582 = vor.u32 1.1754944e-38, %v1581
    %v1583 = vsel %vm1580, %v1582, %v1578
    %v1592 = vrot.slane %v1499, 7
    %vm1593 = vcmask 1041409
    %v1594 = vsel %vm1593, %v1592, %v1485
    %v1595 = vrot.slane %v1513, 6
    %vm1596 = vcmask 1042434
    %v1597 = vsel %vm1596, %v1595, %v1594
    %v1598 = vrot.slane %v1527, 5
    %vm1599 = vcmask 1043459
    %v1600 = vsel %vm1599, %v1598, %v1597
    %v1601 = vrot.slane %v1541, 4
    %vm1602 = vcmask 1044484
    %v1603 = vsel %vm1602, %v1601, %v1600
    %v1604 = vrot.slane %v1555, 3
    %vm1605 = vcmask 1045509
    %v1606 = vsel %vm1605, %v1604, %v1603
    %v1607 = vrot.slane %v1569, 2
    %vm1608 = vcmask 1046534
    %v1609 = vsel %vm1608, %v1607, %v1606
    %v1610 = vrot.slane %v1583, 1
    %vm1611 = vcmask 1047559
    %v1612 = vsel %vm1611, %v1610, %v1609
    %v1614 = vmul.f32 %v1079, %v1612
    %v1616 = vrot.slane %v1614, 1
    %v1617 = vrot.slane %v1614, 2
    %v1618 = vrot.slane %v1614, 3
    %v1619 = vrot.slane %v1614, 4
    %v1620 = vrot.slane %v1614, 5
    %v1621 = vrot.slane %v1614, 6
    %v1622 = vrot.slane %v1614, 7
    %v1631 = vmul.f32 %v1233, %v1614
    %v1632 = vmul.f32 %v1235, %v1616
    %v1633 = vmul.f32 %v1237, %v1617
    %v1634 = vmul.f32 %v1239, %v1618
    %v1635 = vmul.f32 %v1241, %v1619
    %v1636 = vmul.f32 %v1243, %v1620
    %v1637 = vmul.f32 %v1245, %v1621
    %v1638 = vmul.f32 %v1247, %v1622
    %v1639 = vmul.f32 %v1281, %v1622
    %v1640 = vmul.f32 %v1283, %v1614
    %v1641 = vmul.f32 %v1285, %v1616
    %v1642 = vmul.f32 %v1287, %v1617
    %v1643 = vmul.f32 %v1289, %v1618
    %v1644 = vmul.f32 %v1291, %v1619
    %v1645 = vmul.f32 %v1293, %v1620
    %v1646 = vmul.f32 %v1295, %v1621
    %v1647 = vmul.f32 %v1321, %v1621
    %v1648 = vmul.f32 %v1323, %v1622
    %v1649 = vmul.f32 %v1325, %v1614
    %v1650 = vmul.f32 %v1327, %v1616
    %v1651 = vmul.f32 %v1329, %v1617
    %v1652 = vmul.f32 %v1331, %v1618
    %v1653 = vmul.f32 %v1333, %v1619
    %v1654 = vmul.f32 %v1335, %v1620
    %v1655 = vmul.f32 %v1361, %v1620
    %v1656 = vmul.f32 %v1363, %v1621
    %v1657 = vmul.f32 %v1365, %v1622
    %v1658 = vmul.f32 %v1367, %v1614
    %v1659 = vmul.f32 %v1369, %v1616
    %v1660 = vmul.f32 %v1371, %v1617
    %v1661 = vmul.f32 %v1373, %v1618
    %v1662 = vmul.f32 %v1375, %v1619
    %v1671 = vrot.slane %v1632, 7
    %v1672 = vsel %vm1593, %v1671, %v1631
    %v1673 = vrot.slane %v1633, 6
    %v1674 = vsel %vm1596, %v1673, %v1672
    %v1675 = vrot.slane %v1634, 5
    %v1676 = vsel %vm1599, %v1675, %v1674
    %v1677 = vrot.slane %v1635, 4
    %v1678 = vsel %vm1602, %v1677, %v1676
    %v1679 = vrot.slane %v1636, 3
    %v1680 = vsel %vm1605, %v1679, %v1678
    %v1681 = vrot.slane %v1637, 2
    %v1682 = vsel %vm1608, %v1681, %v1680
    %v1683 = vrot.slane %v1638, 1
    %v1684 = vsel %vm1611, %v1683, %v1682
    %v1694 = vrot.slane %v1639, 1
    %v1695 = vsel %vm1593, %v1640, %v1694
    %v1696 = vrot.slane %v1641, 7
    %v1697 = vsel %vm1596, %v1696, %v1695
    %v1698 = vrot.slane %v1642, 6
    %v1699 = vsel %vm1599, %v1698, %v1697
    %v1700 = vrot.slane %v1643, 5
    %v1701 = vsel %vm1602, %v1700, %v1699
    %v1702 = vrot.slane %v1644, 4
    %v1703 = vsel %vm1605, %v1702, %v1701
    %v1704 = vrot.slane %v1645, 3
    %v1705 = vsel %vm1608, %v1704, %v1703
    %v1706 = vrot.slane %v1646, 2
    %v1707 = vsel %vm1611, %v1706, %v1705
    %v1717 = vrot.slane %v1647, 2
    %v1718 = vrot.slane %v1648, 1
    %v1719 = vsel %vm1593, %v1718, %v1717
    %v1720 = vsel %vm1596, %v1649, %v1719
    %v1721 = vrot.slane %v1650, 7
    %v1722 = vsel %vm1599, %v1721, %v1720
    %v1723 = vrot.slane %v1651, 6
    %v1724 = vsel %vm1602, %v1723, %v1722
    %v1725 = vrot.slane %v1652, 5
    %v1726 = vsel %vm1605, %v1725, %v1724
    %v1727 = vrot.slane %v1653, 4
    %v1728 = vsel %vm1608, %v1727, %v1726
    %v1729 = vrot.slane %v1654, 3
    %v1730 = vsel %vm1611, %v1729, %v1728
    %v1740 = vrot.slane %v1655, 3
    %v1741 = vrot.slane %v1656, 2
    %v1742 = vsel %vm1593, %v1741, %v1740
    %v1743 = vrot.slane %v1657, 1
    %v1744 = vsel %vm1596, %v1743, %v1742
    %v1745 = vsel %vm1599, %v1658, %v1744
    %v1746 = vrot.slane %v1659, 7
    %v1747 = vsel %vm1602, %v1746, %v1745
    %v1748 = vrot.slane %v1660, 6
    %v1749 = vsel %vm1605, %v1748, %v1747
    %v1750 = vrot.slane %v1661, 5
    %v1751 = vsel %vm1608, %v1750, %v1749
    %v1752 = vrot.slane %v1662, 4
    %v1753 = vsel %vm1611, %v1752, %v1751
    %1755 = vmatpush.msra.mxu0 %v1095
    %1756 = vmatpush.msra.mxu0 %v1094
    %1757 = vmatpush.msra.mxu0 %v1093
    %1758 = vmatpush.msra.mxu0 %v1092
    %1759 = vmatpush.msra.mxu0 %v1091
    %1760 = vmatpush.msra.mxu0 %v1090
    %1761 = vmatpush.msra.mxu0 %v1089
    %1762 = vmatpush.msra.mxu0 %v1088
    %1763 = vmatpush.msra.mxu0 %v1087
    %1764 = vmatpush.msra.mxu0 %v1086
    %1765 = vmatpush.msra.mxu0 %v1085
    %1766 = vmatpush.msra.mxu0 %v1084
    %1767 = vmatpush.msra.mxu0 %v1083
    %1768 = vmatpush.msra.mxu0 %v1082
    %1769 = vmatpush.msra.mxu0 %v1081
    %1770 = vmatpush.msra.mxu0 %v1080
    %1771 = vmatmul.f32.gmra.mxu0 %v1684
    %v1772 = vpop.f32.mrf.mxu0
    %v1773 = vadd.f32 0.0, %v1772
    %1774 = vdwg.mxu0
    %1775 = vmatpush.msra.mxu0 %v1111
    %1776 = vmatpush.msra.mxu0 %v1110
    %1777 = vmatpush.msra.mxu0 %v1109
    %1778 = vmatpush.msra.mxu0 %v1108
    %1779 = vmatpush.msra.mxu0 %v1107
    %1780 = vmatpush.msra.mxu0 %v1106
    %1781 = vmatpush.msra.mxu0 %v1105
    %1782 = vmatpush.msra.mxu0 %v1104
    %1783 = vmatpush.msra.mxu0 %v1103
    %1784 = vmatpush.msra.mxu0 %v1102
    %1785 = vmatpush.msra.mxu0 %v1101
    %1786 = vmatpush.msra.mxu0 %v1100
    %1787 = vmatpush.msra.mxu0 %v1099
    %1788 = vmatpush.msra.mxu0 %v1098
    %1789 = vmatpush.msra.mxu0 %v1097
    %1790 = vmatpush.msra.mxu0 %v1096
    %1791 = vmatmul.f32.gmra.mxu0 %v1707
    %v1792 = vpop.f32.mrf.mxu0
    %v1793 = vadd.f32 %v1773, %v1792
    %1794 = vdwg.mxu0
    %1795 = vmatpush.msra.mxu0 %v1127
    %1796 = vmatpush.msra.mxu0 %v1126
    %1797 = vmatpush.msra.mxu0 %v1125
    %1798 = vmatpush.msra.mxu0 %v1124
    %1799 = vmatpush.msra.mxu0 %v1123
    %1800 = vmatpush.msra.mxu0 %v1122
    %1801 = vmatpush.msra.mxu0 %v1121
    %1802 = vmatpush.msra.mxu0 %v1120
    %1803 = vmatpush.msra.mxu0 %v1119
    %1804 = vmatpush.msra.mxu0 %v1118
    %1805 = vmatpush.msra.mxu0 %v1117
    %1806 = vmatpush.msra.mxu0 %v1116
    %1807 = vmatpush.msra.mxu0 %v1115
    %1808 = vmatpush.msra.mxu0 %v1114
    %1809 = vmatpush.msra.mxu0 %v1113
    %1810 = vmatpush.msra.mxu0 %v1112
    %1811 = vmatmul.f32.gmra.mxu0 %v1730
    %v1812 = vpop.f32.mrf.mxu0
    %v1813 = vadd.f32 %v1793, %v1812
    %1814 = vdwg.mxu0
    %1815 = vmatpush.msra.mxu0 %v1143
    %1816 = vmatpush.msra.mxu0 %v1142
    %1817 = vmatpush.msra.mxu0 %v1141
    %1818 = vmatpush.msra.mxu0 %v1140
    %1819 = vmatpush.msra.mxu0 %v1139
    %1820 = vmatpush.msra.mxu0 %v1138
    %1821 = vmatpush.msra.mxu0 %v1137
    %1822 = vmatpush.msra.mxu0 %v1136
    %1823 = vmatpush.msra.mxu0 %v1135
    %1824 = vmatpush.msra.mxu0 %v1134
    %1825 = vmatpush.msra.mxu0 %v1133
    %1826 = vmatpush.msra.mxu0 %v1132
    %1827 = vmatpush.msra.mxu0 %v1131
    %1828 = vmatpush.msra.mxu0 %v1130
    %1829 = vmatpush.msra.mxu0 %v1129
    %1830 = vmatpush.msra.mxu0 %v1128
    %1831 = vmatmul.f32.gmra.mxu0 %v1753
    %v1832 = vpop.f32.mrf.mxu0
    %v1833 = vadd.f32 %v1813, %v1832
    %1834 = vdwg.mxu0
    %v1835 = vld [vmem:[#allocation2] sm:$0xff]
    %v1836 = vadd.f32 %v1835, %v1833
    %vm1837 = vcmask 64512
    %1838 = vst.msk [vmem:[#allocation2] sm:$0xff] %vm1837, %v1836
    %v1839 = vrot.slane %v1485, 4
    %v1840 = vrot.slane %v1499, 3
    %v1841 = vsel %vm1593, %v1840, %v1839
    %v1842 = vrot.slane %v1513, 2
    %v1843 = vsel %vm1596, %v1842, %v1841
    %v1844 = vrot.slane %v1527, 1
    %v1845 = vsel %vm1599, %v1844, %v1843
    %v1846 = vsel %vm1602, %v1541, %v1845
    %v1847 = vrot.slane %v1555, 7
    %v1848 = vsel %vm1605, %v1847, %v1846
    %v1849 = vrot.slane %v1569, 6
    %v1850 = vsel %vm1608, %v1849, %v1848
    %v1851 = vrot.slane %v1583, 5
    %v1852 = vsel %vm1611, %v1851, %v1850
    %v1854 = vmul.f32 %v1079, %v1852
    %v1856 = vrot.slane %v1854, 4
    %v1857 = vrot.slane %v1854, 5
    %v1858 = vrot.slane %v1854, 6
    %v1859 = vrot.slane %v1854, 7
    %v1860 = vrot.slane %v1854, 1
    %v1861 = vrot.slane %v1854, 2
    %v1862 = vrot.slane %v1854, 3
    %v1871 = vmul.f32 %v1233, %v1856
    %v1872 = vmul.f32 %v1235, %v1857
    %v1873 = vmul.f32 %v1237, %v1858
    %v1874 = vmul.f32 %v1239, %v1859
    %v1875 = vmul.f32 %v1241, %v1854
    %v1876 = vmul.f32 %v1243, %v1860
    %v1877 = vmul.f32 %v1245, %v1861
    %v1878 = vmul.f32 %v1247, %v1862
    %v1879 = vmul.f32 %v1281, %v1862
    %v1880 = vmul.f32 %v1283, %v1856
    %v1881 = vmul.f32 %v1285, %v1857
    %v1882 = vmul.f32 %v1287, %v1858
    %v1883 = vmul.f32 %v1289, %v1859
    %v1884 = vmul.f32 %v1291, %v1854
    %v1885 = vmul.f32 %v1293, %v1860
    %v1886 = vmul.f32 %v1295, %v1861
    %v1887 = vmul.f32 %v1321, %v1861
    %v1888 = vmul.f32 %v1323, %v1862
    %v1889 = vmul.f32 %v1325, %v1856
    %v1890 = vmul.f32 %v1327, %v1857
    %v1891 = vmul.f32 %v1329, %v1858
    %v1892 = vmul.f32 %v1331, %v1859
    %v1893 = vmul.f32 %v1333, %v1854
    %v1894 = vmul.f32 %v1335, %v1860
    %v1895 = vmul.f32 %v1361, %v1860
    %v1896 = vmul.f32 %v1363, %v1861
    %v1897 = vmul.f32 %v1365, %v1862
    %v1898 = vmul.f32 %v1367, %v1856
    %v1899 = vmul.f32 %v1369, %v1857
    %v1900 = vmul.f32 %v1371, %v1858
    %v1901 = vmul.f32 %v1373, %v1859
    %v1902 = vmul.f32 %v1375, %v1854
    %v1911 = vrot.slane %v1872, 7
    %v1912 = vsel %vm1605, %v1911, %v1871
    %v1913 = vrot.slane %v1873, 6
    %v1914 = vsel %vm1608, %v1913, %v1912
    %v1915 = vrot.slane %v1874, 5
    %v1916 = vsel %vm1611, %v1915, %v1914
    %v1917 = vrot.slane %v1875, 4
    %v1918 = vrot.slane %v1876, 3
    %v1919 = vsel %vm1593, %v1918, %v1917
    %v1920 = vrot.slane %v1877, 2
    %v1921 = vsel %vm1596, %v1920, %v1919
    %v1922 = vrot.slane %v1878, 1
    %v1923 = vsel %vm1599, %v1922, %v1921
    %v1932 = vrot.slane %v1879, 1
    %v1933 = vsel %vm1605, %v1880, %v1932
    %v1934 = vrot.slane %v1881, 7
    %v1935 = vsel %vm1608, %v1934, %v1933
    %v1936 = vrot.slane %v1882, 6
    %v1937 = vsel %vm1611, %v1936, %v1935
    %v1938 = vrot.slane %v1883, 5
    %v1939 = vrot.slane %v1884, 4
    %v1940 = vsel %vm1593, %v1939, %v1938
    %v1941 = vrot.slane %v1885, 3
    %v1942 = vsel %vm1596, %v1941, %v1940
    %v1943 = vrot.slane %v1886, 2
    %v1944 = vsel %vm1599, %v1943, %v1942
    %v1953 = vrot.slane %v1887, 2
    %v1954 = vrot.slane %v1888, 1
    %v1955 = vsel %vm1605, %v1954, %v1953
    %v1956 = vsel %vm1608, %v1889, %v1955
    %v1957 = vrot.slane %v1890, 7
    %v1958 = vsel %vm1611, %v1957, %v1956
    %v1959 = vrot.slane %v1891, 6
    %v1960 = vrot.slane %v1892, 5
    %v1961 = vsel %vm1593, %v1960, %v1959
    %v1962 = vrot.slane %v1893, 4
    %v1963 = vsel %vm1596, %v1962, %v1961
    %v1964 = vrot.slane %v1894, 3
    %v1965 = vsel %vm1599, %v1964, %v1963
    %v1974 = vrot.slane %v1895, 3
    %v1975 = vrot.slane %v1896, 2
    %v1976 = vsel %vm1605, %v1975, %v1974
    %v1977 = vrot.slane %v1897, 1
    %v1978 = vsel %vm1608, %v1977, %v1976
    %v1979 = vsel %vm1611, %v1898, %v1978
    %v1980 = vrot.slane %v1899, 7
    %v1981 = vrot.slane %v1900, 6
    %v1982 = vsel %vm1593, %v1981, %v1980
    %v1983 = vrot.slane %v1901, 5
    %v1984 = vsel %vm1596, %v1983, %v1982
    %v1985 = vrot.slane %v1902, 4
    %v1986 = vsel %vm1599, %v1985, %v1984
    %vm1987 = vcmask 1043456
    %v1988 = vrot.slane %v1916, 4
    %v1989 = vrot.slane %v1923, 4
    %v1990 = vsel %vm1987, %v1988, %v1989
    %v1991 = vrot.slane %v1937, 4
    %v1992 = vrot.slane %v1944, 4
    %v1993 = vsel %vm1987, %v1991, %v1992
    %v1994 = vrot.slane %v1958, 4
    %v1995 = vrot.slane %v1965, 4
    %v1996 = vsel %vm1987, %v1994, %v1995
    %v1997 = vrot.slane %v1979, 4
    %v1998 = vrot.slane %v1986, 4
    %v1999 = vsel %vm1987, %v1997, %v1998
    %2004 = vmatpush.msra.mxu0 %v1095
    %2005 = vmatpush.msra.mxu0 %v1094
    %2006 = vmatpush.msra.mxu0 %v1093
    %2007 = vmatpush.msra.mxu0 %v1092
    %2008 = vmatpush.msra.mxu0 %v1091
    %2009 = vmatpush.msra.mxu0 %v1090
    %2010 = vmatpush.msra.mxu0 %v1089
    %2011 = vmatpush.msra.mxu0 %v1088
    %2012 = vmatpush.msra.mxu0 %v1087
    %2013 = vmatpush.msra.mxu0 %v1086
    %2014 = vmatpush.msra.mxu0 %v1085
    %2015 = vmatpush.msra.mxu0 %v1084
    %2016 = vmatpush.msra.mxu0 %v1083
    %2017 = vmatpush.msra.mxu0 %v1082
    %2018 = vmatpush.msra.mxu0 %v1081
    %2019 = vmatpush.msra.mxu0 %v1080
    %2020 = vmatmul.f32.gmra.mxu0 %v1990
    %v2021 = vpop.f32.mrf.mxu0
    %v2022 = vadd.f32 0.0, %v2021
    %2023 = vdwg.mxu0
    %2024 = vmatpush.msra.mxu0 %v1111
    %2025 = vmatpush.msra.mxu0 %v1110
    %2026 = vmatpush.msra.mxu0 %v1109
    %2027 = vmatpush.msra.mxu0 %v1108
    %2028 = vmatpush.msra.mxu0 %v1107
    %2029 = vmatpush.msra.mxu0 %v1106
    %2030 = vmatpush.msra.mxu0 %v1105
    %2031 = vmatpush.msra.mxu0 %v1104
    %2032 = vmatpush.msra.mxu0 %v1103
    %2033 = vmatpush.msra.mxu0 %v1102
    %2034 = vmatpush.msra.mxu0 %v1101
    %2035 = vmatpush.msra.mxu0 %v1100
    %2036 = vmatpush.msra.mxu0 %v1099
    %2037 = vmatpush.msra.mxu0 %v1098
    %2038 = vmatpush.msra.mxu0 %v1097
    %2039 = vmatpush.msra.mxu0 %v1096
    %2040 = vmatmul.f32.gmra.mxu0 %v1993
    %v2041 = vpop.f32.mrf.mxu0
    %v2042 = vadd.f32 %v2022, %v2041
    %2043 = vdwg.mxu0
    %2044 = vmatpush.msra.mxu0 %v1127
    %2045 = vmatpush.msra.mxu0 %v1126
    %2046 = vmatpush.msra.mxu0 %v1125
    %2047 = vmatpush.msra.mxu0 %v1124
    %2048 = vmatpush.msra.mxu0 %v1123
    %2049 = vmatpush.msra.mxu0 %v1122
    %2050 = vmatpush.msra.mxu0 %v1121
    %2051 = vmatpush.msra.mxu0 %v1120
    %2052 = vmatpush.msra.mxu0 %v1119
    %2053 = vmatpush.msra.mxu0 %v1118
    %2054 = vmatpush.msra.mxu0 %v1117
    %2055 = vmatpush.msra.mxu0 %v1116
    %2056 = vmatpush.msra.mxu0 %v1115
    %2057 = vmatpush.msra.mxu0 %v1114
    %2058 = vmatpush.msra.mxu0 %v1113
    %2059 = vmatpush.msra.mxu0 %v1112
    %2060 = vmatmul.f32.gmra.mxu0 %v1996
    %v2061 = vpop.f32.mrf.mxu0
    %v2062 = vadd.f32 %v2042, %v2061
    %2063 = vdwg.mxu0
    %2064 = vmatpush.msra.mxu0 %v1143
    %2065 = vmatpush.msra.mxu0 %v1142
    %2066 = vmatpush.msra.mxu0 %v1141
    %2067 = vmatpush.msra.mxu0 %v1140
    %2068 = vmatpush.msra.mxu0 %v1139
    %2069 = vmatpush.msra.mxu0 %v1138
    %2070 = vmatpush.msra.mxu0 %v1137
    %2071 = vmatpush.msra.mxu0 %v1136
    %2072 = vmatpush.msra.mxu0 %v1135
    %2073 = vmatpush.msra.mxu0 %v1134
    %2074 = vmatpush.msra.mxu0 %v1133
    %2075 = vmatpush.msra.mxu0 %v1132
    %2076 = vmatpush.msra.mxu0 %v1131
    %2077 = vmatpush.msra.mxu0 %v1130
    %2078 = vmatpush.msra.mxu0 %v1129
    %2079 = vmatpush.msra.mxu0 %v1128
    %2080 = vmatmul.f32.gmra.mxu0 %v1999
    %v2081 = vpop.f32.mrf.mxu0
    %v2082 = vadd.f32 %v2062, %v2081
    %2083 = vdwg.mxu0
    %s2084 = scalar_lea.vmem [#allocation2], 8
    %v2085 = vld [vmem:[%s2084] sm:$0xff]
    %v2086 = vadd.f32 %v2085, %v2082
    %2087 = vst.msk [vmem:[%s2084] sm:$0xff] %vm1837, %v2086
    %v2096 = vrot.slane %v1064, 1
    %v2097 = vrot.slane %v1066, 1
    %v2098 = vrot.slane %v1068, 1
    %v2099 = vrot.slane %v1070, 1
    %v2100 = vrot.slane %v1072, 1
    %v2101 = vrot.slane %v1074, 1
    %v2102 = vrot.slane %v1076, 1
    %v2103 = vrot.slane %v1078, 1
    %v2112 = vmax.f32 %v1064, %v2096
    %v2113 = vmax.f32 %v1066, %v2097
    %v2114 = vmax.f32 %v1068, %v2098
    %v2115 = vmax.f32 %v1070, %v2099
    %v2116 = vmax.f32 %v1072, %v2100
    %v2117 = vmax.f32 %v1074, %v2101
    %v2118 = vmax.f32 %v1076, %v2102
    %v2119 = vmax.f32 %v1078, %v2103
    %v2120 = vrot.slane %v1064, 2
    %v2121 = vrot.slane %v1066, 2
    %v2122 = vrot.slane %v1068, 2
    %v2123 = vrot.slane %v1070, 2
    %v2124 = vrot.slane %v1072, 2
    %v2125 = vrot.slane %v1074, 2
    %v2126 = vrot.slane %v1076, 2
    %v2127 = vrot.slane %v1078, 2
    %v2136 = vmax.f32 %v2112, %v2120
    %v2137 = vmax.f32 %v2113, %v2121
    %v2138 = vmax.f32 %v2114, %v2122
    %v2139 = vmax.f32 %v2115, %v2123
    %v2140 = vmax.f32 %v2116, %v2124
    %v2141 = vmax.f32 %v2117, %v2125
    %v2142 = vmax.f32 %v2118, %v2126
    %v2143 = vmax.f32 %v2119, %v2127
    %v2144 = vrot.slane %v1064, 3
    %v2145 = vrot.slane %v1066, 3
    %v2146 = vrot.slane %v1068, 3
    %v2147 = vrot.slane %v1070, 3
    %v2148 = vrot.slane %v1072, 3
    %v2149 = vrot.slane %v1074, 3
    %v2150 = vrot.slane %v1076, 3
    %v2151 = vrot.slane %v1078, 3
    %v2160 = vmax.f32 %v2136, %v2144
    %v2161 = vmax.f32 %v2137, %v2145
    %v2162 = vmax.f32 %v2138, %v2146
    %v2163 = vmax.f32 %v2139, %v2147
    %v2164 = vmax.f32 %v2140, %v2148
    %v2165 = vmax.f32 %v2141, %v2149
    %v2166 = vmax.f32 %v2142, %v2150
    %v2167 = vmax.f32 %v2143, %v2151
    %v2168 = vsub.f32 %v1064, %v2160
    %v2169 = vsub.f32 %v1066, %v2161
    %v2170 = vsub.f32 %v1068, %v2162
    %v2171 = vsub.f32 %v1070, %v2163
    %v2172 = vsub.f32 %v1072, %v2164
    %v2173 = vsub.f32 %v1074, %v2165
    %v2174 = vsub.f32 %v1076, %v2166
    %v2175 = vsub.f32 %v1078, %v2167
    %v2176 = vmul.f32 %v2168, 1.442695
    %v2177 = vpow.pop %v2176
    %v2178 = vmul.f32 %v2169, 1.442695
    %v2179 = vpow.pop %v2178
    %v2180 = vmul.f32 %v2170, 1.442695
    %v2181 = vpow.pop %v2180
    %v2182 = vmul.f32 %v2171, 1.442695
    %v2183 = vpow.pop %v2182
    %v2184 = vmul.f32 %v2172, 1.442695
    %v2185 = vpow.pop %v2184
    %v2186 = vmul.f32 %v2173, 1.442695
    %v2187 = vpow.pop %v2186
    %v2188 = vmul.f32 %v2174, 1.442695
    %v2189 = vpow.pop %v2188
    %v2190 = vmul.f32 %v2175, 1.442695
    %v2191 = vpow.pop %v2190
    %v2200 = vrot.slane %v2160, 7
    %v2201 = vrot.slane %v2161, 7
    %v2202 = vrot.slane %v2162, 7
    %v2203 = vrot.slane %v2163, 7
    %v2204 = vrot.slane %v2164, 7
    %v2205 = vrot.slane %v2165, 7
    %v2206 = vrot.slane %v2166, 7
    %v2207 = vrot.slane %v2167, 7
    %v2216 = vsub.f32 %v1064, %v2200
    %v2217 = vsub.f32 %v1066, %v2201
    %v2218 = vsub.f32 %v1068, %v2202
    %v2219 = vsub.f32 %v1070, %v2203
    %v2220 = vsub.f32 %v1072, %v2204
    %v2221 = vsub.f32 %v1074, %v2205
    %v2222 = vsub.f32 %v1076, %v2206
    %v2223 = vsub.f32 %v1078, %v2207
    %v2224 = vmul.f32 %v2216, 1.442695
    %v2225 = vpow.pop %v2224
    %v2226 = vmul.f32 %v2217, 1.442695
    %v2227 = vpow.pop %v2226
    %v2228 = vmul.f32 %v2218, 1.442695
    %v2229 = vpow.pop %v2228
    %v2230 = vmul.f32 %v2219, 1.442695
    %v2231 = vpow.pop %v2230
    %v2232 = vmul.f32 %v2220, 1.442695
    %v2233 = vpow.pop %v2232
    %v2234 = vmul.f32 %v2221, 1.442695
    %v2235 = vpow.pop %v2234
    %v2236 = vmul.f32 %v2222, 1.442695
    %v2237 = vpow.pop %v2236
    %v2238 = vmul.f32 %v2223, 1.442695
    %v2239 = vpow.pop %v2238
    %v2240 = vrot.slane %v2160, 6
    %v2241 = vrot.slane %v2161, 6
    %v2242 = vrot.slane %v2162, 6
    %v2243 = vrot.slane %v2163, 6
    %v2244 = vrot.slane %v2164, 6
    %v2245 = vrot.slane %v2165, 6
    %v2246 = vrot.slane %v2166, 6
    %v2247 = vrot.slane %v2167, 6
    %v2256 = vsub.f32 %v1064, %v2240
    %v2257 = vsub.f32 %v1066, %v2241
    %v2258 = vsub.f32 %v1068, %v2242
    %v2259 = vsub.f32 %v1070, %v2243
    %v2260 = vsub.f32 %v1072, %v2244
    %v2261 = vsub.f32 %v1074, %v2245
    %v2262 = vsub.f32 %v1076, %v2246
    %v2263 = vsub.f32 %v1078, %v2247
    %v2264 = vmul.f32 %v2256, 1.442695
    %v2265 = vpow.pop %v2264
    %v2266 = vmul.f32 %v2257, 1.442695
    %v2267 = vpow.pop %v2266
    %v2268 = vmul.f32 %v2258, 1.442695
    %v2269 = vpow.pop %v2268
    %v2270 = vmul.f32 %v2259, 1.442695
    %v2271 = vpow.pop %v2270
    %v2272 = vmul.f32 %v2260, 1.442695
    %v2273 = vpow.pop %v2272
    %v2274 = vmul.f32 %v2261, 1.442695
    %v2275 = vpow.pop %v2274
    %v2276 = vmul.f32 %v2262, 1.442695
    %v2277 = vpow.pop %v2276
    %v2278 = vmul.f32 %v2263, 1.442695
    %v2279 = vpow.pop %v2278
    %v2280 = vrot.slane %v2160, 5
    %v2281 = vrot.slane %v2161, 5
    %v2282 = vrot.slane %v2162, 5
    %v2283 = vrot.slane %v2163, 5
    %v2284 = vrot.slane %v2164, 5
    %v2285 = vrot.slane %v2165, 5
    %v2286 = vrot.slane %v2166, 5
    %v2287 = vrot.slane %v2167, 5
    %v2296 = vsub.f32 %v1064, %v2280
    %v2297 = vsub.f32 %v1066, %v2281
    %v2298 = vsub.f32 %v1068, %v2282
    %v2299 = vsub.f32 %v1070, %v2283
    %v2300 = vsub.f32 %v1072, %v2284
    %v2301 = vsub.f32 %v1074, %v2285
    %v2302 = vsub.f32 %v1076, %v2286
    %v2303 = vsub.f32 %v1078, %v2287
    %v2304 = vmul.f32 %v2296, 1.442695
    %v2305 = vpow.pop %v2304
    %v2306 = vmul.f32 %v2297, 1.442695
    %v2307 = vpow.pop %v2306
    %v2308 = vmul.f32 %v2298, 1.442695
    %v2309 = vpow.pop %v2308
    %v2310 = vmul.f32 %v2299, 1.442695
    %v2311 = vpow.pop %v2310
    %v2312 = vmul.f32 %v2300, 1.442695
    %v2313 = vpow.pop %v2312
    %v2314 = vmul.f32 %v2301, 1.442695
    %v2315 = vpow.pop %v2314
    %v2316 = vmul.f32 %v2302, 1.442695
    %v2317 = vpow.pop %v2316
    %v2318 = vmul.f32 %v2303, 1.442695
    %v2319 = vpow.pop %v2318
    %v2328 = vrot.slane %v2225, 1
    %v2329 = vrot.slane %v2227, 1
    %v2330 = vrot.slane %v2229, 1
    %v2331 = vrot.slane %v2231, 1
    %v2332 = vrot.slane %v2233, 1
    %v2333 = vrot.slane %v2235, 1
    %v2334 = vrot.slane %v2237, 1
    %v2335 = vrot.slane %v2239, 1
    %v2344 = vadd.f32 %v2177, %v2328
    %v2345 = vadd.f32 %v2179, %v2329
    %v2346 = vadd.f32 %v2181, %v2330
    %v2347 = vadd.f32 %v2183, %v2331
    %v2348 = vadd.f32 %v2185, %v2332
    %v2349 = vadd.f32 %v2187, %v2333
    %v2350 = vadd.f32 %v2189, %v2334
    %v2351 = vadd.f32 %v2191, %v2335
    %v2360 = vrot.slane %v2265, 2
    %v2361 = vrot.slane %v2267, 2
    %v2362 = vrot.slane %v2269, 2
    %v2363 = vrot.slane %v2271, 2
    %v2364 = vrot.slane %v2273, 2
    %v2365 = vrot.slane %v2275, 2
    %v2366 = vrot.slane %v2277, 2
    %v2367 = vrot.slane %v2279, 2
    %v2376 = vadd.f32 %v2344, %v2360
    %v2377 = vadd.f32 %v2345, %v2361
    %v2378 = vadd.f32 %v2346, %v2362
    %v2379 = vadd.f32 %v2347, %v2363
    %v2380 = vadd.f32 %v2348, %v2364
    %v2381 = vadd.f32 %v2349, %v2365
    %v2382 = vadd.f32 %v2350, %v2366
    %v2383 = vadd.f32 %v2351, %v2367
    %v2392 = vrot.slane %v2305, 3
    %v2393 = vrot.slane %v2307, 3
    %v2394 = vrot.slane %v2309, 3
    %v2395 = vrot.slane %v2311, 3
    %v2396 = vrot.slane %v2313, 3
    %v2397 = vrot.slane %v2315, 3
    %v2398 = vrot.slane %v2317, 3
    %v2399 = vrot.slane %v2319, 3
    %v2408 = vadd.f32 %v2376, %v2392
    %v2409 = vadd.f32 %v2377, %v2393
    %v2410 = vadd.f32 %v2378, %v2394
    %v2411 = vadd.f32 %v2379, %v2395
    %v2412 = vadd.f32 %v2380, %v2396
    %v2413 = vadd.f32 %v2381, %v2397
    %v2414 = vadd.f32 %v2382, %v2398
    %v2415 = vadd.f32 %v2383, %v2399
    %v2416 = vrcp.pop %v2408
    %v2417 = vmul.f32 %v2408, %v2416
    %v2418 = vsub.f32 1.0, %v2417
    %v2419 = vmul.f32 %v2416, %v2418
    %v2420 = vadd.f32 %v2416, %v2419
    %vm2421 = vweird.f32 %v2408
    %vm2422 = vweird.f32 %v2416
    %vm2423 = vmor %vm2421, %vm2422
    %v2424 = vsel %vm2423, %v2416, %v2420
    %v2425 = vand.u32 2147483647, %v2408
    %vm2426 = vcmp.eq.f32.partialorder %v2425, 8.507059e+37
    %v2427 = vand.u32 %v2408, 2147483648
    %v2428 = vor.u32 1.1754944e-38, %v2427
    %v2429 = vsel %vm2426, %v2428, %v2424
    %v2430 = vrcp.pop %v2409
    %v2431 = vmul.f32 %v2409, %v2430
    %v2432 = vsub.f32 1.0, %v2431
    %v2433 = vmul.f32 %v2430, %v2432
    %v2434 = vadd.f32 %v2430, %v2433
    %vm2435 = vweird.f32 %v2409
    %vm2436 = vweird.f32 %v2430
    %vm2437 = vmor %vm2435, %vm2436
    %v2438 = vsel %vm2437, %v2430, %v2434
    %v2439 = vand.u32 2147483647, %v2409
    %vm2440 = vcmp.eq.f32.partialorder %v2439, 8.507059e+37
    %v2441 = vand.u32 %v2409, 2147483648
    %v2442 = vor.u32 1.1754944e-38, %v2441
    %v2443 = vsel %vm2440, %v2442, %v2438
    %v2444 = vrcp.pop %v2410
    %v2445 = vmul.f32 %v2410, %v2444
    %v2446 = vsub.f32 1.0, %v2445
    %v2447 = vmul.f32 %v2444, %v2446
    %v2448 = vadd.f32 %v2444, %v2447
    %vm2449 = vweird.f32 %v2410
    %vm2450 = vweird.f32 %v2444
    %vm2451 = vmor %vm2449, %vm2450
    %v2452 = vsel %vm2451, %v2444, %v2448
    %v2453 = vand.u32 2147483647, %v2410
    %vm2454 = vcmp.eq.f32.partialorder %v2453, 8.507059e+37
    %v2455 = vand.u32 %v2410, 2147483648
    %v2456 = vor.u32 1.1754944e-38, %v2455
    %v2457 = vsel %vm2454, %v2456, %v2452
    %v2458 = vrcp.pop %v2411
    %v2459 = vmul.f32 %v2411, %v2458
    %v2460 = vsub.f32 1.0, %v2459
    %v2461 = vmul.f32 %v2458, %v2460
    %v2462 = vadd.f32 %v2458, %v2461
    %vm2463 = vweird.f32 %v2411
    %vm2464 = vweird.f32 %v2458
    %vm2465 = vmor %vm2463, %vm2464
    %v2466 = vsel %vm2465, %v2458, %v2462
    %v2467 = vand.u32 2147483647, %v2411
    %vm2468 = vcmp.eq.f32.partialorder %v2467, 8.507059e+37
    %v2469 = vand.u32 %v2411, 2147483648
    %v2470 = vor.u32 1.1754944e-38, %v2469
    %v2471 = vsel %vm2468, %v2470, %v2466
    %v2472 = vrcp.pop %v2412
    %v2473 = vmul.f32 %v2412, %v2472
    %v2474 = vsub.f32 1.0, %v2473
    %v2475 = vmul.f32 %v2472, %v2474
    %v2476 = vadd.f32 %v2472, %v2475
    %vm2477 = vweird.f32 %v2412
    %vm2478 = vweird.f32 %v2472
    %vm2479 = vmor %vm2477, %vm2478
    %v2480 = vsel %vm2479, %v2472, %v2476
    %v2481 = vand.u32 2147483647, %v2412
    %vm2482 = vcmp.eq.f32.partialorder %v2481, 8.507059e+37
    %v2483 = vand.u32 %v2412, 2147483648
    %v2484 = vor.u32 1.1754944e-38, %v2483
    %v2485 = vsel %vm2482, %v2484, %v2480
    %v2486 = vrcp.pop %v2413
    %v2487 = vmul.f32 %v2413, %v2486
    %v2488 = vsub.f32 1.0, %v2487
    %v2489 = vmul.f32 %v2486, %v2488
    %v2490 = vadd.f32 %v2486, %v2489
    %vm2491 = vweird.f32 %v2413
    %vm2492 = vweird.f32 %v2486
    %vm2493 = vmor %vm2491, %vm2492
    %v2494 = vsel %vm2493, %v2486, %v2490
    %v2495 = vand.u32 2147483647, %v2413
    %vm2496 = vcmp.eq.f32.partialorder %v2495, 8.507059e+37
    %v2497 = vand.u32 %v2413, 2147483648
    %v2498 = vor.u32 1.1754944e-38, %v2497
    %v2499 = vsel %vm2496, %v2498, %v2494
    %v2500 = vrcp.pop %v2414
    %v2501 = vmul.f32 %v2414, %v2500
    %v2502 = vsub.f32 1.0, %v2501
    %v2503 = vmul.f32 %v2500, %v2502
    %v2504 = vadd.f32 %v2500, %v2503
    %vm2505 = vweird.f32 %v2414
    %vm2506 = vweird.f32 %v2500
    %vm2507 = vmor %vm2505, %vm2506
    %v2508 = vsel %vm2507, %v2500, %v2504
    %v2509 = vand.u32 2147483647, %v2414
    %vm2510 = vcmp.eq.f32.partialorder %v2509, 8.507059e+37
    %v2511 = vand.u32 %v2414, 2147483648
    %v2512 = vor.u32 1.1754944e-38, %v2511
    %v2513 = vsel %vm2510, %v2512, %v2508
    %v2514 = vrcp.pop %v2415
    %v2515 = vmul.f32 %v2415, %v2514
    %v2516 = vsub.f32 1.0, %v2515
    %v2517 = vmul.f32 %v2514, %v2516
    %v2518 = vadd.f32 %v2514, %v2517
    %vm2519 = vweird.f32 %v2415
    %vm2520 = vweird.f32 %v2514
    %vm2521 = vmor %vm2519, %vm2520
    %v2522 = vsel %vm2521, %v2514, %v2518
    %v2523 = vand.u32 2147483647, %v2415
    %vm2524 = vcmp.eq.f32.partialorder %v2523, 8.507059e+37
    %v2525 = vand.u32 %v2415, 2147483648
    %v2526 = vor.u32 1.1754944e-38, %v2525
    %v2527 = vsel %vm2524, %v2526, %v2522
    %v2536 = vrot.slane %v2443, 7
    %v2537 = vsel %vm1593, %v2536, %v2429
    %v2538 = vrot.slane %v2457, 6
    %v2539 = vsel %vm1596, %v2538, %v2537
    %v2540 = vrot.slane %v2471, 5
    %v2541 = vsel %vm1599, %v2540, %v2539
    %v2542 = vrot.slane %v2485, 4
    %v2543 = vsel %vm1602, %v2542, %v2541
    %v2544 = vrot.slane %v2499, 3
    %v2545 = vsel %vm1605, %v2544, %v2543
    %v2546 = vrot.slane %v2513, 2
    %v2547 = vsel %vm1608, %v2546, %v2545
    %v2548 = vrot.slane %v2527, 1
    %v2549 = vsel %vm1611, %v2548, %v2547
    %v2551 = vmul.f32 %v1079, %v2549
    %v2553 = vrot.slane %v2551, 1
    %v2554 = vrot.slane %v2551, 2
    %v2555 = vrot.slane %v2551, 3
    %v2556 = vrot.slane %v2551, 4
    %v2557 = vrot.slane %v2551, 5
    %v2558 = vrot.slane %v2551, 6
    %v2559 = vrot.slane %v2551, 7
    %v2568 = vmul.f32 %v2177, %v2551
    %v2569 = vmul.f32 %v2179, %v2553
    %v2570 = vmul.f32 %v2181, %v2554
    %v2571 = vmul.f32 %v2183, %v2555
    %v2572 = vmul.f32 %v2185, %v2556
    %v2573 = vmul.f32 %v2187, %v2557
    %v2574 = vmul.f32 %v2189, %v2558
    %v2575 = vmul.f32 %v2191, %v2559
    %v2576 = vmul.f32 %v2225, %v2559
    %v2577 = vmul.f32 %v2227, %v2551
    %v2578 = vmul.f32 %v2229, %v2553
    %v2579 = vmul.f32 %v2231, %v2554
    %v2580 = vmul.f32 %v2233, %v2555
    %v2581 = vmul.f32 %v2235, %v2556
    %v2582 = vmul.f32 %v2237, %v2557
    %v2583 = vmul.f32 %v2239, %v2558
    %v2584 = vmul.f32 %v2265, %v2558
    %v2585 = vmul.f32 %v2267, %v2559
    %v2586 = vmul.f32 %v2269, %v2551
    %v2587 = vmul.f32 %v2271, %v2553
    %v2588 = vmul.f32 %v2273, %v2554
    %v2589 = vmul.f32 %v2275, %v2555
    %v2590 = vmul.f32 %v2277, %v2556
    %v2591 = vmul.f32 %v2279, %v2557
    %v2592 = vmul.f32 %v2305, %v2557
    %v2593 = vmul.f32 %v2307, %v2558
    %v2594 = vmul.f32 %v2309, %v2559
    %v2595 = vmul.f32 %v2311, %v2551
    %v2596 = vmul.f32 %v2313, %v2553
    %v2597 = vmul.f32 %v2315, %v2554
    %v2598 = vmul.f32 %v2317, %v2555
    %v2599 = vmul.f32 %v2319, %v2556
    %v2608 = vrot.slane %v2569, 7
    %v2609 = vsel %vm1593, %v2608, %v2568
    %v2610 = vrot.slane %v2570, 6
    %v2611 = vsel %vm1596, %v2610, %v2609
    %v2612 = vrot.slane %v2571, 5
    %v2613 = vsel %vm1599, %v2612, %v2611
    %v2614 = vrot.slane %v2572, 4
    %v2615 = vsel %vm1602, %v2614, %v2613
    %v2616 = vrot.slane %v2573, 3
    %v2617 = vsel %vm1605, %v2616, %v2615
    %v2618 = vrot.slane %v2574, 2
    %v2619 = vsel %vm1608, %v2618, %v2617
    %v2620 = vrot.slane %v2575, 1
    %v2621 = vsel %vm1611, %v2620, %v2619
    %v2631 = vrot.slane %v2576, 1
    %v2632 = vsel %vm1593, %v2577, %v2631
    %v2633 = vrot.slane %v2578, 7
    %v2634 = vsel %vm1596, %v2633, %v2632
    %v2635 = vrot.slane %v2579, 6
    %v2636 = vsel %vm1599, %v2635, %v2634
    %v2637 = vrot.slane %v2580, 5
    %v2638 = vsel %vm1602, %v2637, %v2636
    %v2639 = vrot.slane %v2581, 4
    %v2640 = vsel %vm1605, %v2639, %v2638
    %v2641 = vrot.slane %v2582, 3
    %v2642 = vsel %vm1608, %v2641, %v2640
    %v2643 = vrot.slane %v2583, 2
    %v2644 = vsel %vm1611, %v2643, %v2642
    %v2654 = vrot.slane %v2584, 2
    %v2655 = vrot.slane %v2585, 1
    %v2656 = vsel %vm1593, %v2655, %v2654
    %v2657 = vsel %vm1596, %v2586, %v2656
    %v2658 = vrot.slane %v2587, 7
    %v2659 = vsel %vm1599, %v2658, %v2657
    %v2660 = vrot.slane %v2588, 6
    %v2661 = vsel %vm1602, %v2660, %v2659
    %v2662 = vrot.slane %v2589, 5
    %v2663 = vsel %vm1605, %v2662, %v2661
    %v2664 = vrot.slane %v2590, 4
    %v2665 = vsel %vm1608, %v2664, %v2663
    %v2666 = vrot.slane %v2591, 3
    %v2667 = vsel %vm1611, %v2666, %v2665
    %v2677 = vrot.slane %v2592, 3
    %v2678 = vrot.slane %v2593, 2
    %v2679 = vsel %vm1593, %v2678, %v2677
    %v2680 = vrot.slane %v2594, 1
    %v2681 = vsel %vm1596, %v2680, %v2679
    %v2682 = vsel %vm1599, %v2595, %v2681
    %v2683 = vrot.slane %v2596, 7
    %v2684 = vsel %vm1602, %v2683, %v2682
    %v2685 = vrot.slane %v2597, 6
    %v2686 = vsel %vm1605, %v2685, %v2684
    %v2687 = vrot.slane %v2598, 5
    %v2688 = vsel %vm1608, %v2687, %v2686
    %v2689 = vrot.slane %v2599, 4
    %v2690 = vsel %vm1611, %v2689, %v2688
    %2692 = vmatpush.msra.mxu0 %v1095
    %2693 = vmatpush.msra.mxu0 %v1094
    %2694 = vmatpush.msra.mxu0 %v1093
    %2695 = vmatpush.msra.mxu0 %v1092
    %2696 = vmatpush.msra.mxu0 %v1091
    %2697 = vmatpush.msra.mxu0 %v1090
    %2698 = vmatpush.msra.mxu0 %v1089
    %2699 = vmatpush.msra.mxu0 %v1088
    %2700 = vmatpush.msra.mxu0 %v1087
    %2701 = vmatpush.msra.mxu0 %v1086
    %2702 = vmatpush.msra.mxu0 %v1085
    %2703 = vmatpush.msra.mxu0 %v1084
    %2704 = vmatpush.msra.mxu0 %v1083
    %2705 = vmatpush.msra.mxu0 %v1082
    %2706 = vmatpush.msra.mxu0 %v1081
    %2707 = vmatpush.msra.mxu0 %v1080
    %2708 = vmatmul.f32.gmra.mxu0 %v2621
    %v2709 = vpop.f32.mrf.mxu0
    %v2710 = vadd.f32 0.0, %v2709
    %2711 = vdwg.mxu0
    %2712 = vmatpush.msra.mxu0 %v1111
    %2713 = vmatpush.msra.mxu0 %v1110
    %2714 = vmatpush.msra.mxu0 %v1109
    %2715 = vmatpush.msra.mxu0 %v1108
    %2716 = vmatpush.msra.mxu0 %v1107
    %2717 = vmatpush.msra.mxu0 %v1106
    %2718 = vmatpush.msra.mxu0 %v1105
    %2719 = vmatpush.msra.mxu0 %v1104
    %2720 = vmatpush.msra.mxu0 %v1103
    %2721 = vmatpush.msra.mxu0 %v1102
    %2722 = vmatpush.msra.mxu0 %v1101
    %2723 = vmatpush.msra.mxu0 %v1100
    %2724 = vmatpush.msra.mxu0 %v1099
    %2725 = vmatpush.msra.mxu0 %v1098
    %2726 = vmatpush.msra.mxu0 %v1097
    %2727 = vmatpush.msra.mxu0 %v1096
    %2728 = vmatmul.f32.gmra.mxu0 %v2644
    %v2729 = vpop.f32.mrf.mxu0
    %v2730 = vadd.f32 %v2710, %v2729
    %2731 = vdwg.mxu0
    %2732 = vmatpush.msra.mxu0 %v1127
    %2733 = vmatpush.msra.mxu0 %v1126
    %2734 = vmatpush.msra.mxu0 %v1125
    %2735 = vmatpush.msra.mxu0 %v1124
    %2736 = vmatpush.msra.mxu0 %v1123
    %2737 = vmatpush.msra.mxu0 %v1122
    %2738 = vmatpush.msra.mxu0 %v1121
    %2739 = vmatpush.msra.mxu0 %v1120
    %2740 = vmatpush.msra.mxu0 %v1119
    %2741 = vmatpush.msra.mxu0 %v1118
    %2742 = vmatpush.msra.mxu0 %v1117
    %2743 = vmatpush.msra.mxu0 %v1116
    %2744 = vmatpush.msra.mxu0 %v1115
    %2745 = vmatpush.msra.mxu0 %v1114
    %2746 = vmatpush.msra.mxu0 %v1113
    %2747 = vmatpush.msra.mxu0 %v1112
    %2748 = vmatmul.f32.gmra.mxu0 %v2667
    %v2749 = vpop.f32.mrf.mxu0
    %v2750 = vadd.f32 %v2730, %v2749
    %2751 = vdwg.mxu0
    %2752 = vmatpush.msra.mxu0 %v1143
    %2753 = vmatpush.msra.mxu0 %v1142
    %2754 = vmatpush.msra.mxu0 %v1141
    %2755 = vmatpush.msra.mxu0 %v1140
    %2756 = vmatpush.msra.mxu0 %v1139
    %2757 = vmatpush.msra.mxu0 %v1138
    %2758 = vmatpush.msra.mxu0 %v1137
    %2759 = vmatpush.msra.mxu0 %v1136
    %2760 = vmatpush.msra.mxu0 %v1135
    %2761 = vmatpush.msra.mxu0 %v1134
    %2762 = vmatpush.msra.mxu0 %v1133
    %2763 = vmatpush.msra.mxu0 %v1132
    %2764 = vmatpush.msra.mxu0 %v1131
    %2765 = vmatpush.msra.mxu0 %v1130
    %2766 = vmatpush.msra.mxu0 %v1129
    %2767 = vmatpush.msra.mxu0 %v1128
    %2768 = vmatmul.f32.gmra.mxu0 %v2690
    %v2769 = vpop.f32.mrf.mxu0
    %v2770 = vadd.f32 %v2750, %v2769
    %2771 = vdwg.mxu0
    %s2772 = scalar_lea.vmem [#allocation2], 16
    %v2773 = vld [vmem:[%s2772] sm:$0xff]
    %v2774 = vadd.f32 %v2773, %v2770
    %2775 = vst.msk [vmem:[%s2772] sm:$0xff] %vm1837, %v2774
    %v2776 = vrot.slane %v2429, 4
    %v2777 = vrot.slane %v2443, 3
    %v2778 = vsel %vm1593, %v2777, %v2776
    %v2779 = vrot.slane %v2457, 2
    %v2780 = vsel %vm1596, %v2779, %v2778
    %v2781 = vrot.slane %v2471, 1
    %v2782 = vsel %vm1599, %v2781, %v2780
    %v2783 = vsel %vm1602, %v2485, %v2782
    %v2784 = vrot.slane %v2499, 7
    %v2785 = vsel %vm1605, %v2784, %v2783
    %v2786 = vrot.slane %v2513, 6
    %v2787 = vsel %vm1608, %v2786, %v2785
    %v2788 = vrot.slane %v2527, 5
    %v2789 = vsel %vm1611, %v2788, %v2787
    %v2791 = vmul.f32 %v1079, %v2789
    %v2793 = vrot.slane %v2791, 4
    %v2794 = vrot.slane %v2791, 5
    %v2795 = vrot.slane %v2791, 6
    %v2796 = vrot.slane %v2791, 7
    %v2797 = vrot.slane %v2791, 1
    %v2798 = vrot.slane %v2791, 2
    %v2799 = vrot.slane %v2791, 3
    %v2808 = vmul.f32 %v2177, %v2793
    %v2809 = vmul.f32 %v2179, %v2794
    %v2810 = vmul.f32 %v2181, %v2795
    %v2811 = vmul.f32 %v2183, %v2796
    %v2812 = vmul.f32 %v2185, %v2791
    %v2813 = vmul.f32 %v2187, %v2797
    %v2814 = vmul.f32 %v2189, %v2798
    %v2815 = vmul.f32 %v2191, %v2799
    %v2816 = vmul.f32 %v2225, %v2799
    %v2817 = vmul.f32 %v2227, %v2793
    %v2818 = vmul.f32 %v2229, %v2794
    %v2819 = vmul.f32 %v2231, %v2795
    %v2820 = vmul.f32 %v2233, %v2796
    %v2821 = vmul.f32 %v2235, %v2791
    %v2822 = vmul.f32 %v2237, %v2797
    %v2823 = vmul.f32 %v2239, %v2798
    %v2824 = vmul.f32 %v2265, %v2798
    %v2825 = vmul.f32 %v2267, %v2799
    %v2826 = vmul.f32 %v2269, %v2793
    %v2827 = vmul.f32 %v2271, %v2794
    %v2828 = vmul.f32 %v2273, %v2795
    %v2829 = vmul.f32 %v2275, %v2796
    %v2830 = vmul.f32 %v2277, %v2791
    %v2831 = vmul.f32 %v2279, %v2797
    %v2832 = vmul.f32 %v2305, %v2797
    %v2833 = vmul.f32 %v2307, %v2798
    %v2834 = vmul.f32 %v2309, %v2799
    %v2835 = vmul.f32 %v2311, %v2793
    %v2836 = vmul.f32 %v2313, %v2794
    %v2837 = vmul.f32 %v2315, %v2795
    %v2838 = vmul.f32 %v2317, %v2796
    %v2839 = vmul.f32 %v2319, %v2791
    %v2848 = vrot.slane %v2809, 7
    %v2849 = vsel %vm1605, %v2848, %v2808
    %v2850 = vrot.slane %v2810, 6
    %v2851 = vsel %vm1608, %v2850, %v2849
    %v2852 = vrot.slane %v2811, 5
    %v2853 = vsel %vm1611, %v2852, %v2851
    %v2854 = vrot.slane %v2812, 4
    %v2855 = vrot.slane %v2813, 3
    %v2856 = vsel %vm1593, %v2855, %v2854
    %v2857 = vrot.slane %v2814, 2
    %v2858 = vsel %vm1596, %v2857, %v2856
    %v2859 = vrot.slane %v2815, 1
    %v2860 = vsel %vm1599, %v2859, %v2858
    %v2869 = vrot.slane %v2816, 1
    %v2870 = vsel %vm1605, %v2817, %v2869
    %v2871 = vrot.slane %v2818, 7
    %v2872 = vsel %vm1608, %v2871, %v2870
    %v2873 = vrot.slane %v2819, 6
    %v2874 = vsel %vm1611, %v2873, %v2872
    %v2875 = vrot.slane %v2820, 5
    %v2876 = vrot.slane %v2821, 4
    %v2877 = vsel %vm1593, %v2876, %v2875
    %v2878 = vrot.slane %v2822, 3
    %v2879 = vsel %vm1596, %v2878, %v2877
    %v2880 = vrot.slane %v2823, 2
    %v2881 = vsel %vm1599, %v2880, %v2879
    %v2890 = vrot.slane %v2824, 2
    %v2891 = vrot.slane %v2825, 1
    %v2892 = vsel %vm1605, %v2891, %v2890
    %v2893 = vsel %vm1608, %v2826, %v2892
    %v2894 = vrot.slane %v2827, 7
    %v2895 = vsel %vm1611, %v2894, %v2893
    %v2896 = vrot.slane %v2828, 6
    %v2897 = vrot.slane %v2829, 5
    %v2898 = vsel %vm1593, %v2897, %v2896
    %v2899 = vrot.slane %v2830, 4
    %v2900 = vsel %vm1596, %v2899, %v2898
    %v2901 = vrot.slane %v2831, 3
    %v2902 = vsel %vm1599, %v2901, %v2900
    %v2911 = vrot.slane %v2832, 3
    %v2912 = vrot.slane %v2833, 2
    %v2913 = vsel %vm1605, %v2912, %v2911
    %v2914 = vrot.slane %v2834, 1
    %v2915 = vsel %vm1608, %v2914, %v2913
    %v2916 = vsel %vm1611, %v2835, %v2915
    %v2917 = vrot.slane %v2836, 7
    %v2918 = vrot.slane %v2837, 6
    %v2919 = vsel %vm1593, %v2918, %v2917
    %v2920 = vrot.slane %v2838, 5
    %v2921 = vsel %vm1596, %v2920, %v2919
    %v2922 = vrot.slane %v2839, 4
    %v2923 = vsel %vm1599, %v2922, %v2921
    %v2924 = vrot.slane %v2853, 4
    %v2925 = vrot.slane %v2860, 4
    %v2926 = vsel %vm1987, %v2924, %v2925
    %v2927 = vrot.slane %v2874, 4
    %v2928 = vrot.slane %v2881, 4
    %v2929 = vsel %vm1987, %v2927, %v2928
    %v2930 = vrot.slane %v2895, 4
    %v2931 = vrot.slane %v2902, 4
    %v2932 = vsel %vm1987, %v2930, %v2931
    %v2933 = vrot.slane %v2916, 4
    %v2934 = vrot.slane %v2923, 4
    %v2935 = vsel %vm1987, %v2933, %v2934
    %2940 = vmatpush.msra.mxu0 %v1095
    %2941 = vmatpush.msra.mxu0 %v1094
    %2942 = vmatpush.msra.mxu0 %v1093
    %2943 = vmatpush.msra.mxu0 %v1092
    %2944 = vmatpush.msra.mxu0 %v1091
    %2945 = vmatpush.msra.mxu0 %v1090
    %2946 = vmatpush.msra.mxu0 %v1089
    %2947 = vmatpush.msra.mxu0 %v1088
    %2948 = vmatpush.msra.mxu0 %v1087
    %2949 = vmatpush.msra.mxu0 %v1086
    %2950 = vmatpush.msra.mxu0 %v1085
    %2951 = vmatpush.msra.mxu0 %v1084
    %2952 = vmatpush.msra.mxu0 %v1083
    %2953 = vmatpush.msra.mxu0 %v1082
    %2954 = vmatpush.msra.mxu0 %v1081
    %2955 = vmatpush.msra.mxu0 %v1080
    %2956 = vmatmul.f32.gmra.mxu0 %v2926
    %v2957 = vpop.f32.mrf.mxu0
    %v2958 = vadd.f32 0.0, %v2957
    %2959 = vdwg.mxu0
    %2960 = vmatpush.msra.mxu0 %v1111
    %2961 = vmatpush.msra.mxu0 %v1110
    %2962 = vmatpush.msra.mxu0 %v1109
    %2963 = vmatpush.msra.mxu0 %v1108
    %2964 = vmatpush.msra.mxu0 %v1107
    %2965 = vmatpush.msra.mxu0 %v1106
    %2966 = vmatpush.msra.mxu0 %v1105
    %2967 = vmatpush.msra.mxu0 %v1104
    %2968 = vmatpush.msra.mxu0 %v1103
    %2969 = vmatpush.msra.mxu0 %v1102
    %2970 = vmatpush.msra.mxu0 %v1101
    %2971 = vmatpush.msra.mxu0 %v1100
    %2972 = vmatpush.msra.mxu0 %v1099
    %2973 = vmatpush.msra.mxu0 %v1098
    %2974 = vmatpush.msra.mxu0 %v1097
    %2975 = vmatpush.msra.mxu0 %v1096
    %2976 = vmatmul.f32.gmra.mxu0 %v2929
    %v2977 = vpop.f32.mrf.mxu0
    %v2978 = vadd.f32 %v2958, %v2977
    %2979 = vdwg.mxu0
    %2980 = vmatpush.msra.mxu0 %v1127
    %2981 = vmatpush.msra.mxu0 %v1126
    %2982 = vmatpush.msra.mxu0 %v1125
    %2983 = vmatpush.msra.mxu0 %v1124
    %2984 = vmatpush.msra.mxu0 %v1123
    %2985 = vmatpush.msra.mxu0 %v1122
    %2986 = vmatpush.msra.mxu0 %v1121
    %2987 = vmatpush.msra.mxu0 %v1120
    %2988 = vmatpush.msra.mxu0 %v1119
    %2989 = vmatpush.msra.mxu0 %v1118
    %2990 = vmatpush.msra.mxu0 %v1117
    %2991 = vmatpush.msra.mxu0 %v1116
    %2992 = vmatpush.msra.mxu0 %v1115
    %2993 = vmatpush.msra.mxu0 %v1114
    %2994 = vmatpush.msra.mxu0 %v1113
    %2995 = vmatpush.msra.mxu0 %v1112
    %2996 = vmatmul.f32.gmra.mxu0 %v2932
    %v2997 = vpop.f32.mrf.mxu0
    %v2998 = vadd.f32 %v2978, %v2997
    %2999 = vdwg.mxu0
    %3000 = vmatpush.msra.mxu0 %v1143
    %3001 = vmatpush.msra.mxu0 %v1142
    %3002 = vmatpush.msra.mxu0 %v1141
    %3003 = vmatpush.msra.mxu0 %v1140
    %3004 = vmatpush.msra.mxu0 %v1139
    %3005 = vmatpush.msra.mxu0 %v1138
    %3006 = vmatpush.msra.mxu0 %v1137
    %3007 = vmatpush.msra.mxu0 %v1136
    %3008 = vmatpush.msra.mxu0 %v1135
    %3009 = vmatpush.msra.mxu0 %v1134
    %3010 = vmatpush.msra.mxu0 %v1133
    %3011 = vmatpush.msra.mxu0 %v1132
    %3012 = vmatpush.msra.mxu0 %v1131
    %3013 = vmatpush.msra.mxu0 %v1130
    %3014 = vmatpush.msra.mxu0 %v1129
    %3015 = vmatpush.msra.mxu0 %v1128
    %3016 = vmatmul.f32.gmra.mxu0 %v2935
    %v3017 = vpop.f32.mrf.mxu0
    %v3018 = vadd.f32 %v2998, %v3017
    %3019 = vdwg.mxu0
    %s3020 = scalar_lea.vmem [#allocation2], 24
    %v3021 = vld [vmem:[%s3020] sm:$0xff]
    %v3022 = vadd.f32 %v3021, %v3018
    %3023 = vst.msk [vmem:[%s3020] sm:$0xff] %vm1837, %v3022
    // Predicated region
    $region38: #{tpu_custom_call.1} parent=1 // pred_check
      %p3024 = pneg %p30
    $region39: #{tpu_custom_call.1} parent=1 // pred_check_branch
      %3026 = sbr.rel (%p3024) target = $region41
    $region40: #{tpu_custom_call.1} parent=1 // pred_region
      %v3027 = vld [vmem:[#allocation2] sm:$0xff]
      %v3028 = vld [vmem:[%s2084] sm:$0xff]
      %v3029 = vld [vmem:[%s2772] sm:$0xff]
      %v3030 = vld [vmem:[%s3020] sm:$0xff]
      %3032 = vrot.lane.b32.xlu0 %v3028, 8
      %v3033 = vpop.permute.xlu0 %3032
      %3036 = vrot.lane.b32.xlu0 %v3029, 16
      %v3037 = vpop.permute.xlu0 %3036
      %3040 = vrot.lane.b32.xlu0 %v3030, 24
      %v3041 = vpop.permute.xlu0 %3040
      %v3043 = vsel %vm1837, %v3027, %v3033
      %vm3044 = vcmask 130048
      %v3045 = vsel %vm3044, %v3043, %v3037
      %vm3046 = vcmask 195584
      %v3047 = vsel %vm3046, %v3045, %v3041
      %v3048 = vld [vmem:[%s0] sm:$0xff]
      %v3049 = vadd.f32 %v3048, %v3047
      %v3050 = vsel %vm669, %v3049, 0.0
      %3051 = vadd.xlane.f32.xlu0 %v3050
      %v3052 = vpop.xlane.xlu0 %3051
      %v3053 = vrcp.pop 32.0
      %v3054 = vmul.f32 32.0, %v3053
      %v3055 = vsub.f32 1.0, %v3054
      %v3056 = vmul.f32 %v3053, %v3055
      %v3057 = vadd.f32 %v3053, %v3056
      %vm3058 = vweird.f32 %v3053
      %v3059 = vsel %vm3058, %v3053, %v3057
      %v3060 = vmul.f32 %v3052, %v3059
      %v3061 = vsub.f32 %v3049, %v3060
      %v3062 = vmul.f32 %v3061, %v3061
      %v3063 = vsel %vm669, %v3062, 0.0
      %3064 = vadd.xlane.f32.xlu0 %v3063
      %v3065 = vpop.xlane.xlu0 %3064
      %v3066 = vmul.f32 %v3065, %v3059
      %v3067 = vadd.f32 %v3066, 1e-06
      %v3068 = vrsqrt.pop %v3067
      %v3069 = vmul.f32 %v3068, %v3067
      %v3070 = vmul.f32 %v3069, %v3068
      %v3071 = vmul.f32 0.5, %v3070
      %v3072 = vsub.f32 1.5, %v3071
      %v3073 = vmul.f32 %v3068, %v3072
      %vm3074 = vweird.f32 %v3067
      %vm3075 = vweird.f32 %v3068
      %vm3076 = vmor %vm3074, %vm3075
      %v3077 = vsel %vm3076, %v3068, %v3073
      %v3078 = vmul.f32 %v3061, %v3077
      %v3079 = vld [vmem:[%s6] sm:$0x1]
      %v3081 = vperm.slane %v3079, 0
      %v3083 = vmul.f32 %v3078, %v3081
      %v3084 = vld [vmem:[%s7] sm:$0x1]
      %v3086 = vperm.slane %v3084, 0
      %v3088 = vadd.f32 %v3083, %v3086
      %3089 = vst.msk [vmem:[#allocation4] sm:$0xff] %vm669, %v3088
    $region41: #{tpu_custom_call.1} parent=1 // pred_fallthru
      _
    // Predicated region
    $region42: #{tpu_custom_call.1} parent=1 // pred_check
      _
    $region43: #{tpu_custom_call.1} parent=1 // pred_check_branch
      %3091 = sbr.rel (0) target = $region45
    $region44: #{tpu_custom_call.1} parent=1 // pred_region
      %3093 = vsyncadd [#allocation5], 0
      %s3095 = sshll.u32 [#allocation4], 4
      %s3096 = int_to_ptr.vmem [resolvable:$true] %s3095
      %s3097 = sshll.u32 %s8, 4
      %s3098 = int_to_ptr.hbm [resolvable:$true] %s3097
      %3100 = dma.vmem_to_hbm [thread:$0]  %s3096, 128, %s3098, [#allocation5]
    $region45: #{tpu_custom_call.1} parent=1 // pred_fallthru
      _
    // Predicated region
    $region46: #{tpu_custom_call.1} parent=1 // pred_check
      _
    $region47: #{tpu_custom_call.1} parent=1 // pred_check_branch
      %3102 = sbr.rel (0) target = $region49
    $region48: #{tpu_custom_call.1} parent=1 // pred_region
      %3104 = dma.done [#allocation5], 128
    $region49: #{tpu_custom_call.1} parent=1 // pred_fallthru
      _
    %3105 = vsyncpa [#allocation5], 1

</llo_original>
